<compile_context>
chip_gen: v5e
topology: v5e:2x2
jax: 0.10.0
libtpu: 0.0.40
codegen_flags: <defaults>
</compile_context>

<pallas_src>
import functools

import jax
import jax.numpy as jnp
import numpy as np
from jax.experimental import pallas as pl
from jax.experimental.pallas import tpu as pltpu


# ----------------------------- Pallas kernels ------------------------------ #

def _convT_kernel(w_ref, p_ref, b_ref, o_ref):
    # o (Cout, M) = relu( w (Cout, Kp) @ p (Kp, M) + b (Cout, 1) )
    acc = jnp.dot(w_ref[...], p_ref[...], preferred_element_type=jnp.float32)
    acc = acc + b_ref[...]                       # (Cout,1) broadcasts over lanes
    o_ref[...] = jnp.maximum(acc, 0.0).astype(o_ref.dtype)


def _tail_kernel(flat_ref, w1_ref, b1_ref, w2_ref, b2_ref, q_ref, acc_ref, *, act):
    # Fused tail: h = relu(flat @ W1 + b1) with W1 = [fc1A | fc1V] (K-tiled),
    # AV = h @ W2_blockdiag + b2, Q = V + A - mean(A).
    k = pl.program_id(0)

    @pl.when(k == 0)
    def _():
        acc_ref[...] = jnp.zeros_like(acc_ref)

    acc_ref[...] += jnp.dot(flat_ref[...], w1_ref[...],
                            preferred_element_type=jnp.float32)

    # Finalize every step (only the last step's write survives; output block
    # index is constant so writeback happens once at the end of the grid).
    h = jnp.maximum(acc_ref[...] + b1_ref[...], 0.0)           # (B, 256) f32
    av = jnp.dot(h, w2_ref[...], preferred_element_type=jnp.float32) + b2_ref[...]
    A = av[:, :act]
    V = av[:, act:act + 1]
    q_ref[...] = (V + A - jnp.mean(A, axis=1, keepdims=True)).astype(q_ref.dtype)


# ------------------------------ conv wrapper -------------------------------- #

def _im2col_T(a, k=5):
    """a: (C, B, H, W) -> patches (k*k*C, B*OH*OW), row order (kh, kw, c)."""
    C, B, H, W = a.shape
    OH, OW = H - k + 1, W - k + 1
    slices = [a[:, :, dy:dy + OH, dx:dx + OW] for dy in range(k) for dx in range(k)]
    p = jnp.stack(slices, axis=0)                     # (k*k, C, B, OH, OW)
    return p.reshape(k * k * C, B * OH * OW), OH, OW


def convT_relu(a, w_t, b_col, k=5):
    """a: (C_in, B, H, W) -> relu(conv(a)) as (C_out, B, OH, OW), bf16 out."""
    C_in, B, H, W = a.shape
    C_out, K_pad = w_t.shape
    p, OH, OW = _im2col_T(a, k)
    K = p.shape[0]
    if K_pad > K:                                     # zero-pad contraction dim
        p = jnp.pad(p, ((0, K_pad - K), (0, 0)))
    p = p.astype(jnp.bfloat16)
    M = B * OH * OW
    out = pl.pallas_call(
        _convT_kernel,
        out_shape=jax.ShapeDtypeStruct((C_out, M), jnp.bfloat16),
        grid=(1,),
        in_specs=[
            pl.BlockSpec((C_out, K_pad), lambda i: (0, 0)),
            pl.BlockSpec((K_pad, M), lambda i: (0, 0)),
            pl.BlockSpec((C_out, 1), lambda i: (0, 0)),
        ],
        out_specs=pl.BlockSpec((C_out, M), lambda i: (0, 0)),
    )(w_t, p, b_col)
    return out.reshape(C_out, B, OH, OW)


# ------------------------------ tail wrapper -------------------------------- #

def _pick_tk(K, max_tile=2048):
    best = min(K, 128)
    t = 128
    while t <= min(K, max_tile):
        if K % t == 0:
            best = t
        t += 128
    return best


def dueling_tail(flat, w1, b1, w2, b2):
    B, K = flat.shape
    H2 = w1.shape[1]                     # 256 = 128 (A head) + 128 (V head)
    act = w2.shape[1] - 1
    tk = _pick_tk(K)                     # 1792 for K=8960 (5 reduction steps)
    nk = K // tk
    return pl.pallas_call(
        functools.partial(_tail_kernel, act=act),
        out_shape=jax.ShapeDtypeStruct((B, act), jnp.float32),
        grid_spec=pltpu.PrefetchScalarGridSpec(
            num_scalar_prefetch=0,
            grid=(nk,),
            in_specs=[
                pl.BlockSpec((B, tk), lambda k: (0, k)),
                pl.BlockSpec((tk, H2), lambda k: (k, 0)),
                pl.BlockSpec((1, H2), lambda k: (0, 0)),
                pl.BlockSpec((H2, act + 1), lambda k: (0, 0)),
                pl.BlockSpec((1, act + 1), lambda k: (0, 0)),
            ],
            out_specs=pl.BlockSpec((B, act), lambda k: (0, 0)),
            scratch_shapes=[pltpu.VMEM((B, H2), jnp.float32)],
        ),
        compiler_params=pltpu.CompilerParams(
            dimension_semantics=("arbitrary",)),
    )(flat.astype(jnp.bfloat16), w1, b1, w2, b2)


# ------------------------------ full forward -------------------------------- #

@jax.jit
def vanet_forward(params, x):
    # x: (B, C, H, W) NCHW (PyTorch convention).
    a = jnp.transpose(x, (1, 0, 2, 3))                # (C, B, H, W) once, tiny
    a = convT_relu(a, params["c1_w"], params["c1_b"])
    a = convT_relu(a, params["c2_w"], params["c2_b"])
    a = convT_relu(a, params["c3_w"], params["c3_b"])
    C, B, OH, OW = a.shape
    # PyTorch x.view(B, -1) flattens (C, H, W); a is (C, B, H, W) so one small
    # transpose (71 KB) restores exactly that ordering.
    flat = jnp.transpose(a, (1, 0, 2, 3)).reshape(B, C * OH * OW)
    return dueling_tail(flat, params["head1_w"], params["head1_b"],
                        params["head2_w"], params["head2_b"])


# -------------------------- parameter preparation --------------------------- #

def init_torch_params(key, state_dim, action_dim):
    """Parameters in PyTorch layout (Conv2d OIHW, Linear (out, in))."""
    ks = jax.random.split(key, 14)

    def w(k, shape, scale):
        return jax.random.normal(k, shape, jnp.float32) * scale

    return {
        "conv1_w": w(ks[0], (8, state_dim, 5, 5), 0.05), "conv1_b": w(ks[1], (8,), 0.05),
        "conv2_w": w(ks[2], (16, 8, 5, 5), 0.05),        "conv2_b": w(ks[3], (16,), 0.05),
        "conv3_w": w(ks[4], (32, 16, 5, 5), 0.05),       "conv3_b": w(ks[5], (32,), 0.05),
        "fc1A_w": w(ks[6], (128, 10 * 28 * 32), 0.02),   "fc1A_b": w(ks[7], (128,), 0.02),
        "fc2A_w": w(ks[8], (action_dim, 128), 0.05),     "fc2A_b": w(ks[9], (action_dim,), 0.05),
        "fc1V_w": w(ks[10], (128, 10 * 28 * 32), 0.02),  "fc1V_b": w(ks[11], (128,), 0.02),
        "fc2V_w": w(ks[12], (1, 128), 0.05),             "fc2V_b": w(ks[13], (1,), 0.05),
    }


def _prep_conv(w, b):
    """OIHW (O,I,5,5) -> bf16 (O, Kpad) with columns in (kh, kw, i) order."""
    O, I, KH, KW = w.shape
    K = KH * KW * I
    K_pad = -(-K // 128) * 128
    wt = jnp.transpose(w, (0, 2, 3, 1)).reshape(O, K)
    wt = jnp.pad(wt, ((0, 0), (0, K_pad - K)))
    return wt.astype(jnp.bfloat16), b.reshape(O, 1).astype(jnp.float32)


def prepare_params(tp, action_dim):
    """One-time conversion from PyTorch layout to kernel layout."""
    p = {}
    p["c1_w"], p["c1_b"] = _prep_conv(tp["conv1_w"], tp["conv1_b"])
    p["c2_w"], p["c2_b"] = _prep_conv(tp["conv2_w"], tp["conv2_b"])
    p["c3_w"], p["c3_b"] = _prep_conv(tp["conv3_w"], tp["conv3_b"])
    # Fused FC1: [fc1A | fc1V] -> (8960, 256), rows in PyTorch (C,H,W) order.
    w1 = jnp.concatenate([tp["fc1A_w"], tp["fc1V_w"]], axis=0).T
    p["head1_w"] = w1.astype(jnp.bfloat16)
    p["head1_b"] = jnp.concatenate([tp["fc1A_b"], tp["fc1V_b"]]
                                   ).reshape(1, -1).astype(jnp.float32)
    # Block-diagonal FC2: [[w2A^T, 0], [0, w2V^T]] -> (256, act+1) so a single
    # matmul produces [A | V].
    act = action_dim
    w2 = jnp.zeros((256, act + 1), jnp.float32)
    w2 = w2.at[:128, :act].set(tp["fc2A_w"].T)
    w2 = w2.at[128:, act:].set(tp["fc2V_w"].T)
    p["head2_w"] = w2
    p["head2_b"] = jnp.concatenate([tp["fc2A_b"], tp["fc2V_b"]]
                                   ).reshape(1, -1).astype(jnp.float32)
    return p


# ------------------------------ fp32 reference ------------------------------ #

def vanet_reference(tp, x):
    def conv(x, w, b):
        y = jax.lax.conv_general_dilated(
            x, w, (1, 1), "VALID", dimension_numbers=("NCHW", "OIHW", "NCHW"))
        return jnp.maximum(y + b.reshape(1, -1, 1, 1), 0.0)

    x = conv(x, tp["conv1_w"], tp["conv1_b"])
    x = conv(x, tp["conv2_w"], tp["conv2_b"])
    x = conv(x, tp["conv3_w"], tp["conv3_b"])
    flat = x.reshape(x.shape[0], -1)
    hA = jnp.maximum(flat @ tp["fc1A_w"].T + tp["fc1A_b"], 0.0)
    A = hA @ tp["fc2A_w"].T + tp["fc2A_b"]
    hV = jnp.maximum(flat @ tp["fc1V_w"].T + tp["fc1V_b"], 0.0)
    V = hV @ tp["fc2V_w"].T + tp["fc2V_b"]
    return V + A - jnp.mean(A, axis=1, keepdims=True)


if __name__ == "__main__":
    # fc1* expects 10*28*32 features => input spatial 22x40 (3x valid 5x5 convs).
    state_dim, action_dim = 4, 6
    B, H, W = 2, 22, 40

    key = jax.random.PRNGKey(0)
    kp, kx = jax.random.split(key)
    tp = init_torch_params(kp, state_dim, action_dim)
    params = prepare_params(tp, action_dim)
    x = jax.random.normal(kx, (B, state_dim, H, W), jnp.float32)

    q = jax.block_until_ready(vanet_forward(params, x))
    q_ref = jax.block_until_ready(vanet_reference(tp, x))

    assert q.shape == (B, action_dim)
    # bf16 matmul operands with f32 accumulation -> loosened tolerance vs fp32 ref.
    np.testing.assert_allclose(np.asarray(q), np.asarray(q_ref), rtol=2e-2, atol=2e-2)
    print("KERNEL_OK")
</pallas_src>

<mosaic_0001>
module attributes {stable_mosaic.version = 11 : i64} {
  func.func @_convT_kernel(%arg0: i32, %arg1: memref<8x128xbf16, #tpu.memory_space<vmem>>, %arg2: memref<128x1296xbf16, #tpu.memory_space<vmem>>, %arg3: memref<8x1xf32, #tpu.memory_space<vmem>>, %arg4: memref<8x1296xbf16, #tpu.memory_space<vmem>>) attributes {dimension_semantics = [#tpu.dimension_semantics<arbitrary>], iteration_bounds = array<i64: 1>, scalar_prefetch = 0 : i64, scratch_operands = 0 : i64, tpu.core_type = #tpu.core_type<tc>, window_params = [{pipeline_mode = #tpu.pipeline_mode<synchronous>, transform_indices = @transform_0, window_bounds = array<i64: 8, 128>}, {pipeline_mode = #tpu.pipeline_mode<synchronous>, transform_indices = @transform_1, window_bounds = array<i64: 128, 1296>}, {pipeline_mode = #tpu.pipeline_mode<synchronous>, transform_indices = @transform_2, window_bounds = array<i64: 8, 1>}, {pipeline_mode = #tpu.pipeline_mode<synchronous>, transform_indices = @transform_3, window_bounds = array<i64: 8, 1296>}]} {
    %c0 = arith.constant 0 : index
    %c0_0 = arith.constant 0 : index
    %0 = vector.load %arg1[%c0, %c0_0] : memref<8x128xbf16, #tpu.memory_space<vmem>>, vector<8x128xbf16>
    %c0_1 = arith.constant 0 : index
    %c0_2 = arith.constant 0 : index
    %1 = vector.load %arg2[%c0_1, %c0_2] : memref<128x1296xbf16, #tpu.memory_space<vmem>>, vector<128x1296xbf16>
    %cst = arith.constant dense<0.000000e+00> : vector<8x1296xf32>
    %2 = tpu.matmul %0, %1, %cst {dimension_numbers = #tpu.dot_dimension_numbers<[1], [0], [0], [1], [0, 0, 1, 1], [], []>} : vector<8x128xbf16>, vector<128x1296xbf16>, vector<8x1296xf32> -> vector<8x1296xf32>
    %c0_3 = arith.constant 0 : index
    %c0_4 = arith.constant 0 : index
    %3 = vector.load %arg3[%c0_3, %c0_4] : memref<8x1xf32, #tpu.memory_space<vmem>>, vector<8x1xf32>
    %4 = vector.broadcast %3 : vector<8x1xf32> to vector<8x1296xf32>
    %5 = arith.addf %2, %4 : vector<8x1296xf32>
    %cst_5 = arith.constant 0.000000e+00 : f32
    %6 = vector.broadcast %cst_5 : f32 to vector<8x1296xf32>
    %7 = arith.maximumf %5, %6 : vector<8x1296xf32>
    %8 = arith.truncf %7 : vector<8x1296xf32> to vector<8x1296xbf16>
    %c0_6 = arith.constant 0 : index
    %c0_7 = arith.constant 0 : index
    %9 = vector.load %arg4[%c0_6, %c0_7] : memref<8x1296xbf16, #tpu.memory_space<vmem>>, vector<8x1296xbf16>
    tpu.vector_store %arg4[%c0_6, %c0_7], %8 {strides = array<i32>} : memref<8x1296xbf16, #tpu.memory_space<vmem>>, vector<8x1296xbf16>,
    return
  }
  func.func @transform_0(%arg0: i32) -> (i32, i32) {
    %c0_i32 = arith.constant 0 : i32
    %c0_i32_0 = arith.constant 0 : i32
    %c0_i32_1 = arith.constant 0 : i32
    return %c0_i32, %c0_i32_0 : i32, i32
  }
  func.func @transform_1(%arg0: i32) -> (i32, i32) {
    %c0_i32 = arith.constant 0 : i32
    %c0_i32_0 = arith.constant 0 : i32
    %c0_i32_1 = arith.constant 0 : i32
    return %c0_i32, %c0_i32_0 : i32, i32
  }
  func.func @transform_2(%arg0: i32) -> (i32, i32) {
    %c0_i32 = arith.constant 0 : i32
    %c0_i32_0 = arith.constant 0 : i32
    %c0_i32_1 = arith.constant 0 : i32
    return %c0_i32, %c0_i32_0 : i32, i32
  }
  func.func @transform_3(%arg0: i32) -> (i32, i32) {
    %c0_i32 = arith.constant 0 : i32
    %c0_i32_0 = arith.constant 0 : i32
    %c0_i32_1 = arith.constant 0 : i32
    return %c0_i32, %c0_i32_0 : i32, i32
  }
}

module attributes {stable_mosaic.version = 11 : i64} {
  func.func @_convT_kernel(%arg0: i32, %arg1: memref<16x256xbf16, #tpu.memory_space<vmem>>, %arg2: memref<256x896xbf16, #tpu.memory_space<vmem>>, %arg3: memref<16x1xf32, #tpu.memory_space<vmem>>, %arg4: memref<16x896xbf16, #tpu.memory_space<vmem>>) attributes {dimension_semantics = [#tpu.dimension_semantics<arbitrary>], iteration_bounds = array<i64: 1>, scalar_prefetch = 0 : i64, scratch_operands = 0 : i64, tpu.core_type = #tpu.core_type<tc>, window_params = [{pipeline_mode = #tpu.pipeline_mode<synchronous>, transform_indices = @transform_0, window_bounds = array<i64: 16, 256>}, {pipeline_mode = #tpu.pipeline_mode<synchronous>, transform_indices = @transform_1, window_bounds = array<i64: 256, 896>}, {pipeline_mode = #tpu.pipeline_mode<synchronous>, transform_indices = @transform_2, window_bounds = array<i64: 16, 1>}, {pipeline_mode = #tpu.pipeline_mode<synchronous>, transform_indices = @transform_3, window_bounds = array<i64: 16, 896>}]} {
    %c0 = arith.constant 0 : index
    %c0_0 = arith.constant 0 : index
    %0 = vector.load %arg1[%c0, %c0_0] : memref<16x256xbf16, #tpu.memory_space<vmem>>, vector<16x256xbf16>
    %c0_1 = arith.constant 0 : index
    %c0_2 = arith.constant 0 : index
    %1 = vector.load %arg2[%c0_1, %c0_2] : memref<256x896xbf16, #tpu.memory_space<vmem>>, vector<256x896xbf16>
    %cst = arith.constant dense<0.000000e+00> : vector<16x896xf32>
    %2 = tpu.matmul %0, %1, %cst {dimension_numbers = #tpu.dot_dimension_numbers<[1], [0], [0], [1], [0, 0, 1, 1], [], []>} : vector<16x256xbf16>, vector<256x896xbf16>, vector<16x896xf32> -> vector<16x896xf32>
    %c0_3 = arith.constant 0 : index
    %c0_4 = arith.constant 0 : index
    %3 = vector.load %arg3[%c0_3, %c0_4] : memref<16x1xf32, #tpu.memory_space<vmem>>, vector<16x1xf32>
    %4 = vector.broadcast %3 : vector<16x1xf32> to vector<16x896xf32>
    %5 = arith.addf %2, %4 : vector<16x896xf32>
    %cst_5 = arith.constant 0.000000e+00 : f32
    %6 = vector.broadcast %cst_5 : f32 to vector<16x896xf32>
    %7 = arith.maximumf %5, %6 : vector<16x896xf32>
    %8 = arith.truncf %7 : vector<16x896xf32> to vector<16x896xbf16>
    %c0_6 = arith.constant 0 : index
    %c0_7 = arith.constant 0 : index
    %9 = vector.load %arg4[%c0_6, %c0_7] : memref<16x896xbf16, #tpu.memory_space<vmem>>, vector<16x896xbf16>
    tpu.vector_store %arg4[%c0_6, %c0_7], %8 {strides = array<i32>} : memref<16x896xbf16, #tpu.memory_space<vmem>>, vector<16x896xbf16>,
    return
  }
  func.func @transform_0(%arg0: i32) -> (i32, i32) {
    %c0_i32 = arith.constant 0 : i32
    %c0_i32_0 = arith.constant 0 : i32
    %c0_i32_1 = arith.constant 0 : i32
    return %c0_i32, %c0_i32_0 : i32, i32
  }
  func.func @transform_1(%arg0: i32) -> (i32, i32) {
    %c0_i32 = arith.constant 0 : i32
    %c0_i32_0 = arith.constant 0 : i32
    %c0_i32_1 = arith.constant 0 : i32
    return %c0_i32, %c0_i32_0 : i32, i32
  }
  func.func @transform_2(%arg0: i32) -> (i32, i32) {
    %c0_i32 = arith.constant 0 : i32
    %c0_i32_0 = arith.constant 0 : i32
    %c0_i32_1 = arith.constant 0 : i32
    return %c0_i32, %c0_i32_0 : i32, i32
  }
  func.func @transform_3(%arg0: i32) -> (i32, i32) {
    %c0_i32 = arith.constant 0 : i32
    %c0_i32_0 = arith.constant 0 : i32
    %c0_i32_1 = arith.constant 0 : i32
    return %c0_i32, %c0_i32_0 : i32, i32
  }
}

module attributes {stable_mosaic.version = 11 : i64} {
  func.func @_convT_kernel(%arg0: i32, %arg1: memref<32x512xbf16, #tpu.memory_space<vmem>>, %arg2: memref<512x560xbf16, #tpu.memory_space<vmem>>, %arg3: memref<32x1xf32, #tpu.memory_space<vmem>>, %arg4: memref<32x560xbf16, #tpu.memory_space<vmem>>) attributes {dimension_semantics = [#tpu.dimension_semantics<arbitrary>], iteration_bounds = array<i64: 1>, scalar_prefetch = 0 : i64, scratch_operands = 0 : i64, tpu.core_type = #tpu.core_type<tc>, window_params = [{pipeline_mode = #tpu.pipeline_mode<synchronous>, transform_indices = @transform_0, window_bounds = array<i64: 32, 512>}, {pipeline_mode = #tpu.pipeline_mode<synchronous>, transform_indices = @transform_1, window_bounds = array<i64: 512, 560>}, {pipeline_mode = #tpu.pipeline_mode<synchronous>, transform_indices = @transform_2, window_bounds = array<i64: 32, 1>}, {pipeline_mode = #tpu.pipeline_mode<synchronous>, transform_indices = @transform_3, window_bounds = array<i64: 32, 560>}]} {
    %c0 = arith.constant 0 : index
    %c0_0 = arith.constant 0 : index
    %0 = vector.load %arg1[%c0, %c0_0] : memref<32x512xbf16, #tpu.memory_space<vmem>>, vector<32x512xbf16>
    %c0_1 = arith.constant 0 : index
    %c0_2 = arith.constant 0 : index
    %1 = vector.load %arg2[%c0_1, %c0_2] : memref<512x560xbf16, #tpu.memory_space<vmem>>, vector<512x560xbf16>
    %cst = arith.constant dense<0.000000e+00> : vector<32x560xf32>
    %2 = tpu.matmul %0, %1, %cst {dimension_numbers = #tpu.dot_dimension_numbers<[1], [0], [0], [1], [0, 0, 1, 1], [], []>} : vector<32x512xbf16>, vector<512x560xbf16>, vector<32x560xf32> -> vector<32x560xf32>
    %c0_3 = arith.constant 0 : index
    %c0_4 = arith.constant 0 : index
    %3 = vector.load %arg3[%c0_3, %c0_4] : memref<32x1xf32, #tpu.memory_space<vmem>>, vector<32x1xf32>
    %4 = vector.broadcast %3 : vector<32x1xf32> to vector<32x560xf32>
    %5 = arith.addf %2, %4 : vector<32x560xf32>
    %cst_5 = arith.constant 0.000000e+00 : f32
    %6 = vector.broadcast %cst_5 : f32 to vector<32x560xf32>
    %7 = arith.maximumf %5, %6 : vector<32x560xf32>
    %8 = arith.truncf %7 : vector<32x560xf32> to vector<32x560xbf16>
    %c0_6 = arith.constant 0 : index
    %c0_7 = arith.constant 0 : index
    %9 = vector.load %arg4[%c0_6, %c0_7] : memref<32x560xbf16, #tpu.memory_space<vmem>>, vector<32x560xbf16>
    tpu.vector_store %arg4[%c0_6, %c0_7], %8 {strides = array<i32>} : memref<32x560xbf16, #tpu.memory_space<vmem>>, vector<32x560xbf16>,
    return
  }
  func.func @transform_0(%arg0: i32) -> (i32, i32) {
    %c0_i32 = arith.constant 0 : i32
    %c0_i32_0 = arith.constant 0 : i32
    %c0_i32_1 = arith.constant 0 : i32
    return %c0_i32, %c0_i32_0 : i32, i32
  }
  func.func @transform_1(%arg0: i32) -> (i32, i32) {
    %c0_i32 = arith.constant 0 : i32
    %c0_i32_0 = arith.constant 0 : i32
    %c0_i32_1 = arith.constant 0 : i32
    return %c0_i32, %c0_i32_0 : i32, i32
  }
  func.func @transform_2(%arg0: i32) -> (i32, i32) {
    %c0_i32 = arith.constant 0 : i32
    %c0_i32_0 = arith.constant 0 : i32
    %c0_i32_1 = arith.constant 0 : i32
    return %c0_i32, %c0_i32_0 : i32, i32
  }
  func.func @transform_3(%arg0: i32) -> (i32, i32) {
    %c0_i32 = arith.constant 0 : i32
    %c0_i32_0 = arith.constant 0 : i32
    %c0_i32_1 = arith.constant 0 : i32
    return %c0_i32, %c0_i32_0 : i32, i32
  }
}

module attributes {stable_mosaic.version = 11 : i64} {
  func.func @_tail_kernel(%arg0: i32, %arg1: memref<2x1792xbf16, #tpu.memory_space<vmem>>, %arg2: memref<1792x256xbf16, #tpu.memory_space<vmem>>, %arg3: memref<1x256xf32, #tpu.memory_space<vmem>>, %arg4: memref<256x7xf32, #tpu.memory_space<vmem>>, %arg5: memref<1x7xf32, #tpu.memory_space<vmem>>, %arg6: memref<2x6xf32, #tpu.memory_space<vmem>>, %arg7: memref<2x256xf32, #tpu.memory_space<vmem>>) attributes {dimension_semantics = [#tpu.dimension_semantics<arbitrary>], iteration_bounds = array<i64: 5>, scalar_prefetch = 0 : i64, scratch_operands = 1 : i64, tpu.core_type = #tpu.core_type<tc>, window_params = [{transform_indices = @transform_0, window_bounds = array<i64: 2, 1792>}, {transform_indices = @transform_1, window_bounds = array<i64: 1792, 256>}, {pipeline_mode = #tpu.pipeline_mode<synchronous>, transform_indices = @transform_2, window_bounds = array<i64: 1, 256>}, {pipeline_mode = #tpu.pipeline_mode<synchronous>, transform_indices = @transform_3, window_bounds = array<i64: 256, 7>}, {pipeline_mode = #tpu.pipeline_mode<synchronous>, transform_indices = @transform_4, window_bounds = array<i64: 1, 7>}, {pipeline_mode = #tpu.pipeline_mode<synchronous>, transform_indices = @transform_5, window_bounds = array<i64: 2, 6>}]} {
    %c0_i32 = arith.constant 0 : i32
    %0 = arith.cmpi eq, %arg0, %c0_i32 : i32
    %1 = arith.extui %0 : i1 to i32
    %c0_i32_0 = arith.constant 0 : i32
    %2 = arith.cmpi ne, %1, %c0_i32_0 : i32
    scf.if %2 {
      %cst_22 = arith.constant 0.000000e+00 : f32
      %31 = vector.broadcast %cst_22 : f32 to vector<2x256xf32>
      %c0_23 = arith.constant 0 : index
      %c0_24 = arith.constant 0 : index
      %32 = vector.load %arg7[%c0_23, %c0_24] : memref<2x256xf32, #tpu.memory_space<vmem>>, vector<2x256xf32>
      tpu.vector_store %arg7[%c0_23, %c0_24], %31 {strides = array<i32>} : memref<2x256xf32, #tpu.memory_space<vmem>>, vector<2x256xf32>,
    } else {
    }
    %c0 = arith.constant 0 : index
    %c0_1 = arith.constant 0 : index
    %3 = vector.load %arg7[%c0, %c0_1] : memref<2x256xf32, #tpu.memory_space<vmem>>, vector<2x256xf32>
    %c0_2 = arith.constant 0 : index
    %c0_3 = arith.constant 0 : index
    %4 = vector.load %arg1[%c0_2, %c0_3] : memref<2x1792xbf16, #tpu.memory_space<vmem>>, vector<2x1792xbf16>
    %c0_4 = arith.constant 0 : index
    %c0_5 = arith.constant 0 : index
    %5 = vector.load %arg2[%c0_4, %c0_5] : memref<1792x256xbf16, #tpu.memory_space<vmem>>, vector<1792x256xbf16>
    %cst = arith.constant dense<0.000000e+00> : vector<2x256xf32>
    %6 = tpu.matmul %4, %5, %cst {dimension_numbers = #tpu.dot_dimension_numbers<[1], [0], [0], [1], [0, 0, 1, 1], [], []>} : vector<2x1792xbf16>, vector<1792x256xbf16>, vector<2x256xf32> -> vector<2x256xf32>
    %7 = arith.addf %3, %6 : vector<2x256xf32>
    %c0_6 = arith.constant 0 : index
    %c0_7 = arith.constant 0 : index
    %8 = vector.load %arg7[%c0_6, %c0_7] : memref<2x256xf32, #tpu.memory_space<vmem>>, vector<2x256xf32>
    tpu.vector_store %arg7[%c0_6, %c0_7], %7 {strides = array<i32>} : memref<2x256xf32, #tpu.memory_space<vmem>>, vector<2x256xf32>,
    %c0_8 = arith.constant 0 : index
    %c0_9 = arith.constant 0 : index
    %9 = vector.load %arg7[%c0_8, %c0_9] : memref<2x256xf32, #tpu.memory_space<vmem>>, vector<2x256xf32>
    %c0_10 = arith.constant 0 : index
    %c0_11 = arith.constant 0 : index
    %10 = vector.load %arg3[%c0_10, %c0_11] : memref<1x256xf32, #tpu.memory_space<vmem>>, vector<1x256xf32>
    %11 = vector.broadcast %10 : vector<1x256xf32> to vector<2x256xf32>
    %12 = arith.addf %9, %11 : vector<2x256xf32>
    %cst_12 = arith.constant 0.000000e+00 : f32
    %13 = vector.broadcast %cst_12 : f32 to vector<2x256xf32>
    %14 = arith.maximumf %12, %13 : vector<2x256xf32>
    %c0_13 = arith.constant 0 : index
    %c0_14 = arith.constant 0 : index
    %15 = vector.load %arg4[%c0_13, %c0_14] : memref<256x7xf32, #tpu.memory_space<vmem>>, vector<256x7xf32>
    %cst_15 = arith.constant dense<0.000000e+00> : vector<2x7xf32>
    %16 = tpu.matmul %14, %15, %cst_15 {dimension_numbers = #tpu.dot_dimension_numbers<[1], [0], [0], [1], [0, 0, 1, 1], [], []>} : vector<2x256xf32>, vector<256x7xf32>, vector<2x7xf32> -> vector<2x7xf32>
    %c0_16 = arith.constant 0 : index
    %c0_17 = arith.constant 0 : index
    %17 = vector.load %arg5[%c0_16, %c0_17] : memref<1x7xf32, #tpu.memory_space<vmem>>, vector<1x7xf32>
    %18 = vector.broadcast %17 : vector<1x7xf32> to vector<2x7xf32>
    %19 = arith.addf %16, %18 : vector<2x7xf32>
    %20 = vector.extract_strided_slice %19 {offsets = [0, 0], sizes = [2, 6], strides = [1, 1]} : vector<2x7xf32> to vector<2x6xf32>
    %21 = vector.extract_strided_slice %19 {offsets = [0, 6], sizes = [2, 1], strides = [1, 1]} : vector<2x7xf32> to vector<2x1xf32>
    %22 = vector.broadcast %21 : vector<2x1xf32> to vector<2x6xf32>
    %23 = arith.addf %22, %20 : vector<2x6xf32>
    %cst_18 = arith.constant dense<0.000000e+00> : vector<2xf32>
    %24 = vector.multi_reduction <add>, %20, %cst_18 [1] : vector<2x6xf32> to vector<2xf32>
    %25 = vector.shape_cast %24 : vector<2xf32> to vector<2x1xf32>
    %cst_19 = arith.constant 6.000000e+00 : f32
    %26 = vector.broadcast %cst_19 : f32 to vector<2x1xf32>
    %27 = arith.divf %25, %26 : vector<2x1xf32>
    %28 = vector.broadcast %27 : vector<2x1xf32> to vector<2x6xf32>
    %29 = arith.subf %23, %28 : vector<2x6xf32>
    %c0_20 = arith.constant 0 : index
    %c0_21 = arith.constant 0 : index
    %30 = vector.load %arg6[%c0_20, %c0_21] : memref<2x6xf32, #tpu.memory_space<vmem>>, vector<2x6xf32>
    tpu.vector_store %arg6[%c0_20, %c0_21], %29 {strides = array<i32>} : memref<2x6xf32, #tpu.memory_space<vmem>>, vector<2x6xf32>,
    return
  }
  func.func @transform_0(%arg0: i32) -> (i32, i32) {
    %c0_i32 = arith.constant 0 : i32
    %c0_i32_0 = arith.constant 0 : i32
    return %c0_i32, %arg0 : i32, i32
  }
  func.func @transform_1(%arg0: i32) -> (i32, i32) {
    %c0_i32 = arith.constant 0 : i32
    %c0_i32_0 = arith.constant 0 : i32
    return %arg0, %c0_i32 : i32, i32
  }
  func.func @transform_2(%arg0: i32) -> (i32, i32) {
    %c0_i32 = arith.constant 0 : i32
    %c0_i32_0 = arith.constant 0 : i32
    %c0_i32_1 = arith.constant 0 : i32
    return %c0_i32, %c0_i32_0 : i32, i32
  }
  func.func @transform_3(%arg0: i32) -> (i32, i32) {
    %c0_i32 = arith.constant 0 : i32
    %c0_i32_0 = arith.constant 0 : i32
    %c0_i32_1 = arith.constant 0 : i32
    return %c0_i32, %c0_i32_0 : i32, i32
  }
  func.func @transform_4(%arg0: i32) -> (i32, i32) {
    %c0_i32 = arith.constant 0 : i32
    %c0_i32_0 = arith.constant 0 : i32
    %c0_i32_1 = arith.constant 0 : i32
    return %c0_i32, %c0_i32_0 : i32, i32
  }
  func.func @transform_5(%arg0: i32) -> (i32, i32) {
    %c0_i32 = arith.constant 0 : i32
    %c0_i32_0 = arith.constant 0 : i32
    %c0_i32_1 = arith.constant 0 : i32
    return %c0_i32, %c0_i32_0 : i32, i32
  }
}

</mosaic_0001>

<llo_original>
// kernel: vanet_forward.4
$region0: #{vanet_forward.4}
  #allocation0 [shape = 'u32[]', space=smem, size = 0x4, offset = 0x4, fixed_abs, tag = 'smem constant byte address 0x4 - core index']
  #allocation1 [shape = 'u32[72,128]{1,0:T(1,128)}', space=vmem, size = 0x9000, scoped, tag = 'internal scratch']
  %s0 = inlined_call_operand.vmem [shape: bf16[8,128], index: 0, kind: input, shape index: {}]
  %s1 = inlined_call_operand.vmem [shape: bf16[128,1296], index: 1, kind: input, shape index: {}]
  %s2 = inlined_call_operand.vmem [shape: f32[8,1], index: 2, kind: input, shape index: {}]
  %s3 = inlined_call_operand.vmem [shape: bf16[8,1296], index: 3, kind: output, shape index: {}]
  %s4 = sld [smem:[#allocation0]]
  $region22: #{vanet_forward.4} parent=0
    _
  %s6 = ssub.s32 1, %s4
  %s7 = scalar_select 0, %s6, %s4
  // Predicated region
  $region2: #{vanet_forward.4} parent=0 // pred_check
    _
  $region3: #{vanet_forward.4} parent=0 // pred_check_branch
    %9 = sbr.rel (0) target = $region5
  $region4: #{vanet_forward.4} parent=0 // pred_region
    _
  $region5: #{vanet_forward.4} parent=0 // pred_fallthru
    _
  // Predicated region
  $region6: #{vanet_forward.4} parent=0 // pred_check
    _
  $region7: #{vanet_forward.4} parent=0 // pred_check_branch
    %11 = sbr.rel (0) target = $region9
  $region8: #{vanet_forward.4} parent=0 // pred_region
    _
  $region9: #{vanet_forward.4} parent=0 // pred_fallthru
    _
  // Predicated region
  $region10: #{vanet_forward.4} parent=0 // pred_check
    _
  $region11: #{vanet_forward.4} parent=0 // pred_check_branch
    %13 = sbr.rel (0) target = $region13
  $region12: #{vanet_forward.4} parent=0 // pred_region
    _
  $region13: #{vanet_forward.4} parent=0 // pred_fallthru
    _
  %v14 = vld [vmem:[%s0] sm:$0xf]
  %v15 = vld [vmem:[%s1] sm:$0xff]
  %v16 = vld [vmem:[%s1 + $0x8] sm:$0xff]
  %v17 = vld [vmem:[%s1 + $0x10] sm:$0xff]
  %v18 = vld [vmem:[%s1 + $0x18] sm:$0xff]
  %v19 = vld [vmem:[%s1 + $0x20] sm:$0xff]
  %v20 = vld [vmem:[%s1 + $0x28] sm:$0xf]
  %v21 = vld [vmem:[%s1 + $0x2c] sm:$0xff]
  %v22 = vld [vmem:[%s1 + $0x34] sm:$0xff]
  %v23 = vld [vmem:[%s1 + $0x3c] sm:$0xff]
  %v24 = vld [vmem:[%s1 + $0x44] sm:$0xff]
  %v25 = vld [vmem:[%s1 + $0x4c] sm:$0xff]
  %v26 = vld [vmem:[%s1 + $0x54] sm:$0xf]
  %v27 = vld [vmem:[%s1 + $0x58] sm:$0xff]
  %v28 = vld [vmem:[%s1 + $0x60] sm:$0xff]
  %v29 = vld [vmem:[%s1 + $0x68] sm:$0xff]
  %v30 = vld [vmem:[%s1 + $0x70] sm:$0xff]
  %v31 = vld [vmem:[%s1 + $0x78] sm:$0xff]
  %v32 = vld [vmem:[%s1 + $0x80] sm:$0xf]
  %v33 = vld [vmem:[%s1 + $0x84] sm:$0xff]
  %v34 = vld [vmem:[%s1 + $0x8c] sm:$0xff]
  %v35 = vld [vmem:[%s1 + $0x94] sm:$0xff]
  %v36 = vld [vmem:[%s1 + $0x9c] sm:$0xff]
  %v37 = vld [vmem:[%s1 + $0xa4] sm:$0xff]
  %v38 = vld [vmem:[%s1 + $0xac] sm:$0xf]
  %v39 = vld [vmem:[%s1 + $0xb0] sm:$0xff]
  %v40 = vld [vmem:[%s1 + $0xb8] sm:$0xff]
  %v41 = vld [vmem:[%s1 + $0xc0] sm:$0xff]
  %v42 = vld [vmem:[%s1 + $0xc8] sm:$0xff]
  %v43 = vld [vmem:[%s1 + $0xd0] sm:$0xff]
  %v44 = vld [vmem:[%s1 + $0xd8] sm:$0xf]
  %v45 = vld [vmem:[%s1 + $0xdc] sm:$0xff]
  %v46 = vld [vmem:[%s1 + $0xe4] sm:$0xff]
  %v47 = vld [vmem:[%s1 + $0xec] sm:$0xff]
  %v48 = vld [vmem:[%s1 + $0xf4] sm:$0xff]
  %v49 = vld [vmem:[%s1 + $0xfc] sm:$0xff]
  %v50 = vld [vmem:[%s1 + $0x104] sm:$0xf]
  %v51 = vld [vmem:[%s1 + $0x108] sm:$0xff]
  %v52 = vld [vmem:[%s1 + $0x110] sm:$0xff]
  %v53 = vld [vmem:[%s1 + $0x118] sm:$0xff]
  %v54 = vld [vmem:[%s1 + $0x120] sm:$0xff]
  %v55 = vld [vmem:[%s1 + $0x128] sm:$0xff]
  %v56 = vld [vmem:[%s1 + $0x130] sm:$0xf]
  %v57 = vld [vmem:[%s1 + $0x134] sm:$0xff]
  %v58 = vld [vmem:[%s1 + $0x13c] sm:$0xff]
  %v59 = vld [vmem:[%s1 + $0x144] sm:$0xff]
  %v60 = vld [vmem:[%s1 + $0x14c] sm:$0xff]
  %v61 = vld [vmem:[%s1 + $0x154] sm:$0xff]
  %v62 = vld [vmem:[%s1 + $0x15c] sm:$0xf]
  %v63 = vld [vmem:[%s1 + $0x160] sm:$0xff]
  %v64 = vld [vmem:[%s1 + $0x168] sm:$0xff]
  %v65 = vld [vmem:[%s1 + $0x170] sm:$0xff]
  %v66 = vld [vmem:[%s1 + $0x178] sm:$0xff]
  %v67 = vld [vmem:[%s1 + $0x180] sm:$0xff]
  %v68 = vld [vmem:[%s1 + $0x188] sm:$0xf]
  %v69 = vld [vmem:[%s1 + $0x18c] sm:$0xff]
  %v70 = vld [vmem:[%s1 + $0x194] sm:$0xff]
  %v71 = vld [vmem:[%s1 + $0x19c] sm:$0xff]
  %v72 = vld [vmem:[%s1 + $0x1a4] sm:$0xff]
  %v73 = vld [vmem:[%s1 + $0x1ac] sm:$0xff]
  %v74 = vld [vmem:[%s1 + $0x1b4] sm:$0xf]
  %v75 = vld [vmem:[%s1 + $0x1b8] sm:$0xff]
  %v76 = vld [vmem:[%s1 + $0x1c0] sm:$0xff]
  %v77 = vld [vmem:[%s1 + $0x1c8] sm:$0xff]
  %v78 = vld [vmem:[%s1 + $0x1d0] sm:$0xff]
  %v79 = vld [vmem:[%s1 + $0x1d8] sm:$0xff]
  %v80 = vld [vmem:[%s1 + $0x1e0] sm:$0xf]
  %v81 = vld [vmem:[%s1 + $0x1e4] sm:$0xff]
  %v82 = vld [vmem:[%s1 + $0x1ec] sm:$0xff]
  %v83 = vld [vmem:[%s1 + $0x1f4] sm:$0xff]
  %v84 = vld [vmem:[%s1 + $0x1fc] sm:$0xff]
  %v85 = vld [vmem:[%s1 + $0x204] sm:$0xff]
  %v86 = vld [vmem:[%s1 + $0x20c] sm:$0xf]
  %v87 = vld [vmem:[%s1 + $0x210] sm:$0xff]
  %v88 = vld [vmem:[%s1 + $0x218] sm:$0xff]
  %v89 = vld [vmem:[%s1 + $0x220] sm:$0xff]
  %v90 = vld [vmem:[%s1 + $0x228] sm:$0xff]
  %v91 = vld [vmem:[%s1 + $0x230] sm:$0xff]
  %v92 = vld [vmem:[%s1 + $0x238] sm:$0xf]
  %v93 = vld [vmem:[%s1 + $0x23c] sm:$0xff]
  %v94 = vld [vmem:[%s1 + $0x244] sm:$0xff]
  %v95 = vld [vmem:[%s1 + $0x24c] sm:$0xff]
  %v96 = vld [vmem:[%s1 + $0x254] sm:$0xff]
  %v97 = vld [vmem:[%s1 + $0x25c] sm:$0xff]
  %v98 = vld [vmem:[%s1 + $0x264] sm:$0xf]
  %v99 = vld [vmem:[%s1 + $0x268] sm:$0xff]
  %v100 = vld [vmem:[%s1 + $0x270] sm:$0xff]
  %v101 = vld [vmem:[%s1 + $0x278] sm:$0xff]
  %v102 = vld [vmem:[%s1 + $0x280] sm:$0xff]
  %v103 = vld [vmem:[%s1 + $0x288] sm:$0xff]
  %v104 = vld [vmem:[%s1 + $0x290] sm:$0xf]
  %v105 = vld [vmem:[%s1 + $0x294] sm:$0xff]
  %v106 = vld [vmem:[%s1 + $0x29c] sm:$0xff]
  %v107 = vld [vmem:[%s1 + $0x2a4] sm:$0xff]
  %v108 = vld [vmem:[%s1 + $0x2ac] sm:$0xff]
  %v109 = vld [vmem:[%s1 + $0x2b4] sm:$0xff]
  %v110 = vld [vmem:[%s1 + $0x2bc] sm:$0xf]
  %v111 = vld [vmem:[%s2] sm:$0xff]
  %113 = vset.pattern.permute.xlu0 0
  %114 = vperm.xlu0 %113, %v111
  %v115 = vpop.permute.xlu0 %114
  %v213 = vunpack.c.l.b16 %v15
  %v214 = vunpack.c.h.b16 %v15
  %v215 = vunpack.c.l.b16 %v16
  %v216 = vunpack.c.h.b16 %v16
  %v217 = vunpack.c.l.b16 %v17
  %v218 = vunpack.c.h.b16 %v17
  %v219 = vunpack.c.l.b16 %v18
  %v220 = vunpack.c.h.b16 %v18
  %v221 = vunpack.c.l.b16 %v19
  %v222 = vunpack.c.h.b16 %v19
  %v223 = vunpack.c.l.b16 %v20
  %v224 = vunpack.c.l.b16 %v21
  %v225 = vunpack.c.h.b16 %v21
  %v226 = vunpack.c.l.b16 %v22
  %v227 = vunpack.c.h.b16 %v22
  %v228 = vunpack.c.l.b16 %v23
  %v229 = vunpack.c.h.b16 %v23
  %v230 = vunpack.c.l.b16 %v24
  %v231 = vunpack.c.h.b16 %v24
  %v232 = vunpack.c.l.b16 %v25
  %v233 = vunpack.c.h.b16 %v25
  %v234 = vunpack.c.l.b16 %v26
  %v235 = vunpack.c.l.b16 %v27
  %v236 = vunpack.c.h.b16 %v27
  %v237 = vunpack.c.l.b16 %v28
  %v238 = vunpack.c.h.b16 %v28
  %v239 = vunpack.c.l.b16 %v29
  %v240 = vunpack.c.h.b16 %v29
  %v241 = vunpack.c.l.b16 %v30
  %v242 = vunpack.c.h.b16 %v30
  %v243 = vunpack.c.l.b16 %v31
  %v244 = vunpack.c.h.b16 %v31
  %v245 = vunpack.c.l.b16 %v32
  %v246 = vunpack.c.l.b16 %v33
  %v247 = vunpack.c.h.b16 %v33
  %v248 = vunpack.c.l.b16 %v34
  %v249 = vunpack.c.h.b16 %v34
  %v250 = vunpack.c.l.b16 %v35
  %v251 = vunpack.c.h.b16 %v35
  %v252 = vunpack.c.l.b16 %v36
  %v253 = vunpack.c.h.b16 %v36
  %v254 = vunpack.c.l.b16 %v37
  %v255 = vunpack.c.h.b16 %v37
  %v256 = vunpack.c.l.b16 %v38
  %v257 = vunpack.c.l.b16 %v39
  %v258 = vunpack.c.h.b16 %v39
  %v259 = vunpack.c.l.b16 %v40
  %v260 = vunpack.c.h.b16 %v40
  %v261 = vunpack.c.l.b16 %v41
  %v262 = vunpack.c.h.b16 %v41
  %v263 = vunpack.c.l.b16 %v42
  %v264 = vunpack.c.h.b16 %v42
  %v265 = vunpack.c.l.b16 %v43
  %v266 = vunpack.c.h.b16 %v43
  %v267 = vunpack.c.l.b16 %v44
  %v268 = vunpack.c.l.b16 %v45
  %v269 = vunpack.c.h.b16 %v45
  %v270 = vunpack.c.l.b16 %v46
  %v271 = vunpack.c.h.b16 %v46
  %v272 = vunpack.c.l.b16 %v47
  %v273 = vunpack.c.h.b16 %v47
  %v274 = vunpack.c.l.b16 %v48
  %v275 = vunpack.c.h.b16 %v48
  %v276 = vunpack.c.l.b16 %v49
  %v277 = vunpack.c.h.b16 %v49
  %v278 = vunpack.c.l.b16 %v50
  %v279 = vunpack.c.l.b16 %v51
  %v280 = vunpack.c.h.b16 %v51
  %v281 = vunpack.c.l.b16 %v52
  %v282 = vunpack.c.h.b16 %v52
  %v283 = vunpack.c.l.b16 %v53
  %v284 = vunpack.c.h.b16 %v53
  %v285 = vunpack.c.l.b16 %v54
  %v286 = vunpack.c.h.b16 %v54
  %v287 = vunpack.c.l.b16 %v55
  %v288 = vunpack.c.h.b16 %v55
  %v289 = vunpack.c.l.b16 %v56
  %v290 = vunpack.c.l.b16 %v57
  %v291 = vunpack.c.h.b16 %v57
  %v292 = vunpack.c.l.b16 %v58
  %v293 = vunpack.c.h.b16 %v58
  %v294 = vunpack.c.l.b16 %v59
  %v295 = vunpack.c.h.b16 %v59
  %v296 = vunpack.c.l.b16 %v60
  %v297 = vunpack.c.h.b16 %v60
  %v298 = vunpack.c.l.b16 %v61
  %v299 = vunpack.c.h.b16 %v61
  %v300 = vunpack.c.l.b16 %v62
  %v301 = vunpack.c.l.b16 %v63
  %v302 = vunpack.c.h.b16 %v63
  %v303 = vunpack.c.l.b16 %v64
  %v304 = vunpack.c.h.b16 %v64
  %v305 = vunpack.c.l.b16 %v65
  %v306 = vunpack.c.h.b16 %v65
  %v307 = vunpack.c.l.b16 %v66
  %v308 = vunpack.c.h.b16 %v66
  %v309 = vunpack.c.l.b16 %v67
  %v310 = vunpack.c.h.b16 %v67
  %v311 = vunpack.c.l.b16 %v68
  %v312 = vunpack.c.l.b16 %v69
  %v313 = vunpack.c.h.b16 %v69
  %v314 = vunpack.c.l.b16 %v70
  %v315 = vunpack.c.h.b16 %v70
  %v316 = vunpack.c.l.b16 %v71
  %v317 = vunpack.c.h.b16 %v71
  %v318 = vunpack.c.l.b16 %v72
  %v319 = vunpack.c.h.b16 %v72
  %v320 = vunpack.c.l.b16 %v73
  %v321 = vunpack.c.h.b16 %v73
  %v322 = vunpack.c.l.b16 %v74
  %v323 = vunpack.c.l.b16 %v75
  %v324 = vunpack.c.h.b16 %v75
  %v325 = vunpack.c.l.b16 %v76
  %v326 = vunpack.c.h.b16 %v76
  %v327 = vunpack.c.l.b16 %v77
  %v328 = vunpack.c.h.b16 %v77
  %v329 = vunpack.c.l.b16 %v78
  %v330 = vunpack.c.h.b16 %v78
  %v331 = vunpack.c.l.b16 %v79
  %v332 = vunpack.c.h.b16 %v79
  %v333 = vunpack.c.l.b16 %v80
  %v334 = vunpack.c.l.b16 %v81
  %v335 = vunpack.c.h.b16 %v81
  %v336 = vunpack.c.l.b16 %v82
  %v337 = vunpack.c.h.b16 %v82
  %v338 = vunpack.c.l.b16 %v83
  %v339 = vunpack.c.h.b16 %v83
  %v340 = vunpack.c.l.b16 %v84
  %v341 = vunpack.c.h.b16 %v84
  %v342 = vunpack.c.l.b16 %v85
  %v343 = vunpack.c.h.b16 %v85
  %v344 = vunpack.c.l.b16 %v86
  %v345 = vunpack.c.l.b16 %v87
  %v346 = vunpack.c.h.b16 %v87
  %v347 = vunpack.c.l.b16 %v88
  %v348 = vunpack.c.h.b16 %v88
  %v349 = vunpack.c.l.b16 %v89
  %v350 = vunpack.c.h.b16 %v89
  %v351 = vunpack.c.l.b16 %v90
  %v352 = vunpack.c.h.b16 %v90
  %v353 = vunpack.c.l.b16 %v91
  %v354 = vunpack.c.h.b16 %v91
  %v355 = vunpack.c.l.b16 %v92
  %v356 = vunpack.c.l.b16 %v93
  %v357 = vunpack.c.h.b16 %v93
  %v358 = vunpack.c.l.b16 %v94
  %v359 = vunpack.c.h.b16 %v94
  %v360 = vunpack.c.l.b16 %v95
  %v361 = vunpack.c.h.b16 %v95
  %v362 = vunpack.c.l.b16 %v96
  %v363 = vunpack.c.h.b16 %v96
  %v364 = vunpack.c.l.b16 %v97
  %v365 = vunpack.c.h.b16 %v97
  %v366 = vunpack.c.l.b16 %v98
  %v367 = vunpack.c.l.b16 %v99
  %v368 = vunpack.c.h.b16 %v99
  %v369 = vunpack.c.l.b16 %v100
  %v370 = vunpack.c.h.b16 %v100
  %v371 = vunpack.c.l.b16 %v101
  %v372 = vunpack.c.h.b16 %v101
  %v373 = vunpack.c.l.b16 %v102
  %v374 = vunpack.c.h.b16 %v102
  %v375 = vunpack.c.l.b16 %v103
  %v376 = vunpack.c.h.b16 %v103
  %v377 = vunpack.c.l.b16 %v104
  %v378 = vunpack.c.l.b16 %v105
  %v379 = vunpack.c.h.b16 %v105
  %v380 = vunpack.c.l.b16 %v106
  %v381 = vunpack.c.h.b16 %v106
  %v382 = vunpack.c.l.b16 %v107
  %v383 = vunpack.c.h.b16 %v107
  %v384 = vunpack.c.l.b16 %v108
  %v385 = vunpack.c.h.b16 %v108
  %v386 = vunpack.c.l.b16 %v109
  %v387 = vunpack.c.h.b16 %v109
  %v388 = vunpack.c.l.b16 %v110
  %v389 = vpack.c.b16 %v224, %v213
  %v390 = vpack.c.b16 %v225, %v214
  %v391 = vpack.c.b16 %v226, %v215
  %v392 = vpack.c.b16 %v227, %v216
  %v393 = vpack.c.b16 %v228, %v217
  %v394 = vpack.c.b16 %v229, %v218
  %v395 = vpack.c.b16 %v230, %v219
  %v396 = vpack.c.b16 %v231, %v220
  %v397 = vpack.c.b16 %v232, %v221
  %v398 = vpack.c.b16 %v233, %v222
  %v399 = vpack.c.b16 %v234, %v223
  %v400 = vpack.c.b16 %v246, %v235
  %v401 = vpack.c.b16 %v247, %v236
  %v402 = vpack.c.b16 %v248, %v237
  %v403 = vpack.c.b16 %v249, %v238
  %v404 = vpack.c.b16 %v250, %v239
  %v405 = vpack.c.b16 %v251, %v240
  %v406 = vpack.c.b16 %v252, %v241
  %v407 = vpack.c.b16 %v253, %v242
  %v408 = vpack.c.b16 %v254, %v243
  %v409 = vpack.c.b16 %v255, %v244
  %v410 = vpack.c.b16 %v256, %v245
  %v411 = vpack.c.b16 %v268, %v257
  %v412 = vpack.c.b16 %v269, %v258
  %v413 = vpack.c.b16 %v270, %v259
  %v414 = vpack.c.b16 %v271, %v260
  %v415 = vpack.c.b16 %v272, %v261
  %v416 = vpack.c.b16 %v273, %v262
  %v417 = vpack.c.b16 %v274, %v263
  %v418 = vpack.c.b16 %v275, %v264
  %v419 = vpack.c.b16 %v276, %v265
  %v420 = vpack.c.b16 %v277, %v266
  %v421 = vpack.c.b16 %v278, %v267
  %v422 = vpack.c.b16 %v290, %v279
  %v423 = vpack.c.b16 %v291, %v280
  %v424 = vpack.c.b16 %v292, %v281
  %v425 = vpack.c.b16 %v293, %v282
  %v426 = vpack.c.b16 %v294, %v283
  %v427 = vpack.c.b16 %v295, %v284
  %v428 = vpack.c.b16 %v296, %v285
  %v429 = vpack.c.b16 %v297, %v286
  %v430 = vpack.c.b16 %v298, %v287
  %v431 = vpack.c.b16 %v299, %v288
  %v432 = vpack.c.b16 %v300, %v289
  %v433 = vpack.c.b16 %v312, %v301
  %v434 = vpack.c.b16 %v313, %v302
  %v435 = vpack.c.b16 %v314, %v303
  %v436 = vpack.c.b16 %v315, %v304
  %v437 = vpack.c.b16 %v316, %v305
  %v438 = vpack.c.b16 %v317, %v306
  %v439 = vpack.c.b16 %v318, %v307
  %v440 = vpack.c.b16 %v319, %v308
  %v441 = vpack.c.b16 %v320, %v309
  %v442 = vpack.c.b16 %v321, %v310
  %v443 = vpack.c.b16 %v322, %v311
  %v444 = vpack.c.b16 %v334, %v323
  %v445 = vpack.c.b16 %v335, %v324
  %v446 = vpack.c.b16 %v336, %v325
  %v447 = vpack.c.b16 %v337, %v326
  %v448 = vpack.c.b16 %v338, %v327
  %v449 = vpack.c.b16 %v339, %v328
  %v450 = vpack.c.b16 %v340, %v329
  %v451 = vpack.c.b16 %v341, %v330
  %v452 = vpack.c.b16 %v342, %v331
  %v453 = vpack.c.b16 %v343, %v332
  %v454 = vpack.c.b16 %v344, %v333
  %v455 = vpack.c.b16 %v356, %v345
  %v456 = vpack.c.b16 %v357, %v346
  %v457 = vpack.c.b16 %v358, %v347
  %v458 = vpack.c.b16 %v359, %v348
  %v459 = vpack.c.b16 %v360, %v349
  %v460 = vpack.c.b16 %v361, %v350
  %v461 = vpack.c.b16 %v362, %v351
  %v462 = vpack.c.b16 %v363, %v352
  %v463 = vpack.c.b16 %v364, %v353
  %v464 = vpack.c.b16 %v365, %v354
  %v465 = vpack.c.b16 %v366, %v355
  %v466 = vpack.c.b16 %v378, %v367
  %v467 = vpack.c.b16 %v379, %v368
  %v468 = vpack.c.b16 %v380, %v369
  %v469 = vpack.c.b16 %v381, %v370
  %v470 = vpack.c.b16 %v382, %v371
  %v471 = vpack.c.b16 %v383, %v372
  %v472 = vpack.c.b16 %v384, %v373
  %v473 = vpack.c.b16 %v385, %v374
  %v474 = vpack.c.b16 %v386, %v375
  %v475 = vpack.c.b16 %v387, %v376
  %v476 = vpack.c.b16 %v388, %v377
  %565 = vmatpush.bf16.msra.mxu0 %v466
  %566 = vmatpush.bf16.msra.mxu0 %v455
  %567 = vmatpush.bf16.msra.mxu0 %v444
  %568 = vmatpush.bf16.msra.mxu0 %v433
  %569 = vmatpush.bf16.msra.mxu0 %v422
  %570 = vmatpush.bf16.msra.mxu0 %v411
  %571 = vmatpush.bf16.msra.mxu0 %v400
  %572 = vmatpush.bf16.msra.mxu0 %v389
  %573 = vmatmul.bf16.gmra.mxu0 %v14
  %v574 = vpop.f32.mrf.mxu0
  %v575 = vadd.f32 %v115, %v574
  %v576 = vpop.f32.mrf.mxu0
  %577 = vdwg.mxu0
  %578 = vmatpush.bf16.msra.mxu0 %v467
  %579 = vmatpush.bf16.msra.mxu0 %v456
  %580 = vmatpush.bf16.msra.mxu0 %v445
  %581 = vmatpush.bf16.msra.mxu0 %v434
  %582 = vmatpush.bf16.msra.mxu0 %v423
  %583 = vmatpush.bf16.msra.mxu0 %v412
  %584 = vmatpush.bf16.msra.mxu0 %v401
  %585 = vmatpush.bf16.msra.mxu0 %v390
  %586 = vmatmul.bf16.gmra.mxu0 %v14
  %v587 = vpop.f32.mrf.mxu0
  %v588 = vadd.f32 %v115, %v587
  %v589 = vpop.f32.mrf.mxu0
  %590 = vdwg.mxu0
  %591 = vmatpush.bf16.msra.mxu0 %v468
  %592 = vmatpush.bf16.msra.mxu0 %v457
  %593 = vmatpush.bf16.msra.mxu0 %v446
  %594 = vmatpush.bf16.msra.mxu0 %v435
  %595 = vmatpush.bf16.msra.mxu0 %v424
  %596 = vmatpush.bf16.msra.mxu0 %v413
  %597 = vmatpush.bf16.msra.mxu0 %v402
  %598 = vmatpush.bf16.msra.mxu0 %v391
  %599 = vmatmul.bf16.gmra.mxu0 %v14
  %v600 = vpop.f32.mrf.mxu0
  %v601 = vadd.f32 %v115, %v600
  %v602 = vpop.f32.mrf.mxu0
  %603 = vdwg.mxu0
  %604 = vmatpush.bf16.msra.mxu0 %v469
  %605 = vmatpush.bf16.msra.mxu0 %v458
  %606 = vmatpush.bf16.msra.mxu0 %v447
  %607 = vmatpush.bf16.msra.mxu0 %v436
  %608 = vmatpush.bf16.msra.mxu0 %v425
  %609 = vmatpush.bf16.msra.mxu0 %v414
  %610 = vmatpush.bf16.msra.mxu0 %v403
  %611 = vmatpush.bf16.msra.mxu0 %v392
  %612 = vmatmul.bf16.gmra.mxu0 %v14
  %v613 = vpop.f32.mrf.mxu0
  %v614 = vadd.f32 %v115, %v613
  %v615 = vpop.f32.mrf.mxu0
  %616 = vdwg.mxu0
  %617 = vmatpush.bf16.msra.mxu0 %v470
  %618 = vmatpush.bf16.msra.mxu0 %v459
  %619 = vmatpush.bf16.msra.mxu0 %v448
  %620 = vmatpush.bf16.msra.mxu0 %v437
  %621 = vmatpush.bf16.msra.mxu0 %v426
  %622 = vmatpush.bf16.msra.mxu0 %v415
  %623 = vmatpush.bf16.msra.mxu0 %v404
  %624 = vmatpush.bf16.msra.mxu0 %v393
  %625 = vmatmul.bf16.gmra.mxu0 %v14
  %v626 = vpop.f32.mrf.mxu0
  %v627 = vadd.f32 %v115, %v626
  %v628 = vpop.f32.mrf.mxu0
  %629 = vdwg.mxu0
  %630 = vmatpush.bf16.msra.mxu0 %v471
  %631 = vmatpush.bf16.msra.mxu0 %v460
  %632 = vmatpush.bf16.msra.mxu0 %v449
  %633 = vmatpush.bf16.msra.mxu0 %v438
  %634 = vmatpush.bf16.msra.mxu0 %v427
  %635 = vmatpush.bf16.msra.mxu0 %v416
  %636 = vmatpush.bf16.msra.mxu0 %v405
  %637 = vmatpush.bf16.msra.mxu0 %v394
  %638 = vmatmul.bf16.gmra.mxu0 %v14
  %v639 = vpop.f32.mrf.mxu0
  %v640 = vadd.f32 %v115, %v639
  %v641 = vpop.f32.mrf.mxu0
  %642 = vdwg.mxu0
  %643 = vmatpush.bf16.msra.mxu0 %v472
  %644 = vmatpush.bf16.msra.mxu0 %v461
  %645 = vmatpush.bf16.msra.mxu0 %v450
  %646 = vmatpush.bf16.msra.mxu0 %v439
  %647 = vmatpush.bf16.msra.mxu0 %v428
  %648 = vmatpush.bf16.msra.mxu0 %v417
  %649 = vmatpush.bf16.msra.mxu0 %v406
  %650 = vmatpush.bf16.msra.mxu0 %v395
  %651 = vmatmul.bf16.gmra.mxu0 %v14
  %v652 = vpop.f32.mrf.mxu0
  %v653 = vadd.f32 %v115, %v652
  %v654 = vpop.f32.mrf.mxu0
  %655 = vdwg.mxu0
  %656 = vmatpush.bf16.msra.mxu0 %v473
  %657 = vmatpush.bf16.msra.mxu0 %v462
  %658 = vmatpush.bf16.msra.mxu0 %v451
  %659 = vmatpush.bf16.msra.mxu0 %v440
  %660 = vmatpush.bf16.msra.mxu0 %v429
  %661 = vmatpush.bf16.msra.mxu0 %v418
  %662 = vmatpush.bf16.msra.mxu0 %v407
  %663 = vmatpush.bf16.msra.mxu0 %v396
  %664 = vmatmul.bf16.gmra.mxu0 %v14
  %v665 = vpop.f32.mrf.mxu0
  %v666 = vadd.f32 %v115, %v665
  %v667 = vpop.f32.mrf.mxu0
  %668 = vdwg.mxu0
  %669 = vmatpush.bf16.msra.mxu0 %v474
  %670 = vmatpush.bf16.msra.mxu0 %v463
  %671 = vmatpush.bf16.msra.mxu0 %v452
  %672 = vmatpush.bf16.msra.mxu0 %v441
  %673 = vmatpush.bf16.msra.mxu0 %v430
  %674 = vmatpush.bf16.msra.mxu0 %v419
  %675 = vmatpush.bf16.msra.mxu0 %v408
  %676 = vmatpush.bf16.msra.mxu0 %v397
  %677 = vmatmul.bf16.gmra.mxu0 %v14
  %v678 = vpop.f32.mrf.mxu0
  %v679 = vadd.f32 %v115, %v678
  %v680 = vpop.f32.mrf.mxu0
  %681 = vdwg.mxu0
  %682 = vmatpush.bf16.msra.mxu0 %v475
  %683 = vmatpush.bf16.msra.mxu0 %v464
  %684 = vmatpush.bf16.msra.mxu0 %v453
  %685 = vmatpush.bf16.msra.mxu0 %v442
  %686 = vmatpush.bf16.msra.mxu0 %v431
  %687 = vmatpush.bf16.msra.mxu0 %v420
  %688 = vmatpush.bf16.msra.mxu0 %v409
  %689 = vmatpush.bf16.msra.mxu0 %v398
  %690 = vmatmul.bf16.gmra.mxu0 %v14
  %v691 = vpop.f32.mrf.mxu0
  %v692 = vadd.f32 %v115, %v691
  %v693 = vpop.f32.mrf.mxu0
  %694 = vdwg.mxu0
  %695 = vmatpush.bf16.msra.mxu0 %v476
  %696 = vmatpush.bf16.msra.mxu0 %v465
  %697 = vmatpush.bf16.msra.mxu0 %v454
  %698 = vmatpush.bf16.msra.mxu0 %v443
  %699 = vmatpush.bf16.msra.mxu0 %v432
  %700 = vmatpush.bf16.msra.mxu0 %v421
  %701 = vmatpush.bf16.msra.mxu0 %v410
  %702 = vmatpush.bf16.msra.mxu0 %v399
  %703 = vmatmul.bf16.gmra.mxu0 %v14
  %v704 = vpop.f32.mrf.mxu0
  %v705 = vadd.f32 %v115, %v704
  %v706 = vpop.f32.mrf.mxu0
  %707 = vdwg.mxu0
  %v708 = vmax.f32 %v575, 0.0
  %v709 = vmax.f32 %v588, 0.0
  %v710 = vmax.f32 %v601, 0.0
  %v711 = vmax.f32 %v614, 0.0
  %v712 = vmax.f32 %v627, 0.0
  %v713 = vmax.f32 %v640, 0.0
  %v714 = vmax.f32 %v653, 0.0
  %v715 = vmax.f32 %v666, 0.0
  %v716 = vmax.f32 %v679, 0.0
  %v717 = vmax.f32 %v692, 0.0
  %v718 = vmax.f32 %v705, 0.0
  %v719 = vpack.c.bf16 %v709, %v708
  %v720 = vpack.c.bf16 %v711, %v710
  %v721 = vpack.c.bf16 %v713, %v712
  %v722 = vpack.c.bf16 %v715, %v714
  %v723 = vpack.c.bf16 %v717, %v716
  %v724 = vpack.c.bf16 %v718, %v718
  %725 = vst [vmem:[%s3] sm:$0xff] %v719
  %726 = vst [vmem:[%s3 + $0x8] sm:$0xff] %v720
  %727 = vst [vmem:[%s3 + $0x10] sm:$0xff] %v721
  %728 = vst [vmem:[%s3 + $0x18] sm:$0xff] %v722
  %729 = vst [vmem:[%s3 + $0x20] sm:$0xff] %v723
  %vm730 = vcmask 125952
  %731 = vst.msk [vmem:[%s3 + $0x28] sm:$0xf] %vm730, %v724
  // Predicated region
  $region14: #{vanet_forward.4} parent=0 // pred_check
    _
  $region15: #{vanet_forward.4} parent=0 // pred_check_branch
    %733 = sbr.rel (0) target = $region17
  $region16: #{vanet_forward.4} parent=0 // pred_region
    _
  $region17: #{vanet_forward.4} parent=0 // pred_fallthru
    _
  // Predicated region
  $region18: #{vanet_forward.4} parent=0 // pred_check
    _
  $region19: #{vanet_forward.4} parent=0 // pred_check_branch
    %735 = sbr.rel (0) target = $region21
  $region20: #{vanet_forward.4} parent=0 // pred_region
    _
  $region21: #{vanet_forward.4} parent=0 // pred_fallthru
    _

// kernel: vanet_forward.5
$region0: #{vanet_forward.5}
  #allocation0 [shape = 'u32[]', space=smem, size = 0x4, offset = 0x4, fixed_abs, tag = 'smem constant byte address 0x4 - core index']
  #allocation1 [shape = 'u32[72,128]{1,0:T(1,128)}', space=vmem, size = 0x9000, scoped, tag = 'internal scratch']
  %s0 = inlined_call_operand.vmem [shape: bf16[16,256], index: 0, kind: input, shape index: {}]
  %s1 = inlined_call_operand.vmem [shape: bf16[256,896], index: 1, kind: input, shape index: {}]
  %s2 = inlined_call_operand.vmem [shape: f32[16,1], index: 2, kind: input, shape index: {}]
  %s3 = inlined_call_operand.vmem [shape: bf16[16,896], index: 3, kind: output, shape index: {}]
  %s4 = sld [smem:[#allocation0]]
  $region22: #{vanet_forward.5} parent=0
    _
  %s6 = ssub.s32 1, %s4
  %s7 = scalar_select 0, %s6, %s4
  // Predicated region
  $region2: #{vanet_forward.5} parent=0 // pred_check
    _
  $region3: #{vanet_forward.5} parent=0 // pred_check_branch
    %9 = sbr.rel (0) target = $region5
  $region4: #{vanet_forward.5} parent=0 // pred_region
    _
  $region5: #{vanet_forward.5} parent=0 // pred_fallthru
    _
  // Predicated region
  $region6: #{vanet_forward.5} parent=0 // pred_check
    _
  $region7: #{vanet_forward.5} parent=0 // pred_check_branch
    %11 = sbr.rel (0) target = $region9
  $region8: #{vanet_forward.5} parent=0 // pred_region
    _
  $region9: #{vanet_forward.5} parent=0 // pred_fallthru
    _
  // Predicated region
  $region10: #{vanet_forward.5} parent=0 // pred_check
    _
  $region11: #{vanet_forward.5} parent=0 // pred_check_branch
    %13 = sbr.rel (0) target = $region13
  $region12: #{vanet_forward.5} parent=0 // pred_region
    _
  $region13: #{vanet_forward.5} parent=0 // pred_fallthru
    _
  %v14 = vld [vmem:[%s0] sm:$0xff]
  %v15 = vld [vmem:[%s0 + $0x8] sm:$0xff]
  %v16 = vld [vmem:[%s1] sm:$0xff]
  %v17 = vld [vmem:[%s1 + $0x8] sm:$0xff]
  %v18 = vld [vmem:[%s1 + $0x10] sm:$0xff]
  %v19 = vld [vmem:[%s1 + $0x18] sm:$0xf]
  %v20 = vld [vmem:[%s1 + $0x1c] sm:$0xff]
  %v21 = vld [vmem:[%s1 + $0x24] sm:$0xff]
  %v22 = vld [vmem:[%s1 + $0x2c] sm:$0xff]
  %v23 = vld [vmem:[%s1 + $0x34] sm:$0xf]
  %v24 = vld [vmem:[%s1 + $0x38] sm:$0xff]
  %v25 = vld [vmem:[%s1 + $0x40] sm:$0xff]
  %v26 = vld [vmem:[%s1 + $0x48] sm:$0xff]
  %v27 = vld [vmem:[%s1 + $0x50] sm:$0xf]
  %v28 = vld [vmem:[%s1 + $0x54] sm:$0xff]
  %v29 = vld [vmem:[%s1 + $0x5c] sm:$0xff]
  %v30 = vld [vmem:[%s1 + $0x64] sm:$0xff]
  %v31 = vld [vmem:[%s1 + $0x6c] sm:$0xf]
  %v32 = vld [vmem:[%s1 + $0x70] sm:$0xff]
  %v33 = vld [vmem:[%s1 + $0x78] sm:$0xff]
  %v34 = vld [vmem:[%s1 + $0x80] sm:$0xff]
  %v35 = vld [vmem:[%s1 + $0x88] sm:$0xf]
  %v36 = vld [vmem:[%s1 + $0x8c] sm:$0xff]
  %v37 = vld [vmem:[%s1 + $0x94] sm:$0xff]
  %v38 = vld [vmem:[%s1 + $0x9c] sm:$0xff]
  %v39 = vld [vmem:[%s1 + $0xa4] sm:$0xf]
  %v40 = vld [vmem:[%s1 + $0xa8] sm:$0xff]
  %v41 = vld [vmem:[%s1 + $0xb0] sm:$0xff]
  %v42 = vld [vmem:[%s1 + $0xb8] sm:$0xff]
  %v43 = vld [vmem:[%s1 + $0xc0] sm:$0xf]
  %v44 = vld [vmem:[%s1 + $0xc4] sm:$0xff]
  %v45 = vld [vmem:[%s1 + $0xcc] sm:$0xff]
  %v46 = vld [vmem:[%s1 + $0xd4] sm:$0xff]
  %v47 = vld [vmem:[%s1 + $0xdc] sm:$0xf]
  %v48 = vld [vmem:[%s1 + $0xe0] sm:$0xff]
  %v49 = vld [vmem:[%s1 + $0xe8] sm:$0xff]
  %v50 = vld [vmem:[%s1 + $0xf0] sm:$0xff]
  %v51 = vld [vmem:[%s1 + $0xf8] sm:$0xf]
  %v52 = vld [vmem:[%s1 + $0xfc] sm:$0xff]
  %v53 = vld [vmem:[%s1 + $0x104] sm:$0xff]
  %v54 = vld [vmem:[%s1 + $0x10c] sm:$0xff]
  %v55 = vld [vmem:[%s1 + $0x114] sm:$0xf]
  %v56 = vld [vmem:[%s1 + $0x118] sm:$0xff]
  %v57 = vld [vmem:[%s1 + $0x120] sm:$0xff]
  %v58 = vld [vmem:[%s1 + $0x128] sm:$0xff]
  %v59 = vld [vmem:[%s1 + $0x130] sm:$0xf]
  %v60 = vld [vmem:[%s1 + $0x134] sm:$0xff]
  %v61 = vld [vmem:[%s1 + $0x13c] sm:$0xff]
  %v62 = vld [vmem:[%s1 + $0x144] sm:$0xff]
  %v63 = vld [vmem:[%s1 + $0x14c] sm:$0xf]
  %v64 = vld [vmem:[%s1 + $0x150] sm:$0xff]
  %v65 = vld [vmem:[%s1 + $0x158] sm:$0xff]
  %v66 = vld [vmem:[%s1 + $0x160] sm:$0xff]
  %v67 = vld [vmem:[%s1 + $0x168] sm:$0xf]
  %v68 = vld [vmem:[%s1 + $0x16c] sm:$0xff]
  %v69 = vld [vmem:[%s1 + $0x174] sm:$0xff]
  %v70 = vld [vmem:[%s1 + $0x17c] sm:$0xff]
  %v71 = vld [vmem:[%s1 + $0x184] sm:$0xf]
  %v72 = vld [vmem:[%s1 + $0x188] sm:$0xff]
  %v73 = vld [vmem:[%s1 + $0x190] sm:$0xff]
  %v74 = vld [vmem:[%s1 + $0x198] sm:$0xff]
  %v75 = vld [vmem:[%s1 + $0x1a0] sm:$0xf]
  %v76 = vld [vmem:[%s1 + $0x1a4] sm:$0xff]
  %v77 = vld [vmem:[%s1 + $0x1ac] sm:$0xff]
  %v78 = vld [vmem:[%s1 + $0x1b4] sm:$0xff]
  %v79 = vld [vmem:[%s1 + $0x1bc] sm:$0xf]
  %v80 = vld [vmem:[%s1 + $0x1c0] sm:$0xff]
  %v81 = vld [vmem:[%s1 + $0x1c8] sm:$0xff]
  %v82 = vld [vmem:[%s1 + $0x1d0] sm:$0xff]
  %v83 = vld [vmem:[%s1 + $0x1d8] sm:$0xf]
  %v84 = vld [vmem:[%s1 + $0x1dc] sm:$0xff]
  %v85 = vld [vmem:[%s1 + $0x1e4] sm:$0xff]
  %v86 = vld [vmem:[%s1 + $0x1ec] sm:$0xff]
  %v87 = vld [vmem:[%s1 + $0x1f4] sm:$0xf]
  %v88 = vld [vmem:[%s1 + $0x1f8] sm:$0xff]
  %v89 = vld [vmem:[%s1 + $0x200] sm:$0xff]
  %v90 = vld [vmem:[%s1 + $0x208] sm:$0xff]
  %v91 = vld [vmem:[%s1 + $0x210] sm:$0xf]
  %v92 = vld [vmem:[%s1 + $0x214] sm:$0xff]
  %v93 = vld [vmem:[%s1 + $0x21c] sm:$0xff]
  %v94 = vld [vmem:[%s1 + $0x224] sm:$0xff]
  %v95 = vld [vmem:[%s1 + $0x22c] sm:$0xf]
  %v96 = vld [vmem:[%s1 + $0x230] sm:$0xff]
  %v97 = vld [vmem:[%s1 + $0x238] sm:$0xff]
  %v98 = vld [vmem:[%s1 + $0x240] sm:$0xff]
  %v99 = vld [vmem:[%s1 + $0x248] sm:$0xf]
  %v100 = vld [vmem:[%s1 + $0x24c] sm:$0xff]
  %v101 = vld [vmem:[%s1 + $0x254] sm:$0xff]
  %v102 = vld [vmem:[%s1 + $0x25c] sm:$0xff]
  %v103 = vld [vmem:[%s1 + $0x264] sm:$0xf]
  %v104 = vld [vmem:[%s1 + $0x268] sm:$0xff]
  %v105 = vld [vmem:[%s1 + $0x270] sm:$0xff]
  %v106 = vld [vmem:[%s1 + $0x278] sm:$0xff]
  %v107 = vld [vmem:[%s1 + $0x280] sm:$0xf]
  %v108 = vld [vmem:[%s1 + $0x284] sm:$0xff]
  %v109 = vld [vmem:[%s1 + $0x28c] sm:$0xff]
  %v110 = vld [vmem:[%s1 + $0x294] sm:$0xff]
  %v111 = vld [vmem:[%s1 + $0x29c] sm:$0xf]
  %v112 = vld [vmem:[%s1 + $0x2a0] sm:$0xff]
  %v113 = vld [vmem:[%s1 + $0x2a8] sm:$0xff]
  %v114 = vld [vmem:[%s1 + $0x2b0] sm:$0xff]
  %v115 = vld [vmem:[%s1 + $0x2b8] sm:$0xf]
  %v116 = vld [vmem:[%s1 + $0x2bc] sm:$0xff]
  %v117 = vld [vmem:[%s1 + $0x2c4] sm:$0xff]
  %v118 = vld [vmem:[%s1 + $0x2cc] sm:$0xff]
  %v119 = vld [vmem:[%s1 + $0x2d4] sm:$0xf]
  %v120 = vld [vmem:[%s1 + $0x2d8] sm:$0xff]
  %v121 = vld [vmem:[%s1 + $0x2e0] sm:$0xff]
  %v122 = vld [vmem:[%s1 + $0x2e8] sm:$0xff]
  %v123 = vld [vmem:[%s1 + $0x2f0] sm:$0xf]
  %v124 = vld [vmem:[%s1 + $0x2f4] sm:$0xff]
  %v125 = vld [vmem:[%s1 + $0x2fc] sm:$0xff]
  %v126 = vld [vmem:[%s1 + $0x304] sm:$0xff]
  %v127 = vld [vmem:[%s1 + $0x30c] sm:$0xf]
  %v128 = vld [vmem:[%s1 + $0x310] sm:$0xff]
  %v129 = vld [vmem:[%s1 + $0x318] sm:$0xff]
  %v130 = vld [vmem:[%s1 + $0x320] sm:$0xff]
  %v131 = vld [vmem:[%s1 + $0x328] sm:$0xf]
  %v132 = vld [vmem:[%s1 + $0x32c] sm:$0xff]
  %v133 = vld [vmem:[%s1 + $0x334] sm:$0xff]
  %v134 = vld [vmem:[%s1 + $0x33c] sm:$0xff]
  %v135 = vld [vmem:[%s1 + $0x344] sm:$0xf]
  %v136 = vld [vmem:[%s1 + $0x348] sm:$0xff]
  %v137 = vld [vmem:[%s1 + $0x350] sm:$0xff]
  %v138 = vld [vmem:[%s1 + $0x358] sm:$0xff]
  %v139 = vld [vmem:[%s1 + $0x360] sm:$0xf]
  %v140 = vld [vmem:[%s1 + $0x364] sm:$0xff]
  %v141 = vld [vmem:[%s1 + $0x36c] sm:$0xff]
  %v142 = vld [vmem:[%s1 + $0x374] sm:$0xff]
  %v143 = vld [vmem:[%s1 + $0x37c] sm:$0xf]
  %v144 = vld [vmem:[%s2] sm:$0xff]
  %v145 = vld [vmem:[%s2 + $0x8] sm:$0xff]
  %147 = vset.pattern.permute.xlu0 0
  %148 = vperm.xlu0 %147, %v144
  %v149 = vpop.permute.xlu0 %148
  %152 = vset.pattern.permute.xlu0 0
  %153 = vperm.xlu0 %152, %v145
  %v154 = vpop.permute.xlu0 %153
  %v158 = vunpack.c.l.b16 %v14
  %v159 = vunpack.c.h.b16 %v14
  %v160 = vunpack.c.l.b16 %v15
  %v161 = vunpack.c.h.b16 %v15
  %v162 = vpack.c.b16 %v160, %v158
  %v163 = vpack.c.b16 %v161, %v159
  %v294 = vunpack.c.l.b16 %v16
  %v295 = vunpack.c.h.b16 %v16
  %v296 = vunpack.c.l.b16 %v17
  %v297 = vunpack.c.h.b16 %v17
  %v298 = vunpack.c.l.b16 %v18
  %v299 = vunpack.c.h.b16 %v18
  %v300 = vunpack.c.l.b16 %v19
  %v301 = vunpack.c.l.b16 %v20
  %v302 = vunpack.c.h.b16 %v20
  %v303 = vunpack.c.l.b16 %v21
  %v304 = vunpack.c.h.b16 %v21
  %v305 = vunpack.c.l.b16 %v22
  %v306 = vunpack.c.h.b16 %v22
  %v307 = vunpack.c.l.b16 %v23
  %v308 = vunpack.c.l.b16 %v24
  %v309 = vunpack.c.h.b16 %v24
  %v310 = vunpack.c.l.b16 %v25
  %v311 = vunpack.c.h.b16 %v25
  %v312 = vunpack.c.l.b16 %v26
  %v313 = vunpack.c.h.b16 %v26
  %v314 = vunpack.c.l.b16 %v27
  %v315 = vunpack.c.l.b16 %v28
  %v316 = vunpack.c.h.b16 %v28
  %v317 = vunpack.c.l.b16 %v29
  %v318 = vunpack.c.h.b16 %v29
  %v319 = vunpack.c.l.b16 %v30
  %v320 = vunpack.c.h.b16 %v30
  %v321 = vunpack.c.l.b16 %v31
  %v322 = vunpack.c.l.b16 %v32
  %v323 = vunpack.c.h.b16 %v32
  %v324 = vunpack.c.l.b16 %v33
  %v325 = vunpack.c.h.b16 %v33
  %v326 = vunpack.c.l.b16 %v34
  %v327 = vunpack.c.h.b16 %v34
  %v328 = vunpack.c.l.b16 %v35
  %v329 = vunpack.c.l.b16 %v36
  %v330 = vunpack.c.h.b16 %v36
  %v331 = vunpack.c.l.b16 %v37
  %v332 = vunpack.c.h.b16 %v37
  %v333 = vunpack.c.l.b16 %v38
  %v334 = vunpack.c.h.b16 %v38
  %v335 = vunpack.c.l.b16 %v39
  %v336 = vunpack.c.l.b16 %v40
  %v337 = vunpack.c.h.b16 %v40
  %v338 = vunpack.c.l.b16 %v41
  %v339 = vunpack.c.h.b16 %v41
  %v340 = vunpack.c.l.b16 %v42
  %v341 = vunpack.c.h.b16 %v42
  %v342 = vunpack.c.l.b16 %v43
  %v343 = vunpack.c.l.b16 %v44
  %v344 = vunpack.c.h.b16 %v44
  %v345 = vunpack.c.l.b16 %v45
  %v346 = vunpack.c.h.b16 %v45
  %v347 = vunpack.c.l.b16 %v46
  %v348 = vunpack.c.h.b16 %v46
  %v349 = vunpack.c.l.b16 %v47
  %v350 = vunpack.c.l.b16 %v48
  %v351 = vunpack.c.h.b16 %v48
  %v352 = vunpack.c.l.b16 %v49
  %v353 = vunpack.c.h.b16 %v49
  %v354 = vunpack.c.l.b16 %v50
  %v355 = vunpack.c.h.b16 %v50
  %v356 = vunpack.c.l.b16 %v51
  %v357 = vunpack.c.l.b16 %v52
  %v358 = vunpack.c.h.b16 %v52
  %v359 = vunpack.c.l.b16 %v53
  %v360 = vunpack.c.h.b16 %v53
  %v361 = vunpack.c.l.b16 %v54
  %v362 = vunpack.c.h.b16 %v54
  %v363 = vunpack.c.l.b16 %v55
  %v364 = vunpack.c.l.b16 %v56
  %v365 = vunpack.c.h.b16 %v56
  %v366 = vunpack.c.l.b16 %v57
  %v367 = vunpack.c.h.b16 %v57
  %v368 = vunpack.c.l.b16 %v58
  %v369 = vunpack.c.h.b16 %v58
  %v370 = vunpack.c.l.b16 %v59
  %v371 = vunpack.c.l.b16 %v60
  %v372 = vunpack.c.h.b16 %v60
  %v373 = vunpack.c.l.b16 %v61
  %v374 = vunpack.c.h.b16 %v61
  %v375 = vunpack.c.l.b16 %v62
  %v376 = vunpack.c.h.b16 %v62
  %v377 = vunpack.c.l.b16 %v63
  %v378 = vunpack.c.l.b16 %v64
  %v379 = vunpack.c.h.b16 %v64
  %v380 = vunpack.c.l.b16 %v65
  %v381 = vunpack.c.h.b16 %v65
  %v382 = vunpack.c.l.b16 %v66
  %v383 = vunpack.c.h.b16 %v66
  %v384 = vunpack.c.l.b16 %v67
  %v385 = vunpack.c.l.b16 %v68
  %v386 = vunpack.c.h.b16 %v68
  %v387 = vunpack.c.l.b16 %v69
  %v388 = vunpack.c.h.b16 %v69
  %v389 = vunpack.c.l.b16 %v70
  %v390 = vunpack.c.h.b16 %v70
  %v391 = vunpack.c.l.b16 %v71
  %v392 = vunpack.c.l.b16 %v72
  %v393 = vunpack.c.h.b16 %v72
  %v394 = vunpack.c.l.b16 %v73
  %v395 = vunpack.c.h.b16 %v73
  %v396 = vunpack.c.l.b16 %v74
  %v397 = vunpack.c.h.b16 %v74
  %v398 = vunpack.c.l.b16 %v75
  %v399 = vunpack.c.l.b16 %v76
  %v400 = vunpack.c.h.b16 %v76
  %v401 = vunpack.c.l.b16 %v77
  %v402 = vunpack.c.h.b16 %v77
  %v403 = vunpack.c.l.b16 %v78
  %v404 = vunpack.c.h.b16 %v78
  %v405 = vunpack.c.l.b16 %v79
  %v406 = vunpack.c.l.b16 %v80
  %v407 = vunpack.c.h.b16 %v80
  %v408 = vunpack.c.l.b16 %v81
  %v409 = vunpack.c.h.b16 %v81
  %v410 = vunpack.c.l.b16 %v82
  %v411 = vunpack.c.h.b16 %v82
  %v412 = vunpack.c.l.b16 %v83
  %v413 = vunpack.c.l.b16 %v84
  %v414 = vunpack.c.h.b16 %v84
  %v415 = vunpack.c.l.b16 %v85
  %v416 = vunpack.c.h.b16 %v85
  %v417 = vunpack.c.l.b16 %v86
  %v418 = vunpack.c.h.b16 %v86
  %v419 = vunpack.c.l.b16 %v87
  %v420 = vunpack.c.l.b16 %v88
  %v421 = vunpack.c.h.b16 %v88
  %v422 = vunpack.c.l.b16 %v89
  %v423 = vunpack.c.h.b16 %v89
  %v424 = vunpack.c.l.b16 %v90
  %v425 = vunpack.c.h.b16 %v90
  %v426 = vunpack.c.l.b16 %v91
  %v427 = vunpack.c.l.b16 %v92
  %v428 = vunpack.c.h.b16 %v92
  %v429 = vunpack.c.l.b16 %v93
  %v430 = vunpack.c.h.b16 %v93
  %v431 = vunpack.c.l.b16 %v94
  %v432 = vunpack.c.h.b16 %v94
  %v433 = vunpack.c.l.b16 %v95
  %v434 = vunpack.c.l.b16 %v96
  %v435 = vunpack.c.h.b16 %v96
  %v436 = vunpack.c.l.b16 %v97
  %v437 = vunpack.c.h.b16 %v97
  %v438 = vunpack.c.l.b16 %v98
  %v439 = vunpack.c.h.b16 %v98
  %v440 = vunpack.c.l.b16 %v99
  %v441 = vunpack.c.l.b16 %v100
  %v442 = vunpack.c.h.b16 %v100
  %v443 = vunpack.c.l.b16 %v101
  %v444 = vunpack.c.h.b16 %v101
  %v445 = vunpack.c.l.b16 %v102
  %v446 = vunpack.c.h.b16 %v102
  %v447 = vunpack.c.l.b16 %v103
  %v448 = vunpack.c.l.b16 %v104
  %v449 = vunpack.c.h.b16 %v104
  %v450 = vunpack.c.l.b16 %v105
  %v451 = vunpack.c.h.b16 %v105
  %v452 = vunpack.c.l.b16 %v106
  %v453 = vunpack.c.h.b16 %v106
  %v454 = vunpack.c.l.b16 %v107
  %v455 = vunpack.c.l.b16 %v108
  %v456 = vunpack.c.h.b16 %v108
  %v457 = vunpack.c.l.b16 %v109
  %v458 = vunpack.c.h.b16 %v109
  %v459 = vunpack.c.l.b16 %v110
  %v460 = vunpack.c.h.b16 %v110
  %v461 = vunpack.c.l.b16 %v111
  %v462 = vunpack.c.l.b16 %v112
  %v463 = vunpack.c.h.b16 %v112
  %v464 = vunpack.c.l.b16 %v113
  %v465 = vunpack.c.h.b16 %v113
  %v466 = vunpack.c.l.b16 %v114
  %v467 = vunpack.c.h.b16 %v114
  %v468 = vunpack.c.l.b16 %v115
  %v469 = vunpack.c.l.b16 %v116
  %v470 = vunpack.c.h.b16 %v116
  %v471 = vunpack.c.l.b16 %v117
  %v472 = vunpack.c.h.b16 %v117
  %v473 = vunpack.c.l.b16 %v118
  %v474 = vunpack.c.h.b16 %v118
  %v475 = vunpack.c.l.b16 %v119
  %v476 = vunpack.c.l.b16 %v120
  %v477 = vunpack.c.h.b16 %v120
  %v478 = vunpack.c.l.b16 %v121
  %v479 = vunpack.c.h.b16 %v121
  %v480 = vunpack.c.l.b16 %v122
  %v481 = vunpack.c.h.b16 %v122
  %v482 = vunpack.c.l.b16 %v123
  %v483 = vunpack.c.l.b16 %v124
  %v484 = vunpack.c.h.b16 %v124
  %v485 = vunpack.c.l.b16 %v125
  %v486 = vunpack.c.h.b16 %v125
  %v487 = vunpack.c.l.b16 %v126
  %v488 = vunpack.c.h.b16 %v126
  %v489 = vunpack.c.l.b16 %v127
  %v490 = vunpack.c.l.b16 %v128
  %v491 = vunpack.c.h.b16 %v128
  %v492 = vunpack.c.l.b16 %v129
  %v493 = vunpack.c.h.b16 %v129
  %v494 = vunpack.c.l.b16 %v130
  %v495 = vunpack.c.h.b16 %v130
  %v496 = vunpack.c.l.b16 %v131
  %v497 = vunpack.c.l.b16 %v132
  %v498 = vunpack.c.h.b16 %v132
  %v499 = vunpack.c.l.b16 %v133
  %v500 = vunpack.c.h.b16 %v133
  %v501 = vunpack.c.l.b16 %v134
  %v502 = vunpack.c.h.b16 %v134
  %v503 = vunpack.c.l.b16 %v135
  %v504 = vunpack.c.l.b16 %v136
  %v505 = vunpack.c.h.b16 %v136
  %v506 = vunpack.c.l.b16 %v137
  %v507 = vunpack.c.h.b16 %v137
  %v508 = vunpack.c.l.b16 %v138
  %v509 = vunpack.c.h.b16 %v138
  %v510 = vunpack.c.l.b16 %v139
  %v511 = vunpack.c.l.b16 %v140
  %v512 = vunpack.c.h.b16 %v140
  %v513 = vunpack.c.l.b16 %v141
  %v514 = vunpack.c.h.b16 %v141
  %v515 = vunpack.c.l.b16 %v142
  %v516 = vunpack.c.h.b16 %v142
  %v517 = vunpack.c.l.b16 %v143
  %v518 = vpack.c.b16 %v301, %v294
  %v519 = vpack.c.b16 %v302, %v295
  %v520 = vpack.c.b16 %v303, %v296
  %v521 = vpack.c.b16 %v304, %v297
  %v522 = vpack.c.b16 %v305, %v298
  %v523 = vpack.c.b16 %v306, %v299
  %v524 = vpack.c.b16 %v307, %v300
  %v525 = vpack.c.b16 %v315, %v308
  %v526 = vpack.c.b16 %v316, %v309
  %v527 = vpack.c.b16 %v317, %v310
  %v528 = vpack.c.b16 %v318, %v311
  %v529 = vpack.c.b16 %v319, %v312
  %v530 = vpack.c.b16 %v320, %v313
  %v531 = vpack.c.b16 %v321, %v314
  %v532 = vpack.c.b16 %v329, %v322
  %v533 = vpack.c.b16 %v330, %v323
  %v534 = vpack.c.b16 %v331, %v324
  %v535 = vpack.c.b16 %v332, %v325
  %v536 = vpack.c.b16 %v333, %v326
  %v537 = vpack.c.b16 %v334, %v327
  %v538 = vpack.c.b16 %v335, %v328
  %v539 = vpack.c.b16 %v343, %v336
  %v540 = vpack.c.b16 %v344, %v337
  %v541 = vpack.c.b16 %v345, %v338
  %v542 = vpack.c.b16 %v346, %v339
  %v543 = vpack.c.b16 %v347, %v340
  %v544 = vpack.c.b16 %v348, %v341
  %v545 = vpack.c.b16 %v349, %v342
  %v546 = vpack.c.b16 %v357, %v350
  %v547 = vpack.c.b16 %v358, %v351
  %v548 = vpack.c.b16 %v359, %v352
  %v549 = vpack.c.b16 %v360, %v353
  %v550 = vpack.c.b16 %v361, %v354
  %v551 = vpack.c.b16 %v362, %v355
  %v552 = vpack.c.b16 %v363, %v356
  %v553 = vpack.c.b16 %v371, %v364
  %v554 = vpack.c.b16 %v372, %v365
  %v555 = vpack.c.b16 %v373, %v366
  %v556 = vpack.c.b16 %v374, %v367
  %v557 = vpack.c.b16 %v375, %v368
  %v558 = vpack.c.b16 %v376, %v369
  %v559 = vpack.c.b16 %v377, %v370
  %v560 = vpack.c.b16 %v385, %v378
  %v561 = vpack.c.b16 %v386, %v379
  %v562 = vpack.c.b16 %v387, %v380
  %v563 = vpack.c.b16 %v388, %v381
  %v564 = vpack.c.b16 %v389, %v382
  %v565 = vpack.c.b16 %v390, %v383
  %v566 = vpack.c.b16 %v391, %v384
  %v567 = vpack.c.b16 %v399, %v392
  %v568 = vpack.c.b16 %v400, %v393
  %v569 = vpack.c.b16 %v401, %v394
  %v570 = vpack.c.b16 %v402, %v395
  %v571 = vpack.c.b16 %v403, %v396
  %v572 = vpack.c.b16 %v404, %v397
  %v573 = vpack.c.b16 %v405, %v398
  %v574 = vpack.c.b16 %v413, %v406
  %v575 = vpack.c.b16 %v414, %v407
  %v576 = vpack.c.b16 %v415, %v408
  %v577 = vpack.c.b16 %v416, %v409
  %v578 = vpack.c.b16 %v417, %v410
  %v579 = vpack.c.b16 %v418, %v411
  %v580 = vpack.c.b16 %v419, %v412
  %v581 = vpack.c.b16 %v427, %v420
  %v582 = vpack.c.b16 %v428, %v421
  %v583 = vpack.c.b16 %v429, %v422
  %v584 = vpack.c.b16 %v430, %v423
  %v585 = vpack.c.b16 %v431, %v424
  %v586 = vpack.c.b16 %v432, %v425
  %v587 = vpack.c.b16 %v433, %v426
  %v588 = vpack.c.b16 %v441, %v434
  %v589 = vpack.c.b16 %v442, %v435
  %v590 = vpack.c.b16 %v443, %v436
  %v591 = vpack.c.b16 %v444, %v437
  %v592 = vpack.c.b16 %v445, %v438
  %v593 = vpack.c.b16 %v446, %v439
  %v594 = vpack.c.b16 %v447, %v440
  %v595 = vpack.c.b16 %v455, %v448
  %v596 = vpack.c.b16 %v456, %v449
  %v597 = vpack.c.b16 %v457, %v450
  %v598 = vpack.c.b16 %v458, %v451
  %v599 = vpack.c.b16 %v459, %v452
  %v600 = vpack.c.b16 %v460, %v453
  %v601 = vpack.c.b16 %v461, %v454
  %v602 = vpack.c.b16 %v469, %v462
  %v603 = vpack.c.b16 %v470, %v463
  %v604 = vpack.c.b16 %v471, %v464
  %v605 = vpack.c.b16 %v472, %v465
  %v606 = vpack.c.b16 %v473, %v466
  %v607 = vpack.c.b16 %v474, %v467
  %v608 = vpack.c.b16 %v475, %v468
  %v609 = vpack.c.b16 %v483, %v476
  %v610 = vpack.c.b16 %v484, %v477
  %v611 = vpack.c.b16 %v485, %v478
  %v612 = vpack.c.b16 %v486, %v479
  %v613 = vpack.c.b16 %v487, %v480
  %v614 = vpack.c.b16 %v488, %v481
  %v615 = vpack.c.b16 %v489, %v482
  %v616 = vpack.c.b16 %v497, %v490
  %v617 = vpack.c.b16 %v498, %v491
  %v618 = vpack.c.b16 %v499, %v492
  %v619 = vpack.c.b16 %v500, %v493
  %v620 = vpack.c.b16 %v501, %v494
  %v621 = vpack.c.b16 %v502, %v495
  %v622 = vpack.c.b16 %v503, %v496
  %v623 = vpack.c.b16 %v511, %v504
  %v624 = vpack.c.b16 %v512, %v505
  %v625 = vpack.c.b16 %v513, %v506
  %v626 = vpack.c.b16 %v514, %v507
  %v627 = vpack.c.b16 %v515, %v508
  %v628 = vpack.c.b16 %v516, %v509
  %v629 = vpack.c.b16 %v517, %v510
  %742 = vmatpush.bf16.msra.mxu0 %v567
  %743 = vmatpush.bf16.msra.mxu0 %v560
  %744 = vmatpush.bf16.msra.mxu0 %v553
  %745 = vmatpush.bf16.msra.mxu0 %v546
  %746 = vmatpush.bf16.msra.mxu0 %v539
  %747 = vmatpush.bf16.msra.mxu0 %v532
  %748 = vmatpush.bf16.msra.mxu0 %v525
  %749 = vmatpush.bf16.msra.mxu0 %v518
  %750 = vmatmul.bf16.gmra.mxu0 %v162
  %v751 = vpop.f32.mrf.mxu0
  %v752 = vadd.f32 %v149, %v751
  %v753 = vpop.f32.mrf.mxu0
  %v754 = vadd.f32 %v154, %v753
  %755 = vdwg.mxu0
  %756 = vmatpush.bf16.msra.mxu0 %v623
  %757 = vmatpush.bf16.msra.mxu0 %v616
  %758 = vmatpush.bf16.msra.mxu0 %v609
  %759 = vmatpush.bf16.msra.mxu0 %v602
  %760 = vmatpush.bf16.msra.mxu0 %v595
  %761 = vmatpush.bf16.msra.mxu0 %v588
  %762 = vmatpush.bf16.msra.mxu0 %v581
  %763 = vmatpush.bf16.msra.mxu0 %v574
  %764 = vmatmul.bf16.gmra.mxu0 %v163
  %v765 = vpop.f32.mrf.mxu0
  %v766 = vadd.f32 %v752, %v765
  %v767 = vpop.f32.mrf.mxu0
  %v768 = vadd.f32 %v754, %v767
  %769 = vdwg.mxu0
  %770 = vmatpush.bf16.msra.mxu0 %v568
  %771 = vmatpush.bf16.msra.mxu0 %v561
  %772 = vmatpush.bf16.msra.mxu0 %v554
  %773 = vmatpush.bf16.msra.mxu0 %v547
  %774 = vmatpush.bf16.msra.mxu0 %v540
  %775 = vmatpush.bf16.msra.mxu0 %v533
  %776 = vmatpush.bf16.msra.mxu0 %v526
  %777 = vmatpush.bf16.msra.mxu0 %v519
  %778 = vmatmul.bf16.gmra.mxu0 %v162
  %v779 = vpop.f32.mrf.mxu0
  %v780 = vadd.f32 %v149, %v779
  %v781 = vpop.f32.mrf.mxu0
  %v782 = vadd.f32 %v154, %v781
  %783 = vdwg.mxu0
  %784 = vmatpush.bf16.msra.mxu0 %v624
  %785 = vmatpush.bf16.msra.mxu0 %v617
  %786 = vmatpush.bf16.msra.mxu0 %v610
  %787 = vmatpush.bf16.msra.mxu0 %v603
  %788 = vmatpush.bf16.msra.mxu0 %v596
  %789 = vmatpush.bf16.msra.mxu0 %v589
  %790 = vmatpush.bf16.msra.mxu0 %v582
  %791 = vmatpush.bf16.msra.mxu0 %v575
  %792 = vmatmul.bf16.gmra.mxu0 %v163
  %v793 = vpop.f32.mrf.mxu0
  %v794 = vadd.f32 %v780, %v793
  %v795 = vpop.f32.mrf.mxu0
  %v796 = vadd.f32 %v782, %v795
  %797 = vdwg.mxu0
  %798 = vmatpush.bf16.msra.mxu0 %v569
  %799 = vmatpush.bf16.msra.mxu0 %v562
  %800 = vmatpush.bf16.msra.mxu0 %v555
  %801 = vmatpush.bf16.msra.mxu0 %v548
  %802 = vmatpush.bf16.msra.mxu0 %v541
  %803 = vmatpush.bf16.msra.mxu0 %v534
  %804 = vmatpush.bf16.msra.mxu0 %v527
  %805 = vmatpush.bf16.msra.mxu0 %v520
  %806 = vmatmul.bf16.gmra.mxu0 %v162
  %v807 = vpop.f32.mrf.mxu0
  %v808 = vadd.f32 %v149, %v807
  %v809 = vpop.f32.mrf.mxu0
  %v810 = vadd.f32 %v154, %v809
  %811 = vdwg.mxu0
  %812 = vmatpush.bf16.msra.mxu0 %v625
  %813 = vmatpush.bf16.msra.mxu0 %v618
  %814 = vmatpush.bf16.msra.mxu0 %v611
  %815 = vmatpush.bf16.msra.mxu0 %v604
  %816 = vmatpush.bf16.msra.mxu0 %v597
  %817 = vmatpush.bf16.msra.mxu0 %v590
  %818 = vmatpush.bf16.msra.mxu0 %v583
  %819 = vmatpush.bf16.msra.mxu0 %v576
  %820 = vmatmul.bf16.gmra.mxu0 %v163
  %v821 = vpop.f32.mrf.mxu0
  %v822 = vadd.f32 %v808, %v821
  %v823 = vpop.f32.mrf.mxu0
  %v824 = vadd.f32 %v810, %v823
  %825 = vdwg.mxu0
  %826 = vmatpush.bf16.msra.mxu0 %v570
  %827 = vmatpush.bf16.msra.mxu0 %v563
  %828 = vmatpush.bf16.msra.mxu0 %v556
  %829 = vmatpush.bf16.msra.mxu0 %v549
  %830 = vmatpush.bf16.msra.mxu0 %v542
  %831 = vmatpush.bf16.msra.mxu0 %v535
  %832 = vmatpush.bf16.msra.mxu0 %v528
  %833 = vmatpush.bf16.msra.mxu0 %v521
  %834 = vmatmul.bf16.gmra.mxu0 %v162
  %v835 = vpop.f32.mrf.mxu0
  %v836 = vadd.f32 %v149, %v835
  %v837 = vpop.f32.mrf.mxu0
  %v838 = vadd.f32 %v154, %v837
  %839 = vdwg.mxu0
  %840 = vmatpush.bf16.msra.mxu0 %v626
  %841 = vmatpush.bf16.msra.mxu0 %v619
  %842 = vmatpush.bf16.msra.mxu0 %v612
  %843 = vmatpush.bf16.msra.mxu0 %v605
  %844 = vmatpush.bf16.msra.mxu0 %v598
  %845 = vmatpush.bf16.msra.mxu0 %v591
  %846 = vmatpush.bf16.msra.mxu0 %v584
  %847 = vmatpush.bf16.msra.mxu0 %v577
  %848 = vmatmul.bf16.gmra.mxu0 %v163
  %v849 = vpop.f32.mrf.mxu0
  %v850 = vadd.f32 %v836, %v849
  %v851 = vpop.f32.mrf.mxu0
  %v852 = vadd.f32 %v838, %v851
  %853 = vdwg.mxu0
  %854 = vmatpush.bf16.msra.mxu0 %v571
  %855 = vmatpush.bf16.msra.mxu0 %v564
  %856 = vmatpush.bf16.msra.mxu0 %v557
  %857 = vmatpush.bf16.msra.mxu0 %v550
  %858 = vmatpush.bf16.msra.mxu0 %v543
  %859 = vmatpush.bf16.msra.mxu0 %v536
  %860 = vmatpush.bf16.msra.mxu0 %v529
  %861 = vmatpush.bf16.msra.mxu0 %v522
  %862 = vmatmul.bf16.gmra.mxu0 %v162
  %v863 = vpop.f32.mrf.mxu0
  %v864 = vadd.f32 %v149, %v863
  %v865 = vpop.f32.mrf.mxu0
  %v866 = vadd.f32 %v154, %v865
  %867 = vdwg.mxu0
  %868 = vmatpush.bf16.msra.mxu0 %v627
  %869 = vmatpush.bf16.msra.mxu0 %v620
  %870 = vmatpush.bf16.msra.mxu0 %v613
  %871 = vmatpush.bf16.msra.mxu0 %v606
  %872 = vmatpush.bf16.msra.mxu0 %v599
  %873 = vmatpush.bf16.msra.mxu0 %v592
  %874 = vmatpush.bf16.msra.mxu0 %v585
  %875 = vmatpush.bf16.msra.mxu0 %v578
  %876 = vmatmul.bf16.gmra.mxu0 %v163
  %v877 = vpop.f32.mrf.mxu0
  %v878 = vadd.f32 %v864, %v877
  %v879 = vpop.f32.mrf.mxu0
  %v880 = vadd.f32 %v866, %v879
  %881 = vdwg.mxu0
  %882 = vmatpush.bf16.msra.mxu0 %v572
  %883 = vmatpush.bf16.msra.mxu0 %v565
  %884 = vmatpush.bf16.msra.mxu0 %v558
  %885 = vmatpush.bf16.msra.mxu0 %v551
  %886 = vmatpush.bf16.msra.mxu0 %v544
  %887 = vmatpush.bf16.msra.mxu0 %v537
  %888 = vmatpush.bf16.msra.mxu0 %v530
  %889 = vmatpush.bf16.msra.mxu0 %v523
  %890 = vmatmul.bf16.gmra.mxu0 %v162
  %v891 = vpop.f32.mrf.mxu0
  %v892 = vadd.f32 %v149, %v891
  %v893 = vpop.f32.mrf.mxu0
  %v894 = vadd.f32 %v154, %v893
  %895 = vdwg.mxu0
  %896 = vmatpush.bf16.msra.mxu0 %v628
  %897 = vmatpush.bf16.msra.mxu0 %v621
  %898 = vmatpush.bf16.msra.mxu0 %v614
  %899 = vmatpush.bf16.msra.mxu0 %v607
  %900 = vmatpush.bf16.msra.mxu0 %v600
  %901 = vmatpush.bf16.msra.mxu0 %v593
  %902 = vmatpush.bf16.msra.mxu0 %v586
  %903 = vmatpush.bf16.msra.mxu0 %v579
  %904 = vmatmul.bf16.gmra.mxu0 %v163
  %v905 = vpop.f32.mrf.mxu0
  %v906 = vadd.f32 %v892, %v905
  %v907 = vpop.f32.mrf.mxu0
  %v908 = vadd.f32 %v894, %v907
  %909 = vdwg.mxu0
  %910 = vmatpush.bf16.msra.mxu0 %v573
  %911 = vmatpush.bf16.msra.mxu0 %v566
  %912 = vmatpush.bf16.msra.mxu0 %v559
  %913 = vmatpush.bf16.msra.mxu0 %v552
  %914 = vmatpush.bf16.msra.mxu0 %v545
  %915 = vmatpush.bf16.msra.mxu0 %v538
  %916 = vmatpush.bf16.msra.mxu0 %v531
  %917 = vmatpush.bf16.msra.mxu0 %v524
  %918 = vmatmul.bf16.gmra.mxu0 %v162
  %v919 = vpop.f32.mrf.mxu0
  %v920 = vadd.f32 %v149, %v919
  %v921 = vpop.f32.mrf.mxu0
  %v922 = vadd.f32 %v154, %v921
  %923 = vdwg.mxu0
  %924 = vmatpush.bf16.msra.mxu0 %v629
  %925 = vmatpush.bf16.msra.mxu0 %v622
  %926 = vmatpush.bf16.msra.mxu0 %v615
  %927 = vmatpush.bf16.msra.mxu0 %v608
  %928 = vmatpush.bf16.msra.mxu0 %v601
  %929 = vmatpush.bf16.msra.mxu0 %v594
  %930 = vmatpush.bf16.msra.mxu0 %v587
  %931 = vmatpush.bf16.msra.mxu0 %v580
  %932 = vmatmul.bf16.gmra.mxu0 %v163
  %v933 = vpop.f32.mrf.mxu0
  %v934 = vadd.f32 %v920, %v933
  %v935 = vpop.f32.mrf.mxu0
  %v936 = vadd.f32 %v922, %v935
  %937 = vdwg.mxu0
  %v938 = vmax.f32 %v766, 0.0
  %v939 = vmax.f32 %v794, 0.0
  %v940 = vmax.f32 %v822, 0.0
  %v941 = vmax.f32 %v850, 0.0
  %v942 = vmax.f32 %v878, 0.0
  %v943 = vmax.f32 %v906, 0.0
  %v944 = vmax.f32 %v934, 0.0
  %v945 = vmax.f32 %v768, 0.0
  %v946 = vmax.f32 %v796, 0.0
  %v947 = vmax.f32 %v824, 0.0
  %v948 = vmax.f32 %v852, 0.0
  %v949 = vmax.f32 %v880, 0.0
  %v950 = vmax.f32 %v908, 0.0
  %v951 = vmax.f32 %v936, 0.0
  %v952 = vpack.c.bf16 %v939, %v938
  %v953 = vpack.c.bf16 %v941, %v940
  %v954 = vpack.c.bf16 %v943, %v942
  %v955 = vpack.c.bf16 %v944, %v944
  %v956 = vpack.c.bf16 %v946, %v945
  %v957 = vpack.c.bf16 %v948, %v947
  %v958 = vpack.c.bf16 %v950, %v949
  %v959 = vpack.c.bf16 %v951, %v951
  %960 = vst [vmem:[%s3] sm:$0xff] %v952
  %961 = vst [vmem:[%s3 + $0x8] sm:$0xff] %v953
  %962 = vst [vmem:[%s3 + $0x10] sm:$0xff] %v954
  %963 = vst [vmem:[%s3 + $0x18] sm:$0xf] %v955
  %964 = vst [vmem:[%s3 + $0x1c] sm:$0xff] %v956
  %965 = vst [vmem:[%s3 + $0x24] sm:$0xff] %v957
  %966 = vst [vmem:[%s3 + $0x2c] sm:$0xff] %v958
  %967 = vst [vmem:[%s3 + $0x34] sm:$0xf] %v959
  // Predicated region
  $region14: #{vanet_forward.5} parent=0 // pred_check
    _
  $region15: #{vanet_forward.5} parent=0 // pred_check_branch
    %969 = sbr.rel (0) target = $region17
  $region16: #{vanet_forward.5} parent=0 // pred_region
    _
  $region17: #{vanet_forward.5} parent=0 // pred_fallthru
    _
  // Predicated region
  $region18: #{vanet_forward.5} parent=0 // pred_check
    _
  $region19: #{vanet_forward.5} parent=0 // pred_check_branch
    %971 = sbr.rel (0) target = $region21
  $region20: #{vanet_forward.5} parent=0 // pred_region
    _
  $region21: #{vanet_forward.5} parent=0 // pred_fallthru
    _

// kernel: vanet_forward.6
$region0: #{vanet_forward.6}
  #allocation0 [shape = 'u32[]', space=smem, size = 0x4, offset = 0x4, fixed_abs, tag = 'smem constant byte address 0x4 - core index']
  #allocation1 [shape = 'u32[72,128]{1,0:T(1,128)}', space=vmem, size = 0x9000, scoped, tag = 'internal scratch']
  %s0 = inlined_call_operand.vmem [shape: bf16[32,512], index: 0, kind: input, shape index: {}]
  %s1 = inlined_call_operand.vmem [shape: bf16[512,560], index: 1, kind: input, shape index: {}]
  %s2 = inlined_call_operand.vmem [shape: f32[32,1], index: 2, kind: input, shape index: {}]
  %s3 = inlined_call_operand.vmem [shape: bf16[32,560], index: 3, kind: output, shape index: {}]
  %s4 = sld [smem:[#allocation0]]
  $region22: #{vanet_forward.6} parent=0
    _
  %s6 = ssub.s32 1, %s4
  %s7 = scalar_select 0, %s6, %s4
  // Predicated region
  $region2: #{vanet_forward.6} parent=0 // pred_check
    _
  $region3: #{vanet_forward.6} parent=0 // pred_check_branch
    %9 = sbr.rel (0) target = $region5
  $region4: #{vanet_forward.6} parent=0 // pred_region
    _
  $region5: #{vanet_forward.6} parent=0 // pred_fallthru
    _
  // Predicated region
  $region6: #{vanet_forward.6} parent=0 // pred_check
    _
  $region7: #{vanet_forward.6} parent=0 // pred_check_branch
    %11 = sbr.rel (0) target = $region9
  $region8: #{vanet_forward.6} parent=0 // pred_region
    _
  $region9: #{vanet_forward.6} parent=0 // pred_fallthru
    _
  // Predicated region
  $region10: #{vanet_forward.6} parent=0 // pred_check
    _
  $region11: #{vanet_forward.6} parent=0 // pred_check_branch
    %13 = sbr.rel (0) target = $region13
  $region12: #{vanet_forward.6} parent=0 // pred_region
    _
  $region13: #{vanet_forward.6} parent=0 // pred_fallthru
    _
  %v14 = vld [vmem:[%s0] sm:$0xff]
  %v15 = vld [vmem:[%s0 + $0x8] sm:$0xff]
  %v16 = vld [vmem:[%s0 + $0x10] sm:$0xff]
  %v17 = vld [vmem:[%s0 + $0x18] sm:$0xff]
  %v18 = vld [vmem:[%s0 + $0x20] sm:$0xff]
  %v19 = vld [vmem:[%s0 + $0x28] sm:$0xff]
  %v20 = vld [vmem:[%s0 + $0x30] sm:$0xff]
  %v21 = vld [vmem:[%s0 + $0x38] sm:$0xff]
  %v22 = vld [vmem:[%s1] sm:$0xff]
  %v23 = vld [vmem:[%s1 + $0x8] sm:$0xff]
  %v24 = vld [vmem:[%s1 + $0x10] sm:$0xf]
  %v25 = vld [vmem:[%s1 + $0x14] sm:$0xff]
  %v26 = vld [vmem:[%s1 + $0x1c] sm:$0xff]
  %v27 = vld [vmem:[%s1 + $0x24] sm:$0xf]
  %v28 = vld [vmem:[%s1 + $0x28] sm:$0xff]
  %v29 = vld [vmem:[%s1 + $0x30] sm:$0xff]
  %v30 = vld [vmem:[%s1 + $0x38] sm:$0xf]
  %v31 = vld [vmem:[%s1 + $0x3c] sm:$0xff]
  %v32 = vld [vmem:[%s1 + $0x44] sm:$0xff]
  %v33 = vld [vmem:[%s1 + $0x4c] sm:$0xf]
  %v34 = vld [vmem:[%s1 + $0x50] sm:$0xff]
  %v35 = vld [vmem:[%s1 + $0x58] sm:$0xff]
  %v36 = vld [vmem:[%s1 + $0x60] sm:$0xf]
  %v37 = vld [vmem:[%s1 + $0x64] sm:$0xff]
  %v38 = vld [vmem:[%s1 + $0x6c] sm:$0xff]
  %v39 = vld [vmem:[%s1 + $0x74] sm:$0xf]
  %v40 = vld [vmem:[%s1 + $0x78] sm:$0xff]
  %v41 = vld [vmem:[%s1 + $0x80] sm:$0xff]
  %v42 = vld [vmem:[%s1 + $0x88] sm:$0xf]
  %v43 = vld [vmem:[%s1 + $0x8c] sm:$0xff]
  %v44 = vld [vmem:[%s1 + $0x94] sm:$0xff]
  %v45 = vld [vmem:[%s1 + $0x9c] sm:$0xf]
  %v46 = vld [vmem:[%s1 + $0xa0] sm:$0xff]
  %v47 = vld [vmem:[%s1 + $0xa8] sm:$0xff]
  %v48 = vld [vmem:[%s1 + $0xb0] sm:$0xf]
  %v49 = vld [vmem:[%s1 + $0xb4] sm:$0xff]
  %v50 = vld [vmem:[%s1 + $0xbc] sm:$0xff]
  %v51 = vld [vmem:[%s1 + $0xc4] sm:$0xf]
  %v52 = vld [vmem:[%s1 + $0xc8] sm:$0xff]
  %v53 = vld [vmem:[%s1 + $0xd0] sm:$0xff]
  %v54 = vld [vmem:[%s1 + $0xd8] sm:$0xf]
  %v55 = vld [vmem:[%s1 + $0xdc] sm:$0xff]
  %v56 = vld [vmem:[%s1 + $0xe4] sm:$0xff]
  %v57 = vld [vmem:[%s1 + $0xec] sm:$0xf]
  %v58 = vld [vmem:[%s1 + $0xf0] sm:$0xff]
  %v59 = vld [vmem:[%s1 + $0xf8] sm:$0xff]
  %v60 = vld [vmem:[%s1 + $0x100] sm:$0xf]
  %v61 = vld [vmem:[%s1 + $0x104] sm:$0xff]
  %v62 = vld [vmem:[%s1 + $0x10c] sm:$0xff]
  %v63 = vld [vmem:[%s1 + $0x114] sm:$0xf]
  %v64 = vld [vmem:[%s1 + $0x118] sm:$0xff]
  %v65 = vld [vmem:[%s1 + $0x120] sm:$0xff]
  %v66 = vld [vmem:[%s1 + $0x128] sm:$0xf]
  %v67 = vld [vmem:[%s1 + $0x12c] sm:$0xff]
  %v68 = vld [vmem:[%s1 + $0x134] sm:$0xff]
  %v69 = vld [vmem:[%s1 + $0x13c] sm:$0xf]
  %v70 = vld [vmem:[%s1 + $0x140] sm:$0xff]
  %v71 = vld [vmem:[%s1 + $0x148] sm:$0xff]
  %v72 = vld [vmem:[%s1 + $0x150] sm:$0xf]
  %v73 = vld [vmem:[%s1 + $0x154] sm:$0xff]
  %v74 = vld [vmem:[%s1 + $0x15c] sm:$0xff]
  %v75 = vld [vmem:[%s1 + $0x164] sm:$0xf]
  %v76 = vld [vmem:[%s1 + $0x168] sm:$0xff]
  %v77 = vld [vmem:[%s1 + $0x170] sm:$0xff]
  %v78 = vld [vmem:[%s1 + $0x178] sm:$0xf]
  %v79 = vld [vmem:[%s1 + $0x17c] sm:$0xff]
  %v80 = vld [vmem:[%s1 + $0x184] sm:$0xff]
  %v81 = vld [vmem:[%s1 + $0x18c] sm:$0xf]
  %v82 = vld [vmem:[%s1 + $0x190] sm:$0xff]
  %v83 = vld [vmem:[%s1 + $0x198] sm:$0xff]
  %v84 = vld [vmem:[%s1 + $0x1a0] sm:$0xf]
  %v85 = vld [vmem:[%s1 + $0x1a4] sm:$0xff]
  %v86 = vld [vmem:[%s1 + $0x1ac] sm:$0xff]
  %v87 = vld [vmem:[%s1 + $0x1b4] sm:$0xf]
  %v88 = vld [vmem:[%s1 + $0x1b8] sm:$0xff]
  %v89 = vld [vmem:[%s1 + $0x1c0] sm:$0xff]
  %v90 = vld [vmem:[%s1 + $0x1c8] sm:$0xf]
  %v91 = vld [vmem:[%s1 + $0x1cc] sm:$0xff]
  %v92 = vld [vmem:[%s1 + $0x1d4] sm:$0xff]
  %v93 = vld [vmem:[%s1 + $0x1dc] sm:$0xf]
  %v94 = vld [vmem:[%s1 + $0x1e0] sm:$0xff]
  %v95 = vld [vmem:[%s1 + $0x1e8] sm:$0xff]
  %v96 = vld [vmem:[%s1 + $0x1f0] sm:$0xf]
  %v97 = vld [vmem:[%s1 + $0x1f4] sm:$0xff]
  %v98 = vld [vmem:[%s1 + $0x1fc] sm:$0xff]
  %v99 = vld [vmem:[%s1 + $0x204] sm:$0xf]
  %v100 = vld [vmem:[%s1 + $0x208] sm:$0xff]
  %v101 = vld [vmem:[%s1 + $0x210] sm:$0xff]
  %v102 = vld [vmem:[%s1 + $0x218] sm:$0xf]
  %v103 = vld [vmem:[%s1 + $0x21c] sm:$0xff]
  %v104 = vld [vmem:[%s1 + $0x224] sm:$0xff]
  %v105 = vld [vmem:[%s1 + $0x22c] sm:$0xf]
  %v106 = vld [vmem:[%s1 + $0x230] sm:$0xff]
  %v107 = vld [vmem:[%s1 + $0x238] sm:$0xff]
  %v108 = vld [vmem:[%s1 + $0x240] sm:$0xf]
  %v109 = vld [vmem:[%s1 + $0x244] sm:$0xff]
  %v110 = vld [vmem:[%s1 + $0x24c] sm:$0xff]
  %v111 = vld [vmem:[%s1 + $0x254] sm:$0xf]
  %v112 = vld [vmem:[%s1 + $0x258] sm:$0xff]
  %v113 = vld [vmem:[%s1 + $0x260] sm:$0xff]
  %v114 = vld [vmem:[%s1 + $0x268] sm:$0xf]
  %v115 = vld [vmem:[%s1 + $0x26c] sm:$0xff]
  %v116 = vld [vmem:[%s1 + $0x274] sm:$0xff]
  %v117 = vld [vmem:[%s1 + $0x27c] sm:$0xf]
  %v118 = vld [vmem:[%s1 + $0x280] sm:$0xff]
  %v119 = vld [vmem:[%s1 + $0x288] sm:$0xff]
  %v120 = vld [vmem:[%s1 + $0x290] sm:$0xf]
  %v121 = vld [vmem:[%s1 + $0x294] sm:$0xff]
  %v122 = vld [vmem:[%s1 + $0x29c] sm:$0xff]
  %v123 = vld [vmem:[%s1 + $0x2a4] sm:$0xf]
  %v124 = vld [vmem:[%s1 + $0x2a8] sm:$0xff]
  %v125 = vld [vmem:[%s1 + $0x2b0] sm:$0xff]
  %v126 = vld [vmem:[%s1 + $0x2b8] sm:$0xf]
  %v127 = vld [vmem:[%s1 + $0x2bc] sm:$0xff]
  %v128 = vld [vmem:[%s1 + $0x2c4] sm:$0xff]
  %v129 = vld [vmem:[%s1 + $0x2cc] sm:$0xf]
  %v130 = vld [vmem:[%s1 + $0x2d0] sm:$0xff]
  %v131 = vld [vmem:[%s1 + $0x2d8] sm:$0xff]
  %v132 = vld [vmem:[%s1 + $0x2e0] sm:$0xf]
  %v133 = vld [vmem:[%s1 + $0x2e4] sm:$0xff]
  %v134 = vld [vmem:[%s1 + $0x2ec] sm:$0xff]
  %v135 = vld [vmem:[%s1 + $0x2f4] sm:$0xf]
  %v136 = vld [vmem:[%s1 + $0x2f8] sm:$0xff]
  %v137 = vld [vmem:[%s1 + $0x300] sm:$0xff]
  %v138 = vld [vmem:[%s1 + $0x308] sm:$0xf]
  %v139 = vld [vmem:[%s1 + $0x30c] sm:$0xff]
  %v140 = vld [vmem:[%s1 + $0x314] sm:$0xff]
  %v141 = vld [vmem:[%s1 + $0x31c] sm:$0xf]
  %v142 = vld [vmem:[%s1 + $0x320] sm:$0xff]
  %v143 = vld [vmem:[%s1 + $0x328] sm:$0xff]
  %v144 = vld [vmem:[%s1 + $0x330] sm:$0xf]
  %v145 = vld [vmem:[%s1 + $0x334] sm:$0xff]
  %v146 = vld [vmem:[%s1 + $0x33c] sm:$0xff]
  %v147 = vld [vmem:[%s1 + $0x344] sm:$0xf]
  %v148 = vld [vmem:[%s1 + $0x348] sm:$0xff]
  %v149 = vld [vmem:[%s1 + $0x350] sm:$0xff]
  %v150 = vld [vmem:[%s1 + $0x358] sm:$0xf]
  %v151 = vld [vmem:[%s1 + $0x35c] sm:$0xff]
  %v152 = vld [vmem:[%s1 + $0x364] sm:$0xff]
  %v153 = vld [vmem:[%s1 + $0x36c] sm:$0xf]
  %v154 = vld [vmem:[%s1 + $0x370] sm:$0xff]
  %v155 = vld [vmem:[%s1 + $0x378] sm:$0xff]
  %v156 = vld [vmem:[%s1 + $0x380] sm:$0xf]
  %v157 = vld [vmem:[%s1 + $0x384] sm:$0xff]
  %v158 = vld [vmem:[%s1 + $0x38c] sm:$0xff]
  %v159 = vld [vmem:[%s1 + $0x394] sm:$0xf]
  %v160 = vld [vmem:[%s1 + $0x398] sm:$0xff]
  %v161 = vld [vmem:[%s1 + $0x3a0] sm:$0xff]
  %v162 = vld [vmem:[%s1 + $0x3a8] sm:$0xf]
  %v163 = vld [vmem:[%s1 + $0x3ac] sm:$0xff]
  %v164 = vld [vmem:[%s1 + $0x3b4] sm:$0xff]
  %v165 = vld [vmem:[%s1 + $0x3bc] sm:$0xf]
  %v166 = vld [vmem:[%s1 + $0x3c0] sm:$0xff]
  %v167 = vld [vmem:[%s1 + $0x3c8] sm:$0xff]
  %v168 = vld [vmem:[%s1 + $0x3d0] sm:$0xf]
  %v169 = vld [vmem:[%s1 + $0x3d4] sm:$0xff]
  %v170 = vld [vmem:[%s1 + $0x3dc] sm:$0xff]
  %v171 = vld [vmem:[%s1 + $0x3e4] sm:$0xf]
  %v172 = vld [vmem:[%s1 + $0x3e8] sm:$0xff]
  %v173 = vld [vmem:[%s1 + $0x3f0] sm:$0xff]
  %v174 = vld [vmem:[%s1 + $0x3f8] sm:$0xf]
  %v175 = vld [vmem:[%s1 + $0x3fc] sm:$0xff]
  %v176 = vld [vmem:[%s1 + $0x404] sm:$0xff]
  %v177 = vld [vmem:[%s1 + $0x40c] sm:$0xf]
  %v178 = vld [vmem:[%s1 + $0x410] sm:$0xff]
  %v179 = vld [vmem:[%s1 + $0x418] sm:$0xff]
  %v180 = vld [vmem:[%s1 + $0x420] sm:$0xf]
  %v181 = vld [vmem:[%s1 + $0x424] sm:$0xff]
  %v182 = vld [vmem:[%s1 + $0x42c] sm:$0xff]
  %v183 = vld [vmem:[%s1 + $0x434] sm:$0xf]
  %v184 = vld [vmem:[%s1 + $0x438] sm:$0xff]
  %v185 = vld [vmem:[%s1 + $0x440] sm:$0xff]
  %v186 = vld [vmem:[%s1 + $0x448] sm:$0xf]
  %v187 = vld [vmem:[%s1 + $0x44c] sm:$0xff]
  %v188 = vld [vmem:[%s1 + $0x454] sm:$0xff]
  %v189 = vld [vmem:[%s1 + $0x45c] sm:$0xf]
  %v190 = vld [vmem:[%s1 + $0x460] sm:$0xff]
  %v191 = vld [vmem:[%s1 + $0x468] sm:$0xff]
  %v192 = vld [vmem:[%s1 + $0x470] sm:$0xf]
  %v193 = vld [vmem:[%s1 + $0x474] sm:$0xff]
  %v194 = vld [vmem:[%s1 + $0x47c] sm:$0xff]
  %v195 = vld [vmem:[%s1 + $0x484] sm:$0xf]
  %v196 = vld [vmem:[%s1 + $0x488] sm:$0xff]
  %v197 = vld [vmem:[%s1 + $0x490] sm:$0xff]
  %v198 = vld [vmem:[%s1 + $0x498] sm:$0xf]
  %v199 = vld [vmem:[%s1 + $0x49c] sm:$0xff]
  %v200 = vld [vmem:[%s1 + $0x4a4] sm:$0xff]
  %v201 = vld [vmem:[%s1 + $0x4ac] sm:$0xf]
  %v202 = vld [vmem:[%s1 + $0x4b0] sm:$0xff]
  %v203 = vld [vmem:[%s1 + $0x4b8] sm:$0xff]
  %v204 = vld [vmem:[%s1 + $0x4c0] sm:$0xf]
  %v205 = vld [vmem:[%s1 + $0x4c4] sm:$0xff]
  %v206 = vld [vmem:[%s1 + $0x4cc] sm:$0xff]
  %v207 = vld [vmem:[%s1 + $0x4d4] sm:$0xf]
  %v208 = vld [vmem:[%s1 + $0x4d8] sm:$0xff]
  %v209 = vld [vmem:[%s1 + $0x4e0] sm:$0xff]
  %v210 = vld [vmem:[%s1 + $0x4e8] sm:$0xf]
  %v211 = vld [vmem:[%s1 + $0x4ec] sm:$0xff]
  %v212 = vld [vmem:[%s1 + $0x4f4] sm:$0xff]
  %v213 = vld [vmem:[%s1 + $0x4fc] sm:$0xf]
  %v214 = vld [vmem:[%s2] sm:$0xff]
  %v215 = vld [vmem:[%s2 + $0x8] sm:$0xff]
  %v216 = vld [vmem:[%s2 + $0x10] sm:$0xff]
  %v217 = vld [vmem:[%s2 + $0x18] sm:$0xff]
  %219 = vset.pattern.permute.xlu0 0
  %220 = vperm.xlu0 %219, %v214
  %v221 = vpop.permute.xlu0 %220
  %224 = vset.pattern.permute.xlu0 0
  %225 = vperm.xlu0 %224, %v215
  %v226 = vpop.permute.xlu0 %225
  %229 = vset.pattern.permute.xlu0 0
  %230 = vperm.xlu0 %229, %v216
  %v231 = vpop.permute.xlu0 %230
  %234 = vset.pattern.permute.xlu0 0
  %235 = vperm.xlu0 %234, %v217
  %v236 = vpop.permute.xlu0 %235
  %v246 = vunpack.c.l.b16 %v14
  %v247 = vunpack.c.h.b16 %v14
  %v248 = vunpack.c.l.b16 %v15
  %v249 = vunpack.c.h.b16 %v15
  %v250 = vunpack.c.l.b16 %v16
  %v251 = vunpack.c.h.b16 %v16
  %v252 = vunpack.c.l.b16 %v17
  %v253 = vunpack.c.h.b16 %v17
  %v254 = vunpack.c.l.b16 %v18
  %v255 = vunpack.c.h.b16 %v18
  %v256 = vunpack.c.l.b16 %v19
  %v257 = vunpack.c.h.b16 %v19
  %v258 = vunpack.c.l.b16 %v20
  %v259 = vunpack.c.h.b16 %v20
  %v260 = vunpack.c.l.b16 %v21
  %v261 = vunpack.c.h.b16 %v21
  %v262 = vpack.c.b16 %v250, %v246
  %v263 = vpack.c.b16 %v251, %v247
  %v264 = vpack.c.b16 %v252, %v248
  %v265 = vpack.c.b16 %v253, %v249
  %v266 = vpack.c.b16 %v258, %v254
  %v267 = vpack.c.b16 %v259, %v255
  %v268 = vpack.c.b16 %v260, %v256
  %v269 = vpack.c.b16 %v261, %v257
  %v470 = vunpack.c.l.b16 %v22
  %v471 = vunpack.c.h.b16 %v22
  %v472 = vunpack.c.l.b16 %v23
  %v473 = vunpack.c.h.b16 %v23
  %v474 = vunpack.c.l.b16 %v24
  %v475 = vunpack.c.l.b16 %v25
  %v476 = vunpack.c.h.b16 %v25
  %v477 = vunpack.c.l.b16 %v26
  %v478 = vunpack.c.h.b16 %v26
  %v479 = vunpack.c.l.b16 %v27
  %v480 = vunpack.c.l.b16 %v28
  %v481 = vunpack.c.h.b16 %v28
  %v482 = vunpack.c.l.b16 %v29
  %v483 = vunpack.c.h.b16 %v29
  %v484 = vunpack.c.l.b16 %v30
  %v485 = vunpack.c.l.b16 %v31
  %v486 = vunpack.c.h.b16 %v31
  %v487 = vunpack.c.l.b16 %v32
  %v488 = vunpack.c.h.b16 %v32
  %v489 = vunpack.c.l.b16 %v33
  %v490 = vunpack.c.l.b16 %v34
  %v491 = vunpack.c.h.b16 %v34
  %v492 = vunpack.c.l.b16 %v35
  %v493 = vunpack.c.h.b16 %v35
  %v494 = vunpack.c.l.b16 %v36
  %v495 = vunpack.c.l.b16 %v37
  %v496 = vunpack.c.h.b16 %v37
  %v497 = vunpack.c.l.b16 %v38
  %v498 = vunpack.c.h.b16 %v38
  %v499 = vunpack.c.l.b16 %v39
  %v500 = vunpack.c.l.b16 %v40
  %v501 = vunpack.c.h.b16 %v40
  %v502 = vunpack.c.l.b16 %v41
  %v503 = vunpack.c.h.b16 %v41
  %v504 = vunpack.c.l.b16 %v42
  %v505 = vunpack.c.l.b16 %v43
  %v506 = vunpack.c.h.b16 %v43
  %v507 = vunpack.c.l.b16 %v44
  %v508 = vunpack.c.h.b16 %v44
  %v509 = vunpack.c.l.b16 %v45
  %v510 = vunpack.c.l.b16 %v46
  %v511 = vunpack.c.h.b16 %v46
  %v512 = vunpack.c.l.b16 %v47
  %v513 = vunpack.c.h.b16 %v47
  %v514 = vunpack.c.l.b16 %v48
  %v515 = vunpack.c.l.b16 %v49
  %v516 = vunpack.c.h.b16 %v49
  %v517 = vunpack.c.l.b16 %v50
  %v518 = vunpack.c.h.b16 %v50
  %v519 = vunpack.c.l.b16 %v51
  %v520 = vunpack.c.l.b16 %v52
  %v521 = vunpack.c.h.b16 %v52
  %v522 = vunpack.c.l.b16 %v53
  %v523 = vunpack.c.h.b16 %v53
  %v524 = vunpack.c.l.b16 %v54
  %v525 = vunpack.c.l.b16 %v55
  %v526 = vunpack.c.h.b16 %v55
  %v527 = vunpack.c.l.b16 %v56
  %v528 = vunpack.c.h.b16 %v56
  %v529 = vunpack.c.l.b16 %v57
  %v530 = vunpack.c.l.b16 %v58
  %v531 = vunpack.c.h.b16 %v58
  %v532 = vunpack.c.l.b16 %v59
  %v533 = vunpack.c.h.b16 %v59
  %v534 = vunpack.c.l.b16 %v60
  %v535 = vunpack.c.l.b16 %v61
  %v536 = vunpack.c.h.b16 %v61
  %v537 = vunpack.c.l.b16 %v62
  %v538 = vunpack.c.h.b16 %v62
  %v539 = vunpack.c.l.b16 %v63
  %v540 = vunpack.c.l.b16 %v64
  %v541 = vunpack.c.h.b16 %v64
  %v542 = vunpack.c.l.b16 %v65
  %v543 = vunpack.c.h.b16 %v65
  %v544 = vunpack.c.l.b16 %v66
  %v545 = vunpack.c.l.b16 %v67
  %v546 = vunpack.c.h.b16 %v67
  %v547 = vunpack.c.l.b16 %v68
  %v548 = vunpack.c.h.b16 %v68
  %v549 = vunpack.c.l.b16 %v69
  %v550 = vunpack.c.l.b16 %v70
  %v551 = vunpack.c.h.b16 %v70
  %v552 = vunpack.c.l.b16 %v71
  %v553 = vunpack.c.h.b16 %v71
  %v554 = vunpack.c.l.b16 %v72
  %v555 = vunpack.c.l.b16 %v73
  %v556 = vunpack.c.h.b16 %v73
  %v557 = vunpack.c.l.b16 %v74
  %v558 = vunpack.c.h.b16 %v74
  %v559 = vunpack.c.l.b16 %v75
  %v560 = vunpack.c.l.b16 %v76
  %v561 = vunpack.c.h.b16 %v76
  %v562 = vunpack.c.l.b16 %v77
  %v563 = vunpack.c.h.b16 %v77
  %v564 = vunpack.c.l.b16 %v78
  %v565 = vunpack.c.l.b16 %v79
  %v566 = vunpack.c.h.b16 %v79
  %v567 = vunpack.c.l.b16 %v80
  %v568 = vunpack.c.h.b16 %v80
  %v569 = vunpack.c.l.b16 %v81
  %v570 = vunpack.c.l.b16 %v82
  %v571 = vunpack.c.h.b16 %v82
  %v572 = vunpack.c.l.b16 %v83
  %v573 = vunpack.c.h.b16 %v83
  %v574 = vunpack.c.l.b16 %v84
  %v575 = vunpack.c.l.b16 %v85
  %v576 = vunpack.c.h.b16 %v85
  %v577 = vunpack.c.l.b16 %v86
  %v578 = vunpack.c.h.b16 %v86
  %v579 = vunpack.c.l.b16 %v87
  %v580 = vunpack.c.l.b16 %v88
  %v581 = vunpack.c.h.b16 %v88
  %v582 = vunpack.c.l.b16 %v89
  %v583 = vunpack.c.h.b16 %v89
  %v584 = vunpack.c.l.b16 %v90
  %v585 = vunpack.c.l.b16 %v91
  %v586 = vunpack.c.h.b16 %v91
  %v587 = vunpack.c.l.b16 %v92
  %v588 = vunpack.c.h.b16 %v92
  %v589 = vunpack.c.l.b16 %v93
  %v590 = vunpack.c.l.b16 %v94
  %v591 = vunpack.c.h.b16 %v94
  %v592 = vunpack.c.l.b16 %v95
  %v593 = vunpack.c.h.b16 %v95
  %v594 = vunpack.c.l.b16 %v96
  %v595 = vunpack.c.l.b16 %v97
  %v596 = vunpack.c.h.b16 %v97
  %v597 = vunpack.c.l.b16 %v98
  %v598 = vunpack.c.h.b16 %v98
  %v599 = vunpack.c.l.b16 %v99
  %v600 = vunpack.c.l.b16 %v100
  %v601 = vunpack.c.h.b16 %v100
  %v602 = vunpack.c.l.b16 %v101
  %v603 = vunpack.c.h.b16 %v101
  %v604 = vunpack.c.l.b16 %v102
  %v605 = vunpack.c.l.b16 %v103
  %v606 = vunpack.c.h.b16 %v103
  %v607 = vunpack.c.l.b16 %v104
  %v608 = vunpack.c.h.b16 %v104
  %v609 = vunpack.c.l.b16 %v105
  %v610 = vunpack.c.l.b16 %v106
  %v611 = vunpack.c.h.b16 %v106
  %v612 = vunpack.c.l.b16 %v107
  %v613 = vunpack.c.h.b16 %v107
  %v614 = vunpack.c.l.b16 %v108
  %v615 = vunpack.c.l.b16 %v109
  %v616 = vunpack.c.h.b16 %v109
  %v617 = vunpack.c.l.b16 %v110
  %v618 = vunpack.c.h.b16 %v110
  %v619 = vunpack.c.l.b16 %v111
  %v620 = vunpack.c.l.b16 %v112
  %v621 = vunpack.c.h.b16 %v112
  %v622 = vunpack.c.l.b16 %v113
  %v623 = vunpack.c.h.b16 %v113
  %v624 = vunpack.c.l.b16 %v114
  %v625 = vunpack.c.l.b16 %v115
  %v626 = vunpack.c.h.b16 %v115
  %v627 = vunpack.c.l.b16 %v116
  %v628 = vunpack.c.h.b16 %v116
  %v629 = vunpack.c.l.b16 %v117
  %v630 = vunpack.c.l.b16 %v118
  %v631 = vunpack.c.h.b16 %v118
  %v632 = vunpack.c.l.b16 %v119
  %v633 = vunpack.c.h.b16 %v119
  %v634 = vunpack.c.l.b16 %v120
  %v635 = vunpack.c.l.b16 %v121
  %v636 = vunpack.c.h.b16 %v121
  %v637 = vunpack.c.l.b16 %v122
  %v638 = vunpack.c.h.b16 %v122
  %v639 = vunpack.c.l.b16 %v123
  %v640 = vunpack.c.l.b16 %v124
  %v641 = vunpack.c.h.b16 %v124
  %v642 = vunpack.c.l.b16 %v125
  %v643 = vunpack.c.h.b16 %v125
  %v644 = vunpack.c.l.b16 %v126
  %v645 = vunpack.c.l.b16 %v127
  %v646 = vunpack.c.h.b16 %v127
  %v647 = vunpack.c.l.b16 %v128
  %v648 = vunpack.c.h.b16 %v128
  %v649 = vunpack.c.l.b16 %v129
  %v650 = vunpack.c.l.b16 %v130
  %v651 = vunpack.c.h.b16 %v130
  %v652 = vunpack.c.l.b16 %v131
  %v653 = vunpack.c.h.b16 %v131
  %v654 = vunpack.c.l.b16 %v132
  %v655 = vunpack.c.l.b16 %v133
  %v656 = vunpack.c.h.b16 %v133
  %v657 = vunpack.c.l.b16 %v134
  %v658 = vunpack.c.h.b16 %v134
  %v659 = vunpack.c.l.b16 %v135
  %v660 = vunpack.c.l.b16 %v136
  %v661 = vunpack.c.h.b16 %v136
  %v662 = vunpack.c.l.b16 %v137
  %v663 = vunpack.c.h.b16 %v137
  %v664 = vunpack.c.l.b16 %v138
  %v665 = vunpack.c.l.b16 %v139
  %v666 = vunpack.c.h.b16 %v139
  %v667 = vunpack.c.l.b16 %v140
  %v668 = vunpack.c.h.b16 %v140
  %v669 = vunpack.c.l.b16 %v141
  %v670 = vunpack.c.l.b16 %v142
  %v671 = vunpack.c.h.b16 %v142
  %v672 = vunpack.c.l.b16 %v143
  %v673 = vunpack.c.h.b16 %v143
  %v674 = vunpack.c.l.b16 %v144
  %v675 = vunpack.c.l.b16 %v145
  %v676 = vunpack.c.h.b16 %v145
  %v677 = vunpack.c.l.b16 %v146
  %v678 = vunpack.c.h.b16 %v146
  %v679 = vunpack.c.l.b16 %v147
  %v680 = vunpack.c.l.b16 %v148
  %v681 = vunpack.c.h.b16 %v148
  %v682 = vunpack.c.l.b16 %v149
  %v683 = vunpack.c.h.b16 %v149
  %v684 = vunpack.c.l.b16 %v150
  %v685 = vunpack.c.l.b16 %v151
  %v686 = vunpack.c.h.b16 %v151
  %v687 = vunpack.c.l.b16 %v152
  %v688 = vunpack.c.h.b16 %v152
  %v689 = vunpack.c.l.b16 %v153
  %v690 = vunpack.c.l.b16 %v154
  %v691 = vunpack.c.h.b16 %v154
  %v692 = vunpack.c.l.b16 %v155
  %v693 = vunpack.c.h.b16 %v155
  %v694 = vunpack.c.l.b16 %v156
  %v695 = vunpack.c.l.b16 %v157
  %v696 = vunpack.c.h.b16 %v157
  %v697 = vunpack.c.l.b16 %v158
  %v698 = vunpack.c.h.b16 %v158
  %v699 = vunpack.c.l.b16 %v159
  %v700 = vunpack.c.l.b16 %v160
  %v701 = vunpack.c.h.b16 %v160
  %v702 = vunpack.c.l.b16 %v161
  %v703 = vunpack.c.h.b16 %v161
  %v704 = vunpack.c.l.b16 %v162
  %v705 = vunpack.c.l.b16 %v163
  %v706 = vunpack.c.h.b16 %v163
  %v707 = vunpack.c.l.b16 %v164
  %v708 = vunpack.c.h.b16 %v164
  %v709 = vunpack.c.l.b16 %v165
  %v710 = vunpack.c.l.b16 %v166
  %v711 = vunpack.c.h.b16 %v166
  %v712 = vunpack.c.l.b16 %v167
  %v713 = vunpack.c.h.b16 %v167
  %v714 = vunpack.c.l.b16 %v168
  %v715 = vunpack.c.l.b16 %v169
  %v716 = vunpack.c.h.b16 %v169
  %v717 = vunpack.c.l.b16 %v170
  %v718 = vunpack.c.h.b16 %v170
  %v719 = vunpack.c.l.b16 %v171
  %v720 = vunpack.c.l.b16 %v172
  %v721 = vunpack.c.h.b16 %v172
  %v722 = vunpack.c.l.b16 %v173
  %v723 = vunpack.c.h.b16 %v173
  %v724 = vunpack.c.l.b16 %v174
  %v725 = vunpack.c.l.b16 %v175
  %v726 = vunpack.c.h.b16 %v175
  %v727 = vunpack.c.l.b16 %v176
  %v728 = vunpack.c.h.b16 %v176
  %v729 = vunpack.c.l.b16 %v177
  %v730 = vunpack.c.l.b16 %v178
  %v731 = vunpack.c.h.b16 %v178
  %v732 = vunpack.c.l.b16 %v179
  %v733 = vunpack.c.h.b16 %v179
  %v734 = vunpack.c.l.b16 %v180
  %v735 = vunpack.c.l.b16 %v181
  %v736 = vunpack.c.h.b16 %v181
  %v737 = vunpack.c.l.b16 %v182
  %v738 = vunpack.c.h.b16 %v182
  %v739 = vunpack.c.l.b16 %v183
  %v740 = vunpack.c.l.b16 %v184
  %v741 = vunpack.c.h.b16 %v184
  %v742 = vunpack.c.l.b16 %v185
  %v743 = vunpack.c.h.b16 %v185
  %v744 = vunpack.c.l.b16 %v186
  %v745 = vunpack.c.l.b16 %v187
  %v746 = vunpack.c.h.b16 %v187
  %v747 = vunpack.c.l.b16 %v188
  %v748 = vunpack.c.h.b16 %v188
  %v749 = vunpack.c.l.b16 %v189
  %v750 = vunpack.c.l.b16 %v190
  %v751 = vunpack.c.h.b16 %v190
  %v752 = vunpack.c.l.b16 %v191
  %v753 = vunpack.c.h.b16 %v191
  %v754 = vunpack.c.l.b16 %v192
  %v755 = vunpack.c.l.b16 %v193
  %v756 = vunpack.c.h.b16 %v193
  %v757 = vunpack.c.l.b16 %v194
  %v758 = vunpack.c.h.b16 %v194
  %v759 = vunpack.c.l.b16 %v195
  %v760 = vunpack.c.l.b16 %v196
  %v761 = vunpack.c.h.b16 %v196
  %v762 = vunpack.c.l.b16 %v197
  %v763 = vunpack.c.h.b16 %v197
  %v764 = vunpack.c.l.b16 %v198
  %v765 = vunpack.c.l.b16 %v199
  %v766 = vunpack.c.h.b16 %v199
  %v767 = vunpack.c.l.b16 %v200
  %v768 = vunpack.c.h.b16 %v200
  %v769 = vunpack.c.l.b16 %v201
  %v770 = vunpack.c.l.b16 %v202
  %v771 = vunpack.c.h.b16 %v202
  %v772 = vunpack.c.l.b16 %v203
  %v773 = vunpack.c.h.b16 %v203
  %v774 = vunpack.c.l.b16 %v204
  %v775 = vunpack.c.l.b16 %v205
  %v776 = vunpack.c.h.b16 %v205
  %v777 = vunpack.c.l.b16 %v206
  %v778 = vunpack.c.h.b16 %v206
  %v779 = vunpack.c.l.b16 %v207
  %v780 = vunpack.c.l.b16 %v208
  %v781 = vunpack.c.h.b16 %v208
  %v782 = vunpack.c.l.b16 %v209
  %v783 = vunpack.c.h.b16 %v209
  %v784 = vunpack.c.l.b16 %v210
  %v785 = vunpack.c.l.b16 %v211
  %v786 = vunpack.c.h.b16 %v211
  %v787 = vunpack.c.l.b16 %v212
  %v788 = vunpack.c.h.b16 %v212
  %v789 = vunpack.c.l.b16 %v213
  %v790 = vpack.c.b16 %v475, %v470
  %v791 = vpack.c.b16 %v476, %v471
  %v792 = vpack.c.b16 %v477, %v472
  %v793 = vpack.c.b16 %v478, %v473
  %v794 = vpack.c.b16 %v479, %v474
  %v795 = vpack.c.b16 %v485, %v480
  %v796 = vpack.c.b16 %v486, %v481
  %v797 = vpack.c.b16 %v487, %v482
  %v798 = vpack.c.b16 %v488, %v483
  %v799 = vpack.c.b16 %v489, %v484
  %v800 = vpack.c.b16 %v495, %v490
  %v801 = vpack.c.b16 %v496, %v491
  %v802 = vpack.c.b16 %v497, %v492
  %v803 = vpack.c.b16 %v498, %v493
  %v804 = vpack.c.b16 %v499, %v494
  %v805 = vpack.c.b16 %v505, %v500
  %v806 = vpack.c.b16 %v506, %v501
  %v807 = vpack.c.b16 %v507, %v502
  %v808 = vpack.c.b16 %v508, %v503
  %v809 = vpack.c.b16 %v509, %v504
  %v810 = vpack.c.b16 %v515, %v510
  %v811 = vpack.c.b16 %v516, %v511
  %v812 = vpack.c.b16 %v517, %v512
  %v813 = vpack.c.b16 %v518, %v513
  %v814 = vpack.c.b16 %v519, %v514
  %v815 = vpack.c.b16 %v525, %v520
  %v816 = vpack.c.b16 %v526, %v521
  %v817 = vpack.c.b16 %v527, %v522
  %v818 = vpack.c.b16 %v528, %v523
  %v819 = vpack.c.b16 %v529, %v524
  %v820 = vpack.c.b16 %v535, %v530
  %v821 = vpack.c.b16 %v536, %v531
  %v822 = vpack.c.b16 %v537, %v532
  %v823 = vpack.c.b16 %v538, %v533
  %v824 = vpack.c.b16 %v539, %v534
  %v825 = vpack.c.b16 %v545, %v540
  %v826 = vpack.c.b16 %v546, %v541
  %v827 = vpack.c.b16 %v547, %v542
  %v828 = vpack.c.b16 %v548, %v543
  %v829 = vpack.c.b16 %v549, %v544
  %v830 = vpack.c.b16 %v555, %v550
  %v831 = vpack.c.b16 %v556, %v551
  %v832 = vpack.c.b16 %v557, %v552
  %v833 = vpack.c.b16 %v558, %v553
  %v834 = vpack.c.b16 %v559, %v554
  %v835 = vpack.c.b16 %v565, %v560
  %v836 = vpack.c.b16 %v566, %v561
  %v837 = vpack.c.b16 %v567, %v562
  %v838 = vpack.c.b16 %v568, %v563
  %v839 = vpack.c.b16 %v569, %v564
  %v840 = vpack.c.b16 %v575, %v570
  %v841 = vpack.c.b16 %v576, %v571
  %v842 = vpack.c.b16 %v577, %v572
  %v843 = vpack.c.b16 %v578, %v573
  %v844 = vpack.c.b16 %v579, %v574
  %v845 = vpack.c.b16 %v585, %v580
  %v846 = vpack.c.b16 %v586, %v581
  %v847 = vpack.c.b16 %v587, %v582
  %v848 = vpack.c.b16 %v588, %v583
  %v849 = vpack.c.b16 %v589, %v584
  %v850 = vpack.c.b16 %v595, %v590
  %v851 = vpack.c.b16 %v596, %v591
  %v852 = vpack.c.b16 %v597, %v592
  %v853 = vpack.c.b16 %v598, %v593
  %v854 = vpack.c.b16 %v599, %v594
  %v855 = vpack.c.b16 %v605, %v600
  %v856 = vpack.c.b16 %v606, %v601
  %v857 = vpack.c.b16 %v607, %v602
  %v858 = vpack.c.b16 %v608, %v603
  %v859 = vpack.c.b16 %v609, %v604
  %v860 = vpack.c.b16 %v615, %v610
  %v861 = vpack.c.b16 %v616, %v611
  %v862 = vpack.c.b16 %v617, %v612
  %v863 = vpack.c.b16 %v618, %v613
  %v864 = vpack.c.b16 %v619, %v614
  %v865 = vpack.c.b16 %v625, %v620
  %v866 = vpack.c.b16 %v626, %v621
  %v867 = vpack.c.b16 %v627, %v622
  %v868 = vpack.c.b16 %v628, %v623
  %v869 = vpack.c.b16 %v629, %v624
  %v870 = vpack.c.b16 %v635, %v630
  %v871 = vpack.c.b16 %v636, %v631
  %v872 = vpack.c.b16 %v637, %v632
  %v873 = vpack.c.b16 %v638, %v633
  %v874 = vpack.c.b16 %v639, %v634
  %v875 = vpack.c.b16 %v645, %v640
  %v876 = vpack.c.b16 %v646, %v641
  %v877 = vpack.c.b16 %v647, %v642
  %v878 = vpack.c.b16 %v648, %v643
  %v879 = vpack.c.b16 %v649, %v644
  %v880 = vpack.c.b16 %v655, %v650
  %v881 = vpack.c.b16 %v656, %v651
  %v882 = vpack.c.b16 %v657, %v652
  %v883 = vpack.c.b16 %v658, %v653
  %v884 = vpack.c.b16 %v659, %v654
  %v885 = vpack.c.b16 %v665, %v660
  %v886 = vpack.c.b16 %v666, %v661
  %v887 = vpack.c.b16 %v667, %v662
  %v888 = vpack.c.b16 %v668, %v663
  %v889 = vpack.c.b16 %v669, %v664
  %v890 = vpack.c.b16 %v675, %v670
  %v891 = vpack.c.b16 %v676, %v671
  %v892 = vpack.c.b16 %v677, %v672
  %v893 = vpack.c.b16 %v678, %v673
  %v894 = vpack.c.b16 %v679, %v674
  %v895 = vpack.c.b16 %v685, %v680
  %v896 = vpack.c.b16 %v686, %v681
  %v897 = vpack.c.b16 %v687, %v682
  %v898 = vpack.c.b16 %v688, %v683
  %v899 = vpack.c.b16 %v689, %v684
  %v900 = vpack.c.b16 %v695, %v690
  %v901 = vpack.c.b16 %v696, %v691
  %v902 = vpack.c.b16 %v697, %v692
  %v903 = vpack.c.b16 %v698, %v693
  %v904 = vpack.c.b16 %v699, %v694
  %v905 = vpack.c.b16 %v705, %v700
  %v906 = vpack.c.b16 %v706, %v701
  %v907 = vpack.c.b16 %v707, %v702
  %v908 = vpack.c.b16 %v708, %v703
  %v909 = vpack.c.b16 %v709, %v704
  %v910 = vpack.c.b16 %v715, %v710
  %v911 = vpack.c.b16 %v716, %v711
  %v912 = vpack.c.b16 %v717, %v712
  %v913 = vpack.c.b16 %v718, %v713
  %v914 = vpack.c.b16 %v719, %v714
  %v915 = vpack.c.b16 %v725, %v720
  %v916 = vpack.c.b16 %v726, %v721
  %v917 = vpack.c.b16 %v727, %v722
  %v918 = vpack.c.b16 %v728, %v723
  %v919 = vpack.c.b16 %v729, %v724
  %v920 = vpack.c.b16 %v735, %v730
  %v921 = vpack.c.b16 %v736, %v731
  %v922 = vpack.c.b16 %v737, %v732
  %v923 = vpack.c.b16 %v738, %v733
  %v924 = vpack.c.b16 %v739, %v734
  %v925 = vpack.c.b16 %v745, %v740
  %v926 = vpack.c.b16 %v746, %v741
  %v927 = vpack.c.b16 %v747, %v742
  %v928 = vpack.c.b16 %v748, %v743
  %v929 = vpack.c.b16 %v749, %v744
  %v930 = vpack.c.b16 %v755, %v750
  %v931 = vpack.c.b16 %v756, %v751
  %v932 = vpack.c.b16 %v757, %v752
  %v933 = vpack.c.b16 %v758, %v753
  %v934 = vpack.c.b16 %v759, %v754
  %v935 = vpack.c.b16 %v765, %v760
  %v936 = vpack.c.b16 %v766, %v761
  %v937 = vpack.c.b16 %v767, %v762
  %v938 = vpack.c.b16 %v768, %v763
  %v939 = vpack.c.b16 %v769, %v764
  %v940 = vpack.c.b16 %v775, %v770
  %v941 = vpack.c.b16 %v776, %v771
  %v942 = vpack.c.b16 %v777, %v772
  %v943 = vpack.c.b16 %v778, %v773
  %v944 = vpack.c.b16 %v779, %v774
  %v945 = vpack.c.b16 %v785, %v780
  %v946 = vpack.c.b16 %v786, %v781
  %v947 = vpack.c.b16 %v787, %v782
  %v948 = vpack.c.b16 %v788, %v783
  %v949 = vpack.c.b16 %v789, %v784
  %1110 = vmatpush.bf16.msra.mxu0 %v825
  %1111 = vmatpush.bf16.msra.mxu0 %v820
  %1112 = vmatpush.bf16.msra.mxu0 %v815
  %1113 = vmatpush.bf16.msra.mxu0 %v810
  %1114 = vmatpush.bf16.msra.mxu0 %v805
  %1115 = vmatpush.bf16.msra.mxu0 %v800
  %1116 = vmatpush.bf16.msra.mxu0 %v795
  %1117 = vmatpush.bf16.msra.mxu0 %v790
  %1118 = vmatmul.bf16.gmra.mxu0 %v262
  %v1119 = vpop.f32.mrf.mxu0
  %v1120 = vadd.f32 %v221, %v1119
  %v1121 = vpop.f32.mrf.mxu0
  %v1122 = vadd.f32 %v226, %v1121
  %1123 = vmatmul.bf16.gmra.mxu0 %v266
  %v1124 = vpop.f32.mrf.mxu0
  %v1125 = vadd.f32 %v231, %v1124
  %v1126 = vpop.f32.mrf.mxu0
  %v1127 = vadd.f32 %v236, %v1126
  %1128 = vdwg.mxu0
  %1129 = vmatpush.bf16.msra.mxu0 %v865
  %1130 = vmatpush.bf16.msra.mxu0 %v860
  %1131 = vmatpush.bf16.msra.mxu0 %v855
  %1132 = vmatpush.bf16.msra.mxu0 %v850
  %1133 = vmatpush.bf16.msra.mxu0 %v845
  %1134 = vmatpush.bf16.msra.mxu0 %v840
  %1135 = vmatpush.bf16.msra.mxu0 %v835
  %1136 = vmatpush.bf16.msra.mxu0 %v830
  %1137 = vmatmul.bf16.gmra.mxu0 %v263
  %v1138 = vpop.f32.mrf.mxu0
  %v1139 = vadd.f32 %v1120, %v1138
  %v1140 = vpop.f32.mrf.mxu0
  %v1141 = vadd.f32 %v1122, %v1140
  %1142 = vmatmul.bf16.gmra.mxu0 %v267
  %v1143 = vpop.f32.mrf.mxu0
  %v1144 = vadd.f32 %v1125, %v1143
  %v1145 = vpop.f32.mrf.mxu0
  %v1146 = vadd.f32 %v1127, %v1145
  %1147 = vdwg.mxu0
  %1148 = vmatpush.bf16.msra.mxu0 %v905
  %1149 = vmatpush.bf16.msra.mxu0 %v900
  %1150 = vmatpush.bf16.msra.mxu0 %v895
  %1151 = vmatpush.bf16.msra.mxu0 %v890
  %1152 = vmatpush.bf16.msra.mxu0 %v885
  %1153 = vmatpush.bf16.msra.mxu0 %v880
  %1154 = vmatpush.bf16.msra.mxu0 %v875
  %1155 = vmatpush.bf16.msra.mxu0 %v870
  %1156 = vmatmul.bf16.gmra.mxu0 %v264
  %v1157 = vpop.f32.mrf.mxu0
  %v1158 = vadd.f32 %v1139, %v1157
  %v1159 = vpop.f32.mrf.mxu0
  %v1160 = vadd.f32 %v1141, %v1159
  %1161 = vmatmul.bf16.gmra.mxu0 %v268
  %v1162 = vpop.f32.mrf.mxu0
  %v1163 = vadd.f32 %v1144, %v1162
  %v1164 = vpop.f32.mrf.mxu0
  %v1165 = vadd.f32 %v1146, %v1164
  %1166 = vdwg.mxu0
  %1167 = vmatpush.bf16.msra.mxu0 %v945
  %1168 = vmatpush.bf16.msra.mxu0 %v940
  %1169 = vmatpush.bf16.msra.mxu0 %v935
  %1170 = vmatpush.bf16.msra.mxu0 %v930
  %1171 = vmatpush.bf16.msra.mxu0 %v925
  %1172 = vmatpush.bf16.msra.mxu0 %v920
  %1173 = vmatpush.bf16.msra.mxu0 %v915
  %1174 = vmatpush.bf16.msra.mxu0 %v910
  %1175 = vmatmul.bf16.gmra.mxu0 %v265
  %v1176 = vpop.f32.mrf.mxu0
  %v1177 = vadd.f32 %v1158, %v1176
  %v1178 = vpop.f32.mrf.mxu0
  %v1179 = vadd.f32 %v1160, %v1178
  %1180 = vmatmul.bf16.gmra.mxu0 %v269
  %v1181 = vpop.f32.mrf.mxu0
  %v1182 = vadd.f32 %v1163, %v1181
  %v1183 = vpop.f32.mrf.mxu0
  %v1184 = vadd.f32 %v1165, %v1183
  %1185 = vdwg.mxu0
  %1186 = vmatpush.bf16.msra.mxu0 %v826
  %1187 = vmatpush.bf16.msra.mxu0 %v821
  %1188 = vmatpush.bf16.msra.mxu0 %v816
  %1189 = vmatpush.bf16.msra.mxu0 %v811
  %1190 = vmatpush.bf16.msra.mxu0 %v806
  %1191 = vmatpush.bf16.msra.mxu0 %v801
  %1192 = vmatpush.bf16.msra.mxu0 %v796
  %1193 = vmatpush.bf16.msra.mxu0 %v791
  %1194 = vmatmul.bf16.gmra.mxu0 %v262
  %v1195 = vpop.f32.mrf.mxu0
  %v1196 = vadd.f32 %v221, %v1195
  %v1197 = vpop.f32.mrf.mxu0
  %v1198 = vadd.f32 %v226, %v1197
  %1199 = vmatmul.bf16.gmra.mxu0 %v266
  %v1200 = vpop.f32.mrf.mxu0
  %v1201 = vadd.f32 %v231, %v1200
  %v1202 = vpop.f32.mrf.mxu0
  %v1203 = vadd.f32 %v236, %v1202
  %1204 = vdwg.mxu0
  %1205 = vmatpush.bf16.msra.mxu0 %v866
  %1206 = vmatpush.bf16.msra.mxu0 %v861
  %1207 = vmatpush.bf16.msra.mxu0 %v856
  %1208 = vmatpush.bf16.msra.mxu0 %v851
  %1209 = vmatpush.bf16.msra.mxu0 %v846
  %1210 = vmatpush.bf16.msra.mxu0 %v841
  %1211 = vmatpush.bf16.msra.mxu0 %v836
  %1212 = vmatpush.bf16.msra.mxu0 %v831
  %1213 = vmatmul.bf16.gmra.mxu0 %v263
  %v1214 = vpop.f32.mrf.mxu0
  %v1215 = vadd.f32 %v1196, %v1214
  %v1216 = vpop.f32.mrf.mxu0
  %v1217 = vadd.f32 %v1198, %v1216
  %1218 = vmatmul.bf16.gmra.mxu0 %v267
  %v1219 = vpop.f32.mrf.mxu0
  %v1220 = vadd.f32 %v1201, %v1219
  %v1221 = vpop.f32.mrf.mxu0
  %v1222 = vadd.f32 %v1203, %v1221
  %1223 = vdwg.mxu0
  %1224 = vmatpush.bf16.msra.mxu0 %v906
  %1225 = vmatpush.bf16.msra.mxu0 %v901
  %1226 = vmatpush.bf16.msra.mxu0 %v896
  %1227 = vmatpush.bf16.msra.mxu0 %v891
  %1228 = vmatpush.bf16.msra.mxu0 %v886
  %1229 = vmatpush.bf16.msra.mxu0 %v881
  %1230 = vmatpush.bf16.msra.mxu0 %v876
  %1231 = vmatpush.bf16.msra.mxu0 %v871
  %1232 = vmatmul.bf16.gmra.mxu0 %v264
  %v1233 = vpop.f32.mrf.mxu0
  %v1234 = vadd.f32 %v1215, %v1233
  %v1235 = vpop.f32.mrf.mxu0
  %v1236 = vadd.f32 %v1217, %v1235
  %1237 = vmatmul.bf16.gmra.mxu0 %v268
  %v1238 = vpop.f32.mrf.mxu0
  %v1239 = vadd.f32 %v1220, %v1238
  %v1240 = vpop.f32.mrf.mxu0
  %v1241 = vadd.f32 %v1222, %v1240
  %1242 = vdwg.mxu0
  %1243 = vmatpush.bf16.msra.mxu0 %v946
  %1244 = vmatpush.bf16.msra.mxu0 %v941
  %1245 = vmatpush.bf16.msra.mxu0 %v936
  %1246 = vmatpush.bf16.msra.mxu0 %v931
  %1247 = vmatpush.bf16.msra.mxu0 %v926
  %1248 = vmatpush.bf16.msra.mxu0 %v921
  %1249 = vmatpush.bf16.msra.mxu0 %v916
  %1250 = vmatpush.bf16.msra.mxu0 %v911
  %1251 = vmatmul.bf16.gmra.mxu0 %v265
  %v1252 = vpop.f32.mrf.mxu0
  %v1253 = vadd.f32 %v1234, %v1252
  %v1254 = vpop.f32.mrf.mxu0
  %v1255 = vadd.f32 %v1236, %v1254
  %1256 = vmatmul.bf16.gmra.mxu0 %v269
  %v1257 = vpop.f32.mrf.mxu0
  %v1258 = vadd.f32 %v1239, %v1257
  %v1259 = vpop.f32.mrf.mxu0
  %v1260 = vadd.f32 %v1241, %v1259
  %1261 = vdwg.mxu0
  %1262 = vmatpush.bf16.msra.mxu0 %v827
  %1263 = vmatpush.bf16.msra.mxu0 %v822
  %1264 = vmatpush.bf16.msra.mxu0 %v817
  %1265 = vmatpush.bf16.msra.mxu0 %v812
  %1266 = vmatpush.bf16.msra.mxu0 %v807
  %1267 = vmatpush.bf16.msra.mxu0 %v802
  %1268 = vmatpush.bf16.msra.mxu0 %v797
  %1269 = vmatpush.bf16.msra.mxu0 %v792
  %1270 = vmatmul.bf16.gmra.mxu0 %v262
  %v1271 = vpop.f32.mrf.mxu0
  %v1272 = vadd.f32 %v221, %v1271
  %v1273 = vpop.f32.mrf.mxu0
  %v1274 = vadd.f32 %v226, %v1273
  %1275 = vmatmul.bf16.gmra.mxu0 %v266
  %v1276 = vpop.f32.mrf.mxu0
  %v1277 = vadd.f32 %v231, %v1276
  %v1278 = vpop.f32.mrf.mxu0
  %v1279 = vadd.f32 %v236, %v1278
  %1280 = vdwg.mxu0
  %1281 = vmatpush.bf16.msra.mxu0 %v867
  %1282 = vmatpush.bf16.msra.mxu0 %v862
  %1283 = vmatpush.bf16.msra.mxu0 %v857
  %1284 = vmatpush.bf16.msra.mxu0 %v852
  %1285 = vmatpush.bf16.msra.mxu0 %v847
  %1286 = vmatpush.bf16.msra.mxu0 %v842
  %1287 = vmatpush.bf16.msra.mxu0 %v837
  %1288 = vmatpush.bf16.msra.mxu0 %v832
  %1289 = vmatmul.bf16.gmra.mxu0 %v263
  %v1290 = vpop.f32.mrf.mxu0
  %v1291 = vadd.f32 %v1272, %v1290
  %v1292 = vpop.f32.mrf.mxu0
  %v1293 = vadd.f32 %v1274, %v1292
  %1294 = vmatmul.bf16.gmra.mxu0 %v267
  %v1295 = vpop.f32.mrf.mxu0
  %v1296 = vadd.f32 %v1277, %v1295
  %v1297 = vpop.f32.mrf.mxu0
  %v1298 = vadd.f32 %v1279, %v1297
  %1299 = vdwg.mxu0
  %1300 = vmatpush.bf16.msra.mxu0 %v907
  %1301 = vmatpush.bf16.msra.mxu0 %v902
  %1302 = vmatpush.bf16.msra.mxu0 %v897
  %1303 = vmatpush.bf16.msra.mxu0 %v892
  %1304 = vmatpush.bf16.msra.mxu0 %v887
  %1305 = vmatpush.bf16.msra.mxu0 %v882
  %1306 = vmatpush.bf16.msra.mxu0 %v877
  %1307 = vmatpush.bf16.msra.mxu0 %v872
  %1308 = vmatmul.bf16.gmra.mxu0 %v264
  %v1309 = vpop.f32.mrf.mxu0
  %v1310 = vadd.f32 %v1291, %v1309
  %v1311 = vpop.f32.mrf.mxu0
  %v1312 = vadd.f32 %v1293, %v1311
  %1313 = vmatmul.bf16.gmra.mxu0 %v268
  %v1314 = vpop.f32.mrf.mxu0
  %v1315 = vadd.f32 %v1296, %v1314
  %v1316 = vpop.f32.mrf.mxu0
  %v1317 = vadd.f32 %v1298, %v1316
  %1318 = vdwg.mxu0
  %1319 = vmatpush.bf16.msra.mxu0 %v947
  %1320 = vmatpush.bf16.msra.mxu0 %v942
  %1321 = vmatpush.bf16.msra.mxu0 %v937
  %1322 = vmatpush.bf16.msra.mxu0 %v932
  %1323 = vmatpush.bf16.msra.mxu0 %v927
  %1324 = vmatpush.bf16.msra.mxu0 %v922
  %1325 = vmatpush.bf16.msra.mxu0 %v917
  %1326 = vmatpush.bf16.msra.mxu0 %v912
  %1327 = vmatmul.bf16.gmra.mxu0 %v265
  %v1328 = vpop.f32.mrf.mxu0
  %v1329 = vadd.f32 %v1310, %v1328
  %v1330 = vpop.f32.mrf.mxu0
  %v1331 = vadd.f32 %v1312, %v1330
  %1332 = vmatmul.bf16.gmra.mxu0 %v269
  %v1333 = vpop.f32.mrf.mxu0
  %v1334 = vadd.f32 %v1315, %v1333
  %v1335 = vpop.f32.mrf.mxu0
  %v1336 = vadd.f32 %v1317, %v1335
  %1337 = vdwg.mxu0
  %1338 = vmatpush.bf16.msra.mxu0 %v828
  %1339 = vmatpush.bf16.msra.mxu0 %v823
  %1340 = vmatpush.bf16.msra.mxu0 %v818
  %1341 = vmatpush.bf16.msra.mxu0 %v813
  %1342 = vmatpush.bf16.msra.mxu0 %v808
  %1343 = vmatpush.bf16.msra.mxu0 %v803
  %1344 = vmatpush.bf16.msra.mxu0 %v798
  %1345 = vmatpush.bf16.msra.mxu0 %v793
  %1346 = vmatmul.bf16.gmra.mxu0 %v262
  %v1347 = vpop.f32.mrf.mxu0
  %v1348 = vadd.f32 %v221, %v1347
  %v1349 = vpop.f32.mrf.mxu0
  %v1350 = vadd.f32 %v226, %v1349
  %1351 = vmatmul.bf16.gmra.mxu0 %v266
  %v1352 = vpop.f32.mrf.mxu0
  %v1353 = vadd.f32 %v231, %v1352
  %v1354 = vpop.f32.mrf.mxu0
  %v1355 = vadd.f32 %v236, %v1354
  %1356 = vdwg.mxu0
  %1357 = vmatpush.bf16.msra.mxu0 %v868
  %1358 = vmatpush.bf16.msra.mxu0 %v863
  %1359 = vmatpush.bf16.msra.mxu0 %v858
  %1360 = vmatpush.bf16.msra.mxu0 %v853
  %1361 = vmatpush.bf16.msra.mxu0 %v848
  %1362 = vmatpush.bf16.msra.mxu0 %v843
  %1363 = vmatpush.bf16.msra.mxu0 %v838
  %1364 = vmatpush.bf16.msra.mxu0 %v833
  %1365 = vmatmul.bf16.gmra.mxu0 %v263
  %v1366 = vpop.f32.mrf.mxu0
  %v1367 = vadd.f32 %v1348, %v1366
  %v1368 = vpop.f32.mrf.mxu0
  %v1369 = vadd.f32 %v1350, %v1368
  %1370 = vmatmul.bf16.gmra.mxu0 %v267
  %v1371 = vpop.f32.mrf.mxu0
  %v1372 = vadd.f32 %v1353, %v1371
  %v1373 = vpop.f32.mrf.mxu0
  %v1374 = vadd.f32 %v1355, %v1373
  %1375 = vdwg.mxu0
  %1376 = vmatpush.bf16.msra.mxu0 %v908
  %1377 = vmatpush.bf16.msra.mxu0 %v903
  %1378 = vmatpush.bf16.msra.mxu0 %v898
  %1379 = vmatpush.bf16.msra.mxu0 %v893
  %1380 = vmatpush.bf16.msra.mxu0 %v888
  %1381 = vmatpush.bf16.msra.mxu0 %v883
  %1382 = vmatpush.bf16.msra.mxu0 %v878
  %1383 = vmatpush.bf16.msra.mxu0 %v873
  %1384 = vmatmul.bf16.gmra.mxu0 %v264
  %v1385 = vpop.f32.mrf.mxu0
  %v1386 = vadd.f32 %v1367, %v1385
  %v1387 = vpop.f32.mrf.mxu0
  %v1388 = vadd.f32 %v1369, %v1387
  %1389 = vmatmul.bf16.gmra.mxu0 %v268
  %v1390 = vpop.f32.mrf.mxu0
  %v1391 = vadd.f32 %v1372, %v1390
  %v1392 = vpop.f32.mrf.mxu0
  %v1393 = vadd.f32 %v1374, %v1392
  %1394 = vdwg.mxu0
  %1395 = vmatpush.bf16.msra.mxu0 %v948
  %1396 = vmatpush.bf16.msra.mxu0 %v943
  %1397 = vmatpush.bf16.msra.mxu0 %v938
  %1398 = vmatpush.bf16.msra.mxu0 %v933
  %1399 = vmatpush.bf16.msra.mxu0 %v928
  %1400 = vmatpush.bf16.msra.mxu0 %v923
  %1401 = vmatpush.bf16.msra.mxu0 %v918
  %1402 = vmatpush.bf16.msra.mxu0 %v913
  %1403 = vmatmul.bf16.gmra.mxu0 %v265
  %v1404 = vpop.f32.mrf.mxu0
  %v1405 = vadd.f32 %v1386, %v1404
  %v1406 = vpop.f32.mrf.mxu0
  %v1407 = vadd.f32 %v1388, %v1406
  %1408 = vmatmul.bf16.gmra.mxu0 %v269
  %v1409 = vpop.f32.mrf.mxu0
  %v1410 = vadd.f32 %v1391, %v1409
  %v1411 = vpop.f32.mrf.mxu0
  %v1412 = vadd.f32 %v1393, %v1411
  %1413 = vdwg.mxu0
  %1414 = vmatpush.bf16.msra.mxu0 %v829
  %1415 = vmatpush.bf16.msra.mxu0 %v824
  %1416 = vmatpush.bf16.msra.mxu0 %v819
  %1417 = vmatpush.bf16.msra.mxu0 %v814
  %1418 = vmatpush.bf16.msra.mxu0 %v809
  %1419 = vmatpush.bf16.msra.mxu0 %v804
  %1420 = vmatpush.bf16.msra.mxu0 %v799
  %1421 = vmatpush.bf16.msra.mxu0 %v794
  %1422 = vmatmul.bf16.gmra.mxu0 %v262
  %v1423 = vpop.f32.mrf.mxu0
  %v1424 = vadd.f32 %v221, %v1423
  %v1425 = vpop.f32.mrf.mxu0
  %v1426 = vadd.f32 %v226, %v1425
  %1427 = vmatmul.bf16.gmra.mxu0 %v266
  %v1428 = vpop.f32.mrf.mxu0
  %v1429 = vadd.f32 %v231, %v1428
  %v1430 = vpop.f32.mrf.mxu0
  %v1431 = vadd.f32 %v236, %v1430
  %1432 = vdwg.mxu0
  %1433 = vmatpush.bf16.msra.mxu0 %v869
  %1434 = vmatpush.bf16.msra.mxu0 %v864
  %1435 = vmatpush.bf16.msra.mxu0 %v859
  %1436 = vmatpush.bf16.msra.mxu0 %v854
  %1437 = vmatpush.bf16.msra.mxu0 %v849
  %1438 = vmatpush.bf16.msra.mxu0 %v844
  %1439 = vmatpush.bf16.msra.mxu0 %v839
  %1440 = vmatpush.bf16.msra.mxu0 %v834
  %1441 = vmatmul.bf16.gmra.mxu0 %v263
  %v1442 = vpop.f32.mrf.mxu0
  %v1443 = vadd.f32 %v1424, %v1442
  %v1444 = vpop.f32.mrf.mxu0
  %v1445 = vadd.f32 %v1426, %v1444
  %1446 = vmatmul.bf16.gmra.mxu0 %v267
  %v1447 = vpop.f32.mrf.mxu0
  %v1448 = vadd.f32 %v1429, %v1447
  %v1449 = vpop.f32.mrf.mxu0
  %v1450 = vadd.f32 %v1431, %v1449
  %1451 = vdwg.mxu0
  %1452 = vmatpush.bf16.msra.mxu0 %v909
  %1453 = vmatpush.bf16.msra.mxu0 %v904
  %1454 = vmatpush.bf16.msra.mxu0 %v899
  %1455 = vmatpush.bf16.msra.mxu0 %v894
  %1456 = vmatpush.bf16.msra.mxu0 %v889
  %1457 = vmatpush.bf16.msra.mxu0 %v884
  %1458 = vmatpush.bf16.msra.mxu0 %v879
  %1459 = vmatpush.bf16.msra.mxu0 %v874
  %1460 = vmatmul.bf16.gmra.mxu0 %v264
  %v1461 = vpop.f32.mrf.mxu0
  %v1462 = vadd.f32 %v1443, %v1461
  %v1463 = vpop.f32.mrf.mxu0
  %v1464 = vadd.f32 %v1445, %v1463
  %1465 = vmatmul.bf16.gmra.mxu0 %v268
  %v1466 = vpop.f32.mrf.mxu0
  %v1467 = vadd.f32 %v1448, %v1466
  %v1468 = vpop.f32.mrf.mxu0
  %v1469 = vadd.f32 %v1450, %v1468
  %1470 = vdwg.mxu0
  %1471 = vmatpush.bf16.msra.mxu0 %v949
  %1472 = vmatpush.bf16.msra.mxu0 %v944
  %1473 = vmatpush.bf16.msra.mxu0 %v939
  %1474 = vmatpush.bf16.msra.mxu0 %v934
  %1475 = vmatpush.bf16.msra.mxu0 %v929
  %1476 = vmatpush.bf16.msra.mxu0 %v924
  %1477 = vmatpush.bf16.msra.mxu0 %v919
  %1478 = vmatpush.bf16.msra.mxu0 %v914
  %1479 = vmatmul.bf16.gmra.mxu0 %v265
  %v1480 = vpop.f32.mrf.mxu0
  %v1481 = vadd.f32 %v1462, %v1480
  %v1482 = vpop.f32.mrf.mxu0
  %v1483 = vadd.f32 %v1464, %v1482
  %1484 = vmatmul.bf16.gmra.mxu0 %v269
  %v1485 = vpop.f32.mrf.mxu0
  %v1486 = vadd.f32 %v1467, %v1485
  %v1487 = vpop.f32.mrf.mxu0
  %v1488 = vadd.f32 %v1469, %v1487
  %1489 = vdwg.mxu0
  %v1490 = vmax.f32 %v1177, 0.0
  %v1491 = vmax.f32 %v1253, 0.0
  %v1492 = vmax.f32 %v1329, 0.0
  %v1493 = vmax.f32 %v1405, 0.0
  %v1494 = vmax.f32 %v1481, 0.0
  %v1495 = vmax.f32 %v1179, 0.0
  %v1496 = vmax.f32 %v1255, 0.0
  %v1497 = vmax.f32 %v1331, 0.0
  %v1498 = vmax.f32 %v1407, 0.0
  %v1499 = vmax.f32 %v1483, 0.0
  %v1500 = vmax.f32 %v1182, 0.0
  %v1501 = vmax.f32 %v1258, 0.0
  %v1502 = vmax.f32 %v1334, 0.0
  %v1503 = vmax.f32 %v1410, 0.0
  %v1504 = vmax.f32 %v1486, 0.0
  %v1505 = vmax.f32 %v1184, 0.0
  %v1506 = vmax.f32 %v1260, 0.0
  %v1507 = vmax.f32 %v1336, 0.0
  %v1508 = vmax.f32 %v1412, 0.0
  %v1509 = vmax.f32 %v1488, 0.0
  %v1510 = vpack.c.bf16 %v1491, %v1490
  %v1511 = vpack.c.bf16 %v1493, %v1492
  %v1512 = vpack.c.bf16 %v1494, %v1494
  %v1513 = vpack.c.bf16 %v1496, %v1495
  %v1514 = vpack.c.bf16 %v1498, %v1497
  %v1515 = vpack.c.bf16 %v1499, %v1499
  %v1516 = vpack.c.bf16 %v1501, %v1500
  %v1517 = vpack.c.bf16 %v1503, %v1502
  %v1518 = vpack.c.bf16 %v1504, %v1504
  %v1519 = vpack.c.bf16 %v1506, %v1505
  %v1520 = vpack.c.bf16 %v1508, %v1507
  %v1521 = vpack.c.bf16 %v1509, %v1509
  %1522 = vst [vmem:[%s3] sm:$0xff] %v1510
  %1523 = vst [vmem:[%s3 + $0x8] sm:$0xff] %v1511
  %vm1524 = vcmask 388096
  %1525 = vst.msk [vmem:[%s3 + $0x10] sm:$0xf] %vm1524, %v1512
  %1526 = vst [vmem:[%s3 + $0x14] sm:$0xff] %v1513
  %1527 = vst [vmem:[%s3 + $0x1c] sm:$0xff] %v1514
  %1528 = vst.msk [vmem:[%s3 + $0x24] sm:$0xf] %vm1524, %v1515
  %1529 = vst [vmem:[%s3 + $0x28] sm:$0xff] %v1516
  %1530 = vst [vmem:[%s3 + $0x30] sm:$0xff] %v1517
  %1531 = vst.msk [vmem:[%s3 + $0x38] sm:$0xf] %vm1524, %v1518
  %1532 = vst [vmem:[%s3 + $0x3c] sm:$0xff] %v1519
  %1533 = vst [vmem:[%s3 + $0x44] sm:$0xff] %v1520
  %1534 = vst.msk [vmem:[%s3 + $0x4c] sm:$0xf] %vm1524, %v1521
  // Predicated region
  $region14: #{vanet_forward.6} parent=0 // pred_check
    _
  $region15: #{vanet_forward.6} parent=0 // pred_check_branch
    %1536 = sbr.rel (0) target = $region17
  $region16: #{vanet_forward.6} parent=0 // pred_region
    _
  $region17: #{vanet_forward.6} parent=0 // pred_fallthru
    _
  // Predicated region
  $region18: #{vanet_forward.6} parent=0 // pred_check
    _
  $region19: #{vanet_forward.6} parent=0 // pred_check_branch
    %1538 = sbr.rel (0) target = $region21
  $region20: #{vanet_forward.6} parent=0 // pred_region
    _
  $region21: #{vanet_forward.6} parent=0 // pred_fallthru
    _

// kernel: vanet_forward.7
$region0: #{vanet_forward.7}
  #allocation0 [shape = 'u32[]', space=smem, size = 0x4, offset = 0x4, fixed_abs, tag = 'smem constant byte address 0x4 - core index']
  #allocation1 [shape = 'u32[72,128]{1,0:T(1,128)}', space=vmem, size = 0x9000, scoped, tag = 'internal scratch']
  #allocation2 [shape = 'f32[2,256]{1,0:T(2,128)}', space=vmem, size = 0x800, scoped, tag = 'scratch operand']
  %s0 = inlined_call_operand.vmem [shape: bf16[2,8960], index: 0, kind: input, shape index: {}]
  %s1 = inlined_call_operand.vmem [shape: bf16[8960,256], index: 1, kind: input, shape index: {}]
  %s2 = inlined_call_operand.vmem [shape: f32[1,256], index: 2, kind: input, shape index: {}]
  %s3 = inlined_call_operand.vmem [shape: f32[256,7], index: 3, kind: input, shape index: {}]
  %s4 = inlined_call_operand.vmem [shape: f32[1,7], index: 4, kind: input, shape index: {}]
  %s5 = inlined_call_operand.hbm [shape: f32[2,6], index: 5, kind: output, shape index: {}]
  %s6 = sld [smem:[#allocation0]]
  $region57: #{vanet_forward.7} parent=0
    _
  %s8 = ssub.s32 1, %s6
  %s9 = scalar_select 0, %s8, %s6
  $region1: #{vanet_forward.7} parent=0
    #allocation3 [shape = 'u8[1024]{0}', space=vmem, size = 0x400, scoped, tag = 'output window, operand 0, single buffered']
    #allocation4 [shape = 's32[2]{0}', space=sflag, size = 0x8, scoped, tag = 'scoped memory for vanet_forward.7']
    %10 = vsyncpa [#allocation4], 0
    loop: start=0, step=1, limit=7
    $region2: #{vanet_forward.7} parent=1 // loop_pre_header
      _
    $region3: #{vanet_forward.7} parent=1 // loop_header
      %s12 = sphi 0, %s16
      %p13 = scmp.ge.s32.totalorder %s12, 7
      %s22 = sphi 0, %s24
      %s25 = sphi 0, %s22
      %s26 = sphi 0, %s25
      %s42 = sphi 0, %s26
      %s48 = sphi 0, %s50
      %s51 = sphi 0, %s48
      %s52 = sphi 0, %s51
      %s68 = sphi 0, %s52
      %s72 = sphi 0, %s72
      %s74 = sphi 0, %s72
      %s75 = sphi 0, %s74
      %s89 = sphi 0, %s75
      %s93 = sphi 0, %s93
      %s95 = sphi 0, %s93
      %s96 = sphi 0, %s95
      %s110 = sphi 0, %s96
      %s114 = sphi 0, %s114
      %s116 = sphi 0, %s114
      %s117 = sphi 0, %s116
      %s131 = sphi 0, %s117
      %s135 = sphi 0, %s135
      %s137 = sphi 0, %s135
      %s138 = sphi 0, %s137
      %s152 = sphi 0, %s138
    $region4: #{vanet_forward.7} parent=1 // loop_header_branch
      %15 = sbr.rel (%p13) target = $region8
    $region5: #{vanet_forward.7} parent=1 // loop_body
      %s17 = ssub.s32 %s12, 1
      %s18 = ssub.s32 %s12, 2
      %s19 = sadd.s32 %s12, 1
      %s20 = ssub.s32 %s12, %s19
      %p21 = scmp.eq.s32.totalorder %s20, 0
      %s23 = sadd.s32 %s22, 1
      %s24 = scalar_select %p21, %s22, %s23
      %p27 = pneg %p21
      %p28 = scmp.eq.s32.totalorder %s12, 4
      %p29 = por %p27, %p28
      %p30 = scmp.ne.s32.totalorder %s22, %s25
      %p31 = scmp.eq.s32.totalorder %s12, 0
      %p32 = por %p30, %p31
      %p33 = scmp.ne.s32.totalorder %s22, %s25
      %p34 = scmp.eq.s32.totalorder %s17, 4
      %p35 = por %p33, %p34
      %p36 = scmp.ne.s32.totalorder %s25, %s26
      %p37 = scmp.eq.s32.totalorder %s17, 0
      %p38 = por %p36, %p37
      %p39 = scmp.ne.s32.totalorder %s25, %s26
      %p40 = scmp.eq.s32.totalorder %s18, 4
      %p41 = por %p39, %p40
      %p43 = scmp.ne.s32.totalorder %s26, %s42
      %p44 = scmp.eq.s32.totalorder %s18, 0
      %p45 = por %p43, %p44
      %s46 = ssub.s32 %s12, %s19
      %p47 = scmp.eq.s32.totalorder %s46, 0
      %s49 = sadd.s32 %s48, 1
      %s50 = scalar_select %p47, %s48, %s49
      %p53 = pneg %p47
      %p54 = scmp.eq.s32.totalorder %s12, 4
      %p55 = por %p53, %p54
      %p56 = scmp.ne.s32.totalorder %s48, %s51
      %p57 = scmp.eq.s32.totalorder %s12, 0
      %p58 = por %p56, %p57
      %p59 = scmp.ne.s32.totalorder %s48, %s51
      %p60 = scmp.eq.s32.totalorder %s17, 4
      %p61 = por %p59, %p60
      %p62 = scmp.ne.s32.totalorder %s51, %s52
      %p63 = scmp.eq.s32.totalorder %s17, 0
      %p64 = por %p62, %p63
      %p65 = scmp.ne.s32.totalorder %s51, %s52
      %p66 = scmp.eq.s32.totalorder %s18, 4
      %p67 = por %p65, %p66
      %p69 = scmp.ne.s32.totalorder %s52, %s68
      %p70 = scmp.eq.s32.totalorder %s18, 0
      %p71 = por %p69, %p70
      %s73 = sadd.s32 %s72, 1
      %p76 = scmp.eq.s32.totalorder %s12, 4
      %p77 = scmp.ne.s32.totalorder %s72, %s74
      %p78 = scmp.eq.s32.totalorder %s12, 0
      %p79 = por %p77, %p78
      %p80 = scmp.ne.s32.totalorder %s72, %s74
      %p81 = scmp.eq.s32.totalorder %s17, 4
      %p82 = por %p80, %p81
      %p83 = scmp.ne.s32.totalorder %s74, %s75
      %p84 = scmp.eq.s32.totalorder %s17, 0
      %p85 = por %p83, %p84
      %p86 = scmp.ne.s32.totalorder %s74, %s75
      %p87 = scmp.eq.s32.totalorder %s18, 4
      %p88 = por %p86, %p87
      %p90 = scmp.ne.s32.totalorder %s75, %s89
      %p91 = scmp.eq.s32.totalorder %s18, 0
      %p92 = por %p90, %p91
      %s94 = sadd.s32 %s93, 1
      %p97 = scmp.eq.s32.totalorder %s12, 4
      %p98 = scmp.ne.s32.totalorder %s93, %s95
      %p99 = scmp.eq.s32.totalorder %s12, 0
      %p100 = por %p98, %p99
      %p101 = scmp.ne.s32.totalorder %s93, %s95
      %p102 = scmp.eq.s32.totalorder %s17, 4
      %p103 = por %p101, %p102
      %p104 = scmp.ne.s32.totalorder %s95, %s96
      %p105 = scmp.eq.s32.totalorder %s17, 0
      %p106 = por %p104, %p105
      %p107 = scmp.ne.s32.totalorder %s95, %s96
      %p108 = scmp.eq.s32.totalorder %s18, 4
      %p109 = por %p107, %p108
      %p111 = scmp.ne.s32.totalorder %s96, %s110
      %p112 = scmp.eq.s32.totalorder %s18, 0
      %p113 = por %p111, %p112
      %s115 = sadd.s32 %s114, 1
      %p118 = scmp.eq.s32.totalorder %s12, 4
      %p119 = scmp.ne.s32.totalorder %s114, %s116
      %p120 = scmp.eq.s32.totalorder %s12, 0
      %p121 = por %p119, %p120
      %p122 = scmp.ne.s32.totalorder %s114, %s116
      %p123 = scmp.eq.s32.totalorder %s17, 4
      %p124 = por %p122, %p123
      %p125 = scmp.ne.s32.totalorder %s116, %s117
      %p126 = scmp.eq.s32.totalorder %s17, 0
      %p127 = por %p125, %p126
      %p128 = scmp.ne.s32.totalorder %s116, %s117
      %p129 = scmp.eq.s32.totalorder %s18, 4
      %p130 = por %p128, %p129
      %p132 = scmp.ne.s32.totalorder %s117, %s131
      %p133 = scmp.eq.s32.totalorder %s18, 0
      %p134 = por %p132, %p133
      %s136 = sadd.s32 %s135, 1
      %p139 = scmp.eq.s32.totalorder %s12, 4
      %p140 = scmp.ne.s32.totalorder %s135, %s137
      %p141 = scmp.eq.s32.totalorder %s12, 0
      %p142 = por %p140, %p141
      %p143 = scmp.ne.s32.totalorder %s135, %s137
      %p144 = scmp.eq.s32.totalorder %s17, 4
      %p145 = por %p143, %p144
      %p146 = scmp.ne.s32.totalorder %s137, %s138
      %p147 = scmp.eq.s32.totalorder %s17, 0
      %p148 = por %p146, %p147
      %p149 = scmp.ne.s32.totalorder %s137, %s138
      %p150 = scmp.eq.s32.totalorder %s18, 4
      %p151 = por %p149, %p150
      %p153 = scmp.ne.s32.totalorder %s138, %s152
      %p154 = scmp.eq.s32.totalorder %s18, 0
      %p155 = por %p153, %p154
      %p156 = scmp.le.s32.totalorder 1, %s12
      %p157 = scmp.lt.s32.totalorder %s12, 6
      %p158 = pnand %p156, %p157
      %p159 = pneg %p158
      // Predicated region
      $region9: #{vanet_forward.7} parent=5 // pred_check
        _
      $region10: #{vanet_forward.7} parent=5 // pred_check_branch
        %161 = sbr.rel (%p158) target = $region12
      $region11: #{vanet_forward.7} parent=5 // pred_region
        %s162 = ssub.s32 %s12, 1
        // Predicated region
        $region13: #{vanet_forward.7} parent=11 // pred_check
          %p163 = pneg %p85
        $region14: #{vanet_forward.7} parent=11 // pred_check_branch
          %165 = sbr.rel (%p163) target = $region16
        $region15: #{vanet_forward.7} parent=11 // pred_region
          _
        $region16: #{vanet_forward.7} parent=11 // pred_fallthru
          _
        // Predicated region
        $region17: #{vanet_forward.7} parent=11 // pred_check
          %p166 = pneg %p106
        $region18: #{vanet_forward.7} parent=11 // pred_check_branch
          %168 = sbr.rel (%p166) target = $region20
        $region19: #{vanet_forward.7} parent=11 // pred_region
          _
        $region20: #{vanet_forward.7} parent=11 // pred_fallthru
          _
        // Predicated region
        $region21: #{vanet_forward.7} parent=11 // pred_check
          %p169 = pneg %p127
        $region22: #{vanet_forward.7} parent=11 // pred_check_branch
          %171 = sbr.rel (%p169) target = $region24
        $region23: #{vanet_forward.7} parent=11 // pred_region
          _
        $region24: #{vanet_forward.7} parent=11 // pred_fallthru
          _
      $region12: #{vanet_forward.7} parent=5 // pred_fallthru
        _
      %p172 = scmp.lt.s32.totalorder %s12, 5
      // Predicated region
      $region25: #{vanet_forward.7} parent=5 // pred_check
        %p173 = pneg %p172
      $region26: #{vanet_forward.7} parent=5 // pred_check_branch
        %175 = sbr.rel (%p173) target = $region28
      $region27: #{vanet_forward.7} parent=5 // pred_region
        // Predicated region
        $region29: #{vanet_forward.7} parent=27 // pred_check
          %p176 = pneg %p32
        $region30: #{vanet_forward.7} parent=27 // pred_check_branch
          %178 = sbr.rel (%p176) target = $region32
        $region31: #{vanet_forward.7} parent=27 // pred_region
          %s179 = smul.u32 14, %s12
          %p180 = scmp.lt.s32.totalorder %s179, 69
          %s181 = scalar_select %p180, %s179, 69
          %s182 = scalar_lea.vmem %s0, %s181
          %s183 = smul.u32 14, %s12
        $region32: #{vanet_forward.7} parent=27 // pred_fallthru
          _
        // Predicated region
        $region33: #{vanet_forward.7} parent=27 // pred_check
          %p184 = pneg %p58
        $region34: #{vanet_forward.7} parent=27 // pred_check_branch
          %186 = sbr.rel (%p184) target = $region36
        $region35: #{vanet_forward.7} parent=27 // pred_region
          %s187 = smul.u32 224, %s12
          %p188 = scmp.lt.s32.totalorder %s187, 1119
          %s189 = scalar_select %p188, %s187, 1119
          %s190 = smul.addr %s189, 2
          %s191 = smul.addr %s190, 4
          %s192 = scalar_lea.vmem %s1, %s191
          %s193 = smul.u32 224, %s12
        $region36: #{vanet_forward.7} parent=27 // pred_fallthru
          _
      $region28: #{vanet_forward.7} parent=5 // pred_fallthru
        _
      %p194 = scmp.le.s32.totalorder 1, %s12
      %p195 = scmp.lt.s32.totalorder %s12, 6
      %p196 = pnand %p194, %p195
      %p197 = pneg %p196
      // Predicated region
      $region37: #{vanet_forward.7} parent=5 // pred_check
        _
      $region38: #{vanet_forward.7} parent=5 // pred_check_branch
        %199 = sbr.rel (%p196) target = $region40
      $region39: #{vanet_forward.7} parent=5 // pred_region
        %s200 = ssub.s32 %s12, 1
        %s201 = smul.u32 14, %s17
        %p202 = scmp.lt.s32.totalorder %s201, 69
        %s203 = scalar_select %p202, %s201, 69
        %s204 = scalar_lea.vmem %s0, %s203
        %p205 = pneg %p38
        %p206 = pneg %p35
        %s207 = smul.u32 224, %s17
        %p208 = scmp.lt.s32.totalorder %s207, 1119
        %s209 = scalar_select %p208, %s207, 1119
        %s210 = smul.addr %s209, 2
        %s211 = smul.addr %s210, 4
        %s212 = scalar_lea.vmem %s1, %s211
        %p213 = pneg %p64
        %p214 = pneg %p61
        %p215 = pneg %p85
        %p216 = pneg %p82
        %p217 = pneg %p106
        %p218 = pneg %p103
        %p219 = pneg %p127
        %p220 = pneg %p124
        %p221 = pneg %p148
        %p222 = pneg %p145
        %s223 = smul.u32 14, %s17
        %p224 = scmp.lt.s32.totalorder %s223, 69
        %s225 = scalar_select %p224, %s223, 69
        %s226 = scalar_lea.vmem %s0, %s225
        %s227 = smul.u32 14, %s17
        %s228 = smul.u32 224, %s17
        %p229 = scmp.lt.s32.totalorder %s228, 1119
        %s230 = scalar_select %p229, %s228, 1119
        %s231 = smul.addr %s230, 2
        %s232 = smul.addr %s231, 4
        %s233 = scalar_lea.vmem %s1, %s232
        %s234 = smul.u32 224, %s17
        %p235 = scmp.eq.s32.totalorder %s17, 0
        // Predicated region
        $region41: #{vanet_forward.7} parent=39 // pred_check
          %p236 = pneg %p235
        $region42: #{vanet_forward.7} parent=39 // pred_check_branch
          %238 = sbr.rel (%p236) target = $region44
        $region43: #{vanet_forward.7} parent=39 // pred_region
          %239 = vst [vmem:[#allocation2] sm:$0xf] 0.0
        $region44: #{vanet_forward.7} parent=39 // pred_fallthru
          _
        %v240 = vld [vmem:[#allocation2] sm:$0xf]
        %v241 = vld [vmem:[%s226] sm:$0xff]
        %v242 = vld [vmem:[%s226 + $0x8] sm:$0x3f]
        %v243 = vld [vmem:[%s233] sm:$0xff]
        %v244 = vld [vmem:[%s233 + $0x8] sm:$0xff]
        %v245 = vld [vmem:[%s233 + $0x10] sm:$0xff]
        %v246 = vld [vmem:[%s233 + $0x18] sm:$0xff]
        %v247 = vld [vmem:[%s233 + $0x20] sm:$0xff]
        %v248 = vld [vmem:[%s233 + $0x28] sm:$0xff]
        %v249 = vld [vmem:[%s233 + $0x30] sm:$0xff]
        %v250 = vld [vmem:[%s233 + $0x38] sm:$0xff]
        %v251 = vld [vmem:[%s233 + $0x40] sm:$0xff]
        %v252 = vld [vmem:[%s233 + $0x48] sm:$0xff]
        %v253 = vld [vmem:[%s233 + $0x50] sm:$0xff]
        %v254 = vld [vmem:[%s233 + $0x58] sm:$0xff]
        %v255 = vld [vmem:[%s233 + $0x60] sm:$0xff]
        %v256 = vld [vmem:[%s233 + $0x68] sm:$0xff]
        %v257 = vld [vmem:[%s233 + $0x70] sm:$0xff]
        %v258 = vld [vmem:[%s233 + $0x78] sm:$0xff]
        %v259 = vld [vmem:[%s233 + $0x80] sm:$0xff]
        %v260 = vld [vmem:[%s233 + $0x88] sm:$0xff]
        %v261 = vld [vmem:[%s233 + $0x90] sm:$0xff]
        %v262 = vld [vmem:[%s233 + $0x98] sm:$0xff]
        %v263 = vld [vmem:[%s233 + $0xa0] sm:$0xff]
        %v264 = vld [vmem:[%s233 + $0xa8] sm:$0xff]
        %v265 = vld [vmem:[%s233 + $0xb0] sm:$0xff]
        %v266 = vld [vmem:[%s233 + $0xb8] sm:$0xff]
        %v267 = vld [vmem:[%s233 + $0xc0] sm:$0xff]
        %v268 = vld [vmem:[%s233 + $0xc8] sm:$0xff]
        %v269 = vld [vmem:[%s233 + $0xd0] sm:$0xff]
        %v270 = vld [vmem:[%s233 + $0xd8] sm:$0xff]
        %v271 = vld [vmem:[%s233 + $0xe0] sm:$0xff]
        %v272 = vld [vmem:[%s233 + $0xe8] sm:$0xff]
        %v273 = vld [vmem:[%s233 + $0xf0] sm:$0xff]
        %v274 = vld [vmem:[%s233 + $0xf8] sm:$0xff]
        %v275 = vld [vmem:[%s233 + $0x100] sm:$0xff]
        %v276 = vld [vmem:[%s233 + $0x108] sm:$0xff]
        %v277 = vld [vmem:[%s233 + $0x110] sm:$0xff]
        %v278 = vld [vmem:[%s233 + $0x118] sm:$0xff]
        %v279 = vld [vmem:[%s233 + $0x120] sm:$0xff]
        %v280 = vld [vmem:[%s233 + $0x128] sm:$0xff]
        %v281 = vld [vmem:[%s233 + $0x130] sm:$0xff]
        %v282 = vld [vmem:[%s233 + $0x138] sm:$0xff]
        %v283 = vld [vmem:[%s233 + $0x140] sm:$0xff]
        %v284 = vld [vmem:[%s233 + $0x148] sm:$0xff]
        %v285 = vld [vmem:[%s233 + $0x150] sm:$0xff]
        %v286 = vld [vmem:[%s233 + $0x158] sm:$0xff]
        %v287 = vld [vmem:[%s233 + $0x160] sm:$0xff]
        %v288 = vld [vmem:[%s233 + $0x168] sm:$0xff]
        %v289 = vld [vmem:[%s233 + $0x170] sm:$0xff]
        %v290 = vld [vmem:[%s233 + $0x178] sm:$0xff]
        %v291 = vld [vmem:[%s233 + $0x180] sm:$0xff]
        %v292 = vld [vmem:[%s233 + $0x188] sm:$0xff]
        %v293 = vld [vmem:[%s233 + $0x190] sm:$0xff]
        %v294 = vld [vmem:[%s233 + $0x198] sm:$0xff]
        %v295 = vld [vmem:[%s233 + $0x1a0] sm:$0xff]
        %v296 = vld [vmem:[%s233 + $0x1a8] sm:$0xff]
        %v297 = vld [vmem:[%s233 + $0x1b0] sm:$0xff]
        %v298 = vld [vmem:[%s233 + $0x1b8] sm:$0xff]
        %v299 = vld [vmem:[%s233 + $0x1c0] sm:$0xff]
        %v300 = vld [vmem:[%s233 + $0x1c8] sm:$0xff]
        %v301 = vld [vmem:[%s233 + $0x1d0] sm:$0xff]
        %v302 = vld [vmem:[%s233 + $0x1d8] sm:$0xff]
        %v303 = vld [vmem:[%s233 + $0x1e0] sm:$0xff]
        %v304 = vld [vmem:[%s233 + $0x1e8] sm:$0xff]
        %v305 = vld [vmem:[%s233 + $0x1f0] sm:$0xff]
        %v306 = vld [vmem:[%s233 + $0x1f8] sm:$0xff]
        %v307 = vld [vmem:[%s233 + $0x200] sm:$0xff]
        %v308 = vld [vmem:[%s233 + $0x208] sm:$0xff]
        %v309 = vld [vmem:[%s233 + $0x210] sm:$0xff]
        %v310 = vld [vmem:[%s233 + $0x218] sm:$0xff]
        %v311 = vld [vmem:[%s233 + $0x220] sm:$0xff]
        %v312 = vld [vmem:[%s233 + $0x228] sm:$0xff]
        %v313 = vld [vmem:[%s233 + $0x230] sm:$0xff]
        %v314 = vld [vmem:[%s233 + $0x238] sm:$0xff]
        %v315 = vld [vmem:[%s233 + $0x240] sm:$0xff]
        %v316 = vld [vmem:[%s233 + $0x248] sm:$0xff]
        %v317 = vld [vmem:[%s233 + $0x250] sm:$0xff]
        %v318 = vld [vmem:[%s233 + $0x258] sm:$0xff]
        %v319 = vld [vmem:[%s233 + $0x260] sm:$0xff]
        %v320 = vld [vmem:[%s233 + $0x268] sm:$0xff]
        %v321 = vld [vmem:[%s233 + $0x270] sm:$0xff]
        %v322 = vld [vmem:[%s233 + $0x278] sm:$0xff]
        %v323 = vld [vmem:[%s233 + $0x280] sm:$0xff]
        %v324 = vld [vmem:[%s233 + $0x288] sm:$0xff]
        %v325 = vld [vmem:[%s233 + $0x290] sm:$0xff]
        %v326 = vld [vmem:[%s233 + $0x298] sm:$0xff]
        %v327 = vld [vmem:[%s233 + $0x2a0] sm:$0xff]
        %v328 = vld [vmem:[%s233 + $0x2a8] sm:$0xff]
        %v329 = vld [vmem:[%s233 + $0x2b0] sm:$0xff]
        %v330 = vld [vmem:[%s233 + $0x2b8] sm:$0xff]
        %v331 = vld [vmem:[%s233 + $0x2c0] sm:$0xff]
        %v332 = vld [vmem:[%s233 + $0x2c8] sm:$0xff]
        %v333 = vld [vmem:[%s233 + $0x2d0] sm:$0xff]
        %v334 = vld [vmem:[%s233 + $0x2d8] sm:$0xff]
        %v335 = vld [vmem:[%s233 + $0x2e0] sm:$0xff]
        %v336 = vld [vmem:[%s233 + $0x2e8] sm:$0xff]
        %v337 = vld [vmem:[%s233 + $0x2f0] sm:$0xff]
        %v338 = vld [vmem:[%s233 + $0x2f8] sm:$0xff]
        %v339 = vld [vmem:[%s233 + $0x300] sm:$0xff]
        %v340 = vld [vmem:[%s233 + $0x308] sm:$0xff]
        %v341 = vld [vmem:[%s233 + $0x310] sm:$0xff]
        %v342 = vld [vmem:[%s233 + $0x318] sm:$0xff]
        %v343 = vld [vmem:[%s233 + $0x320] sm:$0xff]
        %v344 = vld [vmem:[%s233 + $0x328] sm:$0xff]
        %v345 = vld [vmem:[%s233 + $0x330] sm:$0xff]
        %v346 = vld [vmem:[%s233 + $0x338] sm:$0xff]
        %v347 = vld [vmem:[%s233 + $0x340] sm:$0xff]
        %v348 = vld [vmem:[%s233 + $0x348] sm:$0xff]
        %v349 = vld [vmem:[%s233 + $0x350] sm:$0xff]
        %v350 = vld [vmem:[%s233 + $0x358] sm:$0xff]
        %v351 = vld [vmem:[%s233 + $0x360] sm:$0xff]
        %v352 = vld [vmem:[%s233 + $0x368] sm:$0xff]
        %v353 = vld [vmem:[%s233 + $0x370] sm:$0xff]
        %v354 = vld [vmem:[%s233 + $0x378] sm:$0xff]
        %v355 = vld [vmem:[%s233 + $0x380] sm:$0xff]
        %v356 = vld [vmem:[%s233 + $0x388] sm:$0xff]
        %v357 = vld [vmem:[%s233 + $0x390] sm:$0xff]
        %v358 = vld [vmem:[%s233 + $0x398] sm:$0xff]
        %v359 = vld [vmem:[%s233 + $0x3a0] sm:$0xff]
        %v360 = vld [vmem:[%s233 + $0x3a8] sm:$0xff]
        %v361 = vld [vmem:[%s233 + $0x3b0] sm:$0xff]
        %v362 = vld [vmem:[%s233 + $0x3b8] sm:$0xff]
        %v363 = vld [vmem:[%s233 + $0x3c0] sm:$0xff]
        %v364 = vld [vmem:[%s233 + $0x3c8] sm:$0xff]
        %v365 = vld [vmem:[%s233 + $0x3d0] sm:$0xff]
        %v366 = vld [vmem:[%s233 + $0x3d8] sm:$0xff]
        %v367 = vld [vmem:[%s233 + $0x3e0] sm:$0xff]
        %v368 = vld [vmem:[%s233 + $0x3e8] sm:$0xff]
        %v369 = vld [vmem:[%s233 + $0x3f0] sm:$0xff]
        %v370 = vld [vmem:[%s233 + $0x3f8] sm:$0xff]
        %v371 = vld [vmem:[%s233 + $0x400] sm:$0xff]
        %v372 = vld [vmem:[%s233 + $0x408] sm:$0xff]
        %v373 = vld [vmem:[%s233 + $0x410] sm:$0xff]
        %v374 = vld [vmem:[%s233 + $0x418] sm:$0xff]
        %v375 = vld [vmem:[%s233 + $0x420] sm:$0xff]
        %v376 = vld [vmem:[%s233 + $0x428] sm:$0xff]
        %v377 = vld [vmem:[%s233 + $0x430] sm:$0xff]
        %v378 = vld [vmem:[%s233 + $0x438] sm:$0xff]
        %v379 = vld [vmem:[%s233 + $0x440] sm:$0xff]
        %v380 = vld [vmem:[%s233 + $0x448] sm:$0xff]
        %v381 = vld [vmem:[%s233 + $0x450] sm:$0xff]
        %v382 = vld [vmem:[%s233 + $0x458] sm:$0xff]
        %v383 = vld [vmem:[%s233 + $0x460] sm:$0xff]
        %v384 = vld [vmem:[%s233 + $0x468] sm:$0xff]
        %v385 = vld [vmem:[%s233 + $0x470] sm:$0xff]
        %v386 = vld [vmem:[%s233 + $0x478] sm:$0xff]
        %v387 = vld [vmem:[%s233 + $0x480] sm:$0xff]
        %v388 = vld [vmem:[%s233 + $0x488] sm:$0xff]
        %v389 = vld [vmem:[%s233 + $0x490] sm:$0xff]
        %v390 = vld [vmem:[%s233 + $0x498] sm:$0xff]
        %v391 = vld [vmem:[%s233 + $0x4a0] sm:$0xff]
        %v392 = vld [vmem:[%s233 + $0x4a8] sm:$0xff]
        %v393 = vld [vmem:[%s233 + $0x4b0] sm:$0xff]
        %v394 = vld [vmem:[%s233 + $0x4b8] sm:$0xff]
        %v395 = vld [vmem:[%s233 + $0x4c0] sm:$0xff]
        %v396 = vld [vmem:[%s233 + $0x4c8] sm:$0xff]
        %v397 = vld [vmem:[%s233 + $0x4d0] sm:$0xff]
        %v398 = vld [vmem:[%s233 + $0x4d8] sm:$0xff]
        %v399 = vld [vmem:[%s233 + $0x4e0] sm:$0xff]
        %v400 = vld [vmem:[%s233 + $0x4e8] sm:$0xff]
        %v401 = vld [vmem:[%s233 + $0x4f0] sm:$0xff]
        %v402 = vld [vmem:[%s233 + $0x4f8] sm:$0xff]
        %v403 = vld [vmem:[%s233 + $0x500] sm:$0xff]
        %v404 = vld [vmem:[%s233 + $0x508] sm:$0xff]
        %v405 = vld [vmem:[%s233 + $0x510] sm:$0xff]
        %v406 = vld [vmem:[%s233 + $0x518] sm:$0xff]
        %v407 = vld [vmem:[%s233 + $0x520] sm:$0xff]
        %v408 = vld [vmem:[%s233 + $0x528] sm:$0xff]
        %v409 = vld [vmem:[%s233 + $0x530] sm:$0xff]
        %v410 = vld [vmem:[%s233 + $0x538] sm:$0xff]
        %v411 = vld [vmem:[%s233 + $0x540] sm:$0xff]
        %v412 = vld [vmem:[%s233 + $0x548] sm:$0xff]
        %v413 = vld [vmem:[%s233 + $0x550] sm:$0xff]
        %v414 = vld [vmem:[%s233 + $0x558] sm:$0xff]
        %v415 = vld [vmem:[%s233 + $0x560] sm:$0xff]
        %v416 = vld [vmem:[%s233 + $0x568] sm:$0xff]
        %v417 = vld [vmem:[%s233 + $0x570] sm:$0xff]
        %v418 = vld [vmem:[%s233 + $0x578] sm:$0xff]
        %v419 = vld [vmem:[%s233 + $0x580] sm:$0xff]
        %v420 = vld [vmem:[%s233 + $0x588] sm:$0xff]
        %v421 = vld [vmem:[%s233 + $0x590] sm:$0xff]
        %v422 = vld [vmem:[%s233 + $0x598] sm:$0xff]
        %v423 = vld [vmem:[%s233 + $0x5a0] sm:$0xff]
        %v424 = vld [vmem:[%s233 + $0x5a8] sm:$0xff]
        %v425 = vld [vmem:[%s233 + $0x5b0] sm:$0xff]
        %v426 = vld [vmem:[%s233 + $0x5b8] sm:$0xff]
        %v427 = vld [vmem:[%s233 + $0x5c0] sm:$0xff]
        %v428 = vld [vmem:[%s233 + $0x5c8] sm:$0xff]
        %v429 = vld [vmem:[%s233 + $0x5d0] sm:$0xff]
        %v430 = vld [vmem:[%s233 + $0x5d8] sm:$0xff]
        %v431 = vld [vmem:[%s233 + $0x5e0] sm:$0xff]
        %v432 = vld [vmem:[%s233 + $0x5e8] sm:$0xff]
        %v433 = vld [vmem:[%s233 + $0x5f0] sm:$0xff]
        %v434 = vld [vmem:[%s233 + $0x5f8] sm:$0xff]
        %v435 = vld [vmem:[%s233 + $0x600] sm:$0xff]
        %v436 = vld [vmem:[%s233 + $0x608] sm:$0xff]
        %v437 = vld [vmem:[%s233 + $0x610] sm:$0xff]
        %v438 = vld [vmem:[%s233 + $0x618] sm:$0xff]
        %v439 = vld [vmem:[%s233 + $0x620] sm:$0xff]
        %v440 = vld [vmem:[%s233 + $0x628] sm:$0xff]
        %v441 = vld [vmem:[%s233 + $0x630] sm:$0xff]
        %v442 = vld [vmem:[%s233 + $0x638] sm:$0xff]
        %v443 = vld [vmem:[%s233 + $0x640] sm:$0xff]
        %v444 = vld [vmem:[%s233 + $0x648] sm:$0xff]
        %v445 = vld [vmem:[%s233 + $0x650] sm:$0xff]
        %v446 = vld [vmem:[%s233 + $0x658] sm:$0xff]
        %v447 = vld [vmem:[%s233 + $0x660] sm:$0xff]
        %v448 = vld [vmem:[%s233 + $0x668] sm:$0xff]
        %v449 = vld [vmem:[%s233 + $0x670] sm:$0xff]
        %v450 = vld [vmem:[%s233 + $0x678] sm:$0xff]
        %v451 = vld [vmem:[%s233 + $0x680] sm:$0xff]
        %v452 = vld [vmem:[%s233 + $0x688] sm:$0xff]
        %v453 = vld [vmem:[%s233 + $0x690] sm:$0xff]
        %v454 = vld [vmem:[%s233 + $0x698] sm:$0xff]
        %v455 = vld [vmem:[%s233 + $0x6a0] sm:$0xff]
        %v456 = vld [vmem:[%s233 + $0x6a8] sm:$0xff]
        %v457 = vld [vmem:[%s233 + $0x6b0] sm:$0xff]
        %v458 = vld [vmem:[%s233 + $0x6b8] sm:$0xff]
        %v459 = vld [vmem:[%s233 + $0x6c0] sm:$0xff]
        %v460 = vld [vmem:[%s233 + $0x6c8] sm:$0xff]
        %v461 = vld [vmem:[%s233 + $0x6d0] sm:$0xff]
        %v462 = vld [vmem:[%s233 + $0x6d8] sm:$0xff]
        %v463 = vld [vmem:[%s233 + $0x6e0] sm:$0xff]
        %v464 = vld [vmem:[%s233 + $0x6e8] sm:$0xff]
        %v465 = vld [vmem:[%s233 + $0x6f0] sm:$0xff]
        %v466 = vld [vmem:[%s233 + $0x6f8] sm:$0xff]
        %468 = vst [vmem:[#allocation1] ss:$9 sm:$0xff] %v241
        %v469 = vld [vmem:[#allocation1] sm:$0xff]
        %v470 = vld [vmem:[#allocation1 + $0x9] sm:$0xff]
        %v471 = vld [vmem:[#allocation1 + $0x12] sm:$0xff]
        %v472 = vld [vmem:[#allocation1 + $0x1b] sm:$0xff]
        %v473 = vld [vmem:[#allocation1 + $0x24] sm:$0xff]
        %v474 = vld [vmem:[#allocation1 + $0x2d] sm:$0xff]
        %v475 = vld [vmem:[#allocation1 + $0x36] sm:$0xff]
        %v476 = vld [vmem:[#allocation1 + $0x3f] sm:$0xff]
        %478 = vst [vmem:[#allocation1] ss:$9 sm:$0xff] %v242
        %v479 = vld [vmem:[#allocation1] sm:$0xff]
        %v480 = vld [vmem:[#allocation1 + $0x9] sm:$0xff]
        %v481 = vld [vmem:[#allocation1 + $0x12] sm:$0xff]
        %v482 = vld [vmem:[#allocation1 + $0x1b] sm:$0xff]
        %v483 = vld [vmem:[#allocation1 + $0x24] sm:$0xff]
        %v484 = vld [vmem:[#allocation1 + $0x2d] sm:$0xff]
        %v723 = vunpack.c.l.b16 %v243
        %v724 = vunpack.c.h.b16 %v243
        %v725 = vunpack.c.l.b16 %v244
        %v726 = vunpack.c.h.b16 %v244
        %v727 = vunpack.c.l.b16 %v245
        %v728 = vunpack.c.h.b16 %v245
        %v729 = vunpack.c.l.b16 %v246
        %v730 = vunpack.c.h.b16 %v246
        %v731 = vunpack.c.l.b16 %v247
        %v732 = vunpack.c.h.b16 %v247
        %v733 = vunpack.c.l.b16 %v248
        %v734 = vunpack.c.h.b16 %v248
        %v735 = vunpack.c.l.b16 %v249
        %v736 = vunpack.c.h.b16 %v249
        %v737 = vunpack.c.l.b16 %v250
        %v738 = vunpack.c.h.b16 %v250
        %v739 = vunpack.c.l.b16 %v251
        %v740 = vunpack.c.h.b16 %v251
        %v741 = vunpack.c.l.b16 %v252
        %v742 = vunpack.c.h.b16 %v252
        %v743 = vunpack.c.l.b16 %v253
        %v744 = vunpack.c.h.b16 %v253
        %v745 = vunpack.c.l.b16 %v254
        %v746 = vunpack.c.h.b16 %v254
        %v747 = vunpack.c.l.b16 %v255
        %v748 = vunpack.c.h.b16 %v255
        %v749 = vunpack.c.l.b16 %v256
        %v750 = vunpack.c.h.b16 %v256
        %v751 = vunpack.c.l.b16 %v257
        %v752 = vunpack.c.h.b16 %v257
        %v753 = vunpack.c.l.b16 %v258
        %v754 = vunpack.c.h.b16 %v258
        %v755 = vunpack.c.l.b16 %v259
        %v756 = vunpack.c.h.b16 %v259
        %v757 = vunpack.c.l.b16 %v260
        %v758 = vunpack.c.h.b16 %v260
        %v759 = vunpack.c.l.b16 %v261
        %v760 = vunpack.c.h.b16 %v261
        %v761 = vunpack.c.l.b16 %v262
        %v762 = vunpack.c.h.b16 %v262
        %v763 = vunpack.c.l.b16 %v263
        %v764 = vunpack.c.h.b16 %v263
        %v765 = vunpack.c.l.b16 %v264
        %v766 = vunpack.c.h.b16 %v264
        %v767 = vunpack.c.l.b16 %v265
        %v768 = vunpack.c.h.b16 %v265
        %v769 = vunpack.c.l.b16 %v266
        %v770 = vunpack.c.h.b16 %v266
        %v771 = vunpack.c.l.b16 %v267
        %v772 = vunpack.c.h.b16 %v267
        %v773 = vunpack.c.l.b16 %v268
        %v774 = vunpack.c.h.b16 %v268
        %v775 = vunpack.c.l.b16 %v269
        %v776 = vunpack.c.h.b16 %v269
        %v777 = vunpack.c.l.b16 %v270
        %v778 = vunpack.c.h.b16 %v270
        %v779 = vunpack.c.l.b16 %v271
        %v780 = vunpack.c.h.b16 %v271
        %v781 = vunpack.c.l.b16 %v272
        %v782 = vunpack.c.h.b16 %v272
        %v783 = vunpack.c.l.b16 %v273
        %v784 = vunpack.c.h.b16 %v273
        %v785 = vunpack.c.l.b16 %v274
        %v786 = vunpack.c.h.b16 %v274
        %v787 = vunpack.c.l.b16 %v275
        %v788 = vunpack.c.h.b16 %v275
        %v789 = vunpack.c.l.b16 %v276
        %v790 = vunpack.c.h.b16 %v276
        %v791 = vunpack.c.l.b16 %v277
        %v792 = vunpack.c.h.b16 %v277
        %v793 = vunpack.c.l.b16 %v278
        %v794 = vunpack.c.h.b16 %v278
        %v795 = vunpack.c.l.b16 %v279
        %v796 = vunpack.c.h.b16 %v279
        %v797 = vunpack.c.l.b16 %v280
        %v798 = vunpack.c.h.b16 %v280
        %v799 = vunpack.c.l.b16 %v281
        %v800 = vunpack.c.h.b16 %v281
        %v801 = vunpack.c.l.b16 %v282
        %v802 = vunpack.c.h.b16 %v282
        %v803 = vunpack.c.l.b16 %v283
        %v804 = vunpack.c.h.b16 %v283
        %v805 = vunpack.c.l.b16 %v284
        %v806 = vunpack.c.h.b16 %v284
        %v807 = vunpack.c.l.b16 %v285
        %v808 = vunpack.c.h.b16 %v285
        %v809 = vunpack.c.l.b16 %v286
        %v810 = vunpack.c.h.b16 %v286
        %v811 = vunpack.c.l.b16 %v287
        %v812 = vunpack.c.h.b16 %v287
        %v813 = vunpack.c.l.b16 %v288
        %v814 = vunpack.c.h.b16 %v288
        %v815 = vunpack.c.l.b16 %v289
        %v816 = vunpack.c.h.b16 %v289
        %v817 = vunpack.c.l.b16 %v290
        %v818 = vunpack.c.h.b16 %v290
        %v819 = vunpack.c.l.b16 %v291
        %v820 = vunpack.c.h.b16 %v291
        %v821 = vunpack.c.l.b16 %v292
        %v822 = vunpack.c.h.b16 %v292
        %v823 = vunpack.c.l.b16 %v293
        %v824 = vunpack.c.h.b16 %v293
        %v825 = vunpack.c.l.b16 %v294
        %v826 = vunpack.c.h.b16 %v294
        %v827 = vunpack.c.l.b16 %v295
        %v828 = vunpack.c.h.b16 %v295
        %v829 = vunpack.c.l.b16 %v296
        %v830 = vunpack.c.h.b16 %v296
        %v831 = vunpack.c.l.b16 %v297
        %v832 = vunpack.c.h.b16 %v297
        %v833 = vunpack.c.l.b16 %v298
        %v834 = vunpack.c.h.b16 %v298
        %v835 = vunpack.c.l.b16 %v299
        %v836 = vunpack.c.h.b16 %v299
        %v837 = vunpack.c.l.b16 %v300
        %v838 = vunpack.c.h.b16 %v300
        %v839 = vunpack.c.l.b16 %v301
        %v840 = vunpack.c.h.b16 %v301
        %v841 = vunpack.c.l.b16 %v302
        %v842 = vunpack.c.h.b16 %v302
        %v843 = vunpack.c.l.b16 %v303
        %v844 = vunpack.c.h.b16 %v303
        %v845 = vunpack.c.l.b16 %v304
        %v846 = vunpack.c.h.b16 %v304
        %v847 = vunpack.c.l.b16 %v305
        %v848 = vunpack.c.h.b16 %v305
        %v849 = vunpack.c.l.b16 %v306
        %v850 = vunpack.c.h.b16 %v306
        %v851 = vunpack.c.l.b16 %v307
        %v852 = vunpack.c.h.b16 %v307
        %v853 = vunpack.c.l.b16 %v308
        %v854 = vunpack.c.h.b16 %v308
        %v855 = vunpack.c.l.b16 %v309
        %v856 = vunpack.c.h.b16 %v309
        %v857 = vunpack.c.l.b16 %v310
        %v858 = vunpack.c.h.b16 %v310
        %v859 = vunpack.c.l.b16 %v311
        %v860 = vunpack.c.h.b16 %v311
        %v861 = vunpack.c.l.b16 %v312
        %v862 = vunpack.c.h.b16 %v312
        %v863 = vunpack.c.l.b16 %v313
        %v864 = vunpack.c.h.b16 %v313
        %v865 = vunpack.c.l.b16 %v314
        %v866 = vunpack.c.h.b16 %v314
        %v867 = vunpack.c.l.b16 %v315
        %v868 = vunpack.c.h.b16 %v315
        %v869 = vunpack.c.l.b16 %v316
        %v870 = vunpack.c.h.b16 %v316
        %v871 = vunpack.c.l.b16 %v317
        %v872 = vunpack.c.h.b16 %v317
        %v873 = vunpack.c.l.b16 %v318
        %v874 = vunpack.c.h.b16 %v318
        %v875 = vunpack.c.l.b16 %v319
        %v876 = vunpack.c.h.b16 %v319
        %v877 = vunpack.c.l.b16 %v320
        %v878 = vunpack.c.h.b16 %v320
        %v879 = vunpack.c.l.b16 %v321
        %v880 = vunpack.c.h.b16 %v321
        %v881 = vunpack.c.l.b16 %v322
        %v882 = vunpack.c.h.b16 %v322
        %v883 = vunpack.c.l.b16 %v323
        %v884 = vunpack.c.h.b16 %v323
        %v885 = vunpack.c.l.b16 %v324
        %v886 = vunpack.c.h.b16 %v324
        %v887 = vunpack.c.l.b16 %v325
        %v888 = vunpack.c.h.b16 %v325
        %v889 = vunpack.c.l.b16 %v326
        %v890 = vunpack.c.h.b16 %v326
        %v891 = vunpack.c.l.b16 %v327
        %v892 = vunpack.c.h.b16 %v327
        %v893 = vunpack.c.l.b16 %v328
        %v894 = vunpack.c.h.b16 %v328
        %v895 = vunpack.c.l.b16 %v329
        %v896 = vunpack.c.h.b16 %v329
        %v897 = vunpack.c.l.b16 %v330
        %v898 = vunpack.c.h.b16 %v330
        %v899 = vunpack.c.l.b16 %v331
        %v900 = vunpack.c.h.b16 %v331
        %v901 = vunpack.c.l.b16 %v332
        %v902 = vunpack.c.h.b16 %v332
        %v903 = vunpack.c.l.b16 %v333
        %v904 = vunpack.c.h.b16 %v333
        %v905 = vunpack.c.l.b16 %v334
        %v906 = vunpack.c.h.b16 %v334
        %v907 = vunpack.c.l.b16 %v335
        %v908 = vunpack.c.h.b16 %v335
        %v909 = vunpack.c.l.b16 %v336
        %v910 = vunpack.c.h.b16 %v336
        %v911 = vunpack.c.l.b16 %v337
        %v912 = vunpack.c.h.b16 %v337
        %v913 = vunpack.c.l.b16 %v338
        %v914 = vunpack.c.h.b16 %v338
        %v915 = vunpack.c.l.b16 %v339
        %v916 = vunpack.c.h.b16 %v339
        %v917 = vunpack.c.l.b16 %v340
        %v918 = vunpack.c.h.b16 %v340
        %v919 = vunpack.c.l.b16 %v341
        %v920 = vunpack.c.h.b16 %v341
        %v921 = vunpack.c.l.b16 %v342
        %v922 = vunpack.c.h.b16 %v342
        %v923 = vunpack.c.l.b16 %v343
        %v924 = vunpack.c.h.b16 %v343
        %v925 = vunpack.c.l.b16 %v344
        %v926 = vunpack.c.h.b16 %v344
        %v927 = vunpack.c.l.b16 %v345
        %v928 = vunpack.c.h.b16 %v345
        %v929 = vunpack.c.l.b16 %v346
        %v930 = vunpack.c.h.b16 %v346
        %v931 = vunpack.c.l.b16 %v347
        %v932 = vunpack.c.h.b16 %v347
        %v933 = vunpack.c.l.b16 %v348
        %v934 = vunpack.c.h.b16 %v348
        %v935 = vunpack.c.l.b16 %v349
        %v936 = vunpack.c.h.b16 %v349
        %v937 = vunpack.c.l.b16 %v350
        %v938 = vunpack.c.h.b16 %v350
        %v939 = vunpack.c.l.b16 %v351
        %v940 = vunpack.c.h.b16 %v351
        %v941 = vunpack.c.l.b16 %v352
        %v942 = vunpack.c.h.b16 %v352
        %v943 = vunpack.c.l.b16 %v353
        %v944 = vunpack.c.h.b16 %v353
        %v945 = vunpack.c.l.b16 %v354
        %v946 = vunpack.c.h.b16 %v354
        %v947 = vunpack.c.l.b16 %v355
        %v948 = vunpack.c.h.b16 %v355
        %v949 = vunpack.c.l.b16 %v356
        %v950 = vunpack.c.h.b16 %v356
        %v951 = vunpack.c.l.b16 %v357
        %v952 = vunpack.c.h.b16 %v357
        %v953 = vunpack.c.l.b16 %v358
        %v954 = vunpack.c.h.b16 %v358
        %v955 = vunpack.c.l.b16 %v359
        %v956 = vunpack.c.h.b16 %v359
        %v957 = vunpack.c.l.b16 %v360
        %v958 = vunpack.c.h.b16 %v360
        %v959 = vunpack.c.l.b16 %v361
        %v960 = vunpack.c.h.b16 %v361
        %v961 = vunpack.c.l.b16 %v362
        %v962 = vunpack.c.h.b16 %v362
        %v963 = vunpack.c.l.b16 %v363
        %v964 = vunpack.c.h.b16 %v363
        %v965 = vunpack.c.l.b16 %v364
        %v966 = vunpack.c.h.b16 %v364
        %v967 = vunpack.c.l.b16 %v365
        %v968 = vunpack.c.h.b16 %v365
        %v969 = vunpack.c.l.b16 %v366
        %v970 = vunpack.c.h.b16 %v366
        %v971 = vunpack.c.l.b16 %v367
        %v972 = vunpack.c.h.b16 %v367
        %v973 = vunpack.c.l.b16 %v368
        %v974 = vunpack.c.h.b16 %v368
        %v975 = vunpack.c.l.b16 %v369
        %v976 = vunpack.c.h.b16 %v369
        %v977 = vunpack.c.l.b16 %v370
        %v978 = vunpack.c.h.b16 %v370
        %v979 = vunpack.c.l.b16 %v371
        %v980 = vunpack.c.h.b16 %v371
        %v981 = vunpack.c.l.b16 %v372
        %v982 = vunpack.c.h.b16 %v372
        %v983 = vunpack.c.l.b16 %v373
        %v984 = vunpack.c.h.b16 %v373
        %v985 = vunpack.c.l.b16 %v374
        %v986 = vunpack.c.h.b16 %v374
        %v987 = vunpack.c.l.b16 %v375
        %v988 = vunpack.c.h.b16 %v375
        %v989 = vunpack.c.l.b16 %v376
        %v990 = vunpack.c.h.b16 %v376
        %v991 = vunpack.c.l.b16 %v377
        %v992 = vunpack.c.h.b16 %v377
        %v993 = vunpack.c.l.b16 %v378
        %v994 = vunpack.c.h.b16 %v378
        %v995 = vunpack.c.l.b16 %v379
        %v996 = vunpack.c.h.b16 %v379
        %v997 = vunpack.c.l.b16 %v380
        %v998 = vunpack.c.h.b16 %v380
        %v999 = vunpack.c.l.b16 %v381
        %v1000 = vunpack.c.h.b16 %v381
        %v1001 = vunpack.c.l.b16 %v382
        %v1002 = vunpack.c.h.b16 %v382
        %v1003 = vunpack.c.l.b16 %v383
        %v1004 = vunpack.c.h.b16 %v383
        %v1005 = vunpack.c.l.b16 %v384
        %v1006 = vunpack.c.h.b16 %v384
        %v1007 = vunpack.c.l.b16 %v385
        %v1008 = vunpack.c.h.b16 %v385
        %v1009 = vunpack.c.l.b16 %v386
        %v1010 = vunpack.c.h.b16 %v386
        %v1011 = vunpack.c.l.b16 %v387
        %v1012 = vunpack.c.h.b16 %v387
        %v1013 = vunpack.c.l.b16 %v388
        %v1014 = vunpack.c.h.b16 %v388
        %v1015 = vunpack.c.l.b16 %v389
        %v1016 = vunpack.c.h.b16 %v389
        %v1017 = vunpack.c.l.b16 %v390
        %v1018 = vunpack.c.h.b16 %v390
        %v1019 = vunpack.c.l.b16 %v391
        %v1020 = vunpack.c.h.b16 %v391
        %v1021 = vunpack.c.l.b16 %v392
        %v1022 = vunpack.c.h.b16 %v392
        %v1023 = vunpack.c.l.b16 %v393
        %v1024 = vunpack.c.h.b16 %v393
        %v1025 = vunpack.c.l.b16 %v394
        %v1026 = vunpack.c.h.b16 %v394
        %v1027 = vunpack.c.l.b16 %v395
        %v1028 = vunpack.c.h.b16 %v395
        %v1029 = vunpack.c.l.b16 %v396
        %v1030 = vunpack.c.h.b16 %v396
        %v1031 = vunpack.c.l.b16 %v397
        %v1032 = vunpack.c.h.b16 %v397
        %v1033 = vunpack.c.l.b16 %v398
        %v1034 = vunpack.c.h.b16 %v398
        %v1035 = vunpack.c.l.b16 %v399
        %v1036 = vunpack.c.h.b16 %v399
        %v1037 = vunpack.c.l.b16 %v400
        %v1038 = vunpack.c.h.b16 %v400
        %v1039 = vunpack.c.l.b16 %v401
        %v1040 = vunpack.c.h.b16 %v401
        %v1041 = vunpack.c.l.b16 %v402
        %v1042 = vunpack.c.h.b16 %v402
        %v1043 = vunpack.c.l.b16 %v403
        %v1044 = vunpack.c.h.b16 %v403
        %v1045 = vunpack.c.l.b16 %v404
        %v1046 = vunpack.c.h.b16 %v404
        %v1047 = vunpack.c.l.b16 %v405
        %v1048 = vunpack.c.h.b16 %v405
        %v1049 = vunpack.c.l.b16 %v406
        %v1050 = vunpack.c.h.b16 %v406
        %v1051 = vunpack.c.l.b16 %v407
        %v1052 = vunpack.c.h.b16 %v407
        %v1053 = vunpack.c.l.b16 %v408
        %v1054 = vunpack.c.h.b16 %v408
        %v1055 = vunpack.c.l.b16 %v409
        %v1056 = vunpack.c.h.b16 %v409
        %v1057 = vunpack.c.l.b16 %v410
        %v1058 = vunpack.c.h.b16 %v410
        %v1059 = vunpack.c.l.b16 %v411
        %v1060 = vunpack.c.h.b16 %v411
        %v1061 = vunpack.c.l.b16 %v412
        %v1062 = vunpack.c.h.b16 %v412
        %v1063 = vunpack.c.l.b16 %v413
        %v1064 = vunpack.c.h.b16 %v413
        %v1065 = vunpack.c.l.b16 %v414
        %v1066 = vunpack.c.h.b16 %v414
        %v1067 = vunpack.c.l.b16 %v415
        %v1068 = vunpack.c.h.b16 %v415
        %v1069 = vunpack.c.l.b16 %v416
        %v1070 = vunpack.c.h.b16 %v416
        %v1071 = vunpack.c.l.b16 %v417
        %v1072 = vunpack.c.h.b16 %v417
        %v1073 = vunpack.c.l.b16 %v418
        %v1074 = vunpack.c.h.b16 %v418
        %v1075 = vunpack.c.l.b16 %v419
        %v1076 = vunpack.c.h.b16 %v419
        %v1077 = vunpack.c.l.b16 %v420
        %v1078 = vunpack.c.h.b16 %v420
        %v1079 = vunpack.c.l.b16 %v421
        %v1080 = vunpack.c.h.b16 %v421
        %v1081 = vunpack.c.l.b16 %v422
        %v1082 = vunpack.c.h.b16 %v422
        %v1083 = vunpack.c.l.b16 %v423
        %v1084 = vunpack.c.h.b16 %v423
        %v1085 = vunpack.c.l.b16 %v424
        %v1086 = vunpack.c.h.b16 %v424
        %v1087 = vunpack.c.l.b16 %v425
        %v1088 = vunpack.c.h.b16 %v425
        %v1089 = vunpack.c.l.b16 %v426
        %v1090 = vunpack.c.h.b16 %v426
        %v1091 = vunpack.c.l.b16 %v427
        %v1092 = vunpack.c.h.b16 %v427
        %v1093 = vunpack.c.l.b16 %v428
        %v1094 = vunpack.c.h.b16 %v428
        %v1095 = vunpack.c.l.b16 %v429
        %v1096 = vunpack.c.h.b16 %v429
        %v1097 = vunpack.c.l.b16 %v430
        %v1098 = vunpack.c.h.b16 %v430
        %v1099 = vunpack.c.l.b16 %v431
        %v1100 = vunpack.c.h.b16 %v431
        %v1101 = vunpack.c.l.b16 %v432
        %v1102 = vunpack.c.h.b16 %v432
        %v1103 = vunpack.c.l.b16 %v433
        %v1104 = vunpack.c.h.b16 %v433
        %v1105 = vunpack.c.l.b16 %v434
        %v1106 = vunpack.c.h.b16 %v434
        %v1107 = vunpack.c.l.b16 %v435
        %v1108 = vunpack.c.h.b16 %v435
        %v1109 = vunpack.c.l.b16 %v436
        %v1110 = vunpack.c.h.b16 %v436
        %v1111 = vunpack.c.l.b16 %v437
        %v1112 = vunpack.c.h.b16 %v437
        %v1113 = vunpack.c.l.b16 %v438
        %v1114 = vunpack.c.h.b16 %v438
        %v1115 = vunpack.c.l.b16 %v439
        %v1116 = vunpack.c.h.b16 %v439
        %v1117 = vunpack.c.l.b16 %v440
        %v1118 = vunpack.c.h.b16 %v440
        %v1119 = vunpack.c.l.b16 %v441
        %v1120 = vunpack.c.h.b16 %v441
        %v1121 = vunpack.c.l.b16 %v442
        %v1122 = vunpack.c.h.b16 %v442
        %v1123 = vunpack.c.l.b16 %v443
        %v1124 = vunpack.c.h.b16 %v443
        %v1125 = vunpack.c.l.b16 %v444
        %v1126 = vunpack.c.h.b16 %v444
        %v1127 = vunpack.c.l.b16 %v445
        %v1128 = vunpack.c.h.b16 %v445
        %v1129 = vunpack.c.l.b16 %v446
        %v1130 = vunpack.c.h.b16 %v446
        %v1131 = vunpack.c.l.b16 %v447
        %v1132 = vunpack.c.h.b16 %v447
        %v1133 = vunpack.c.l.b16 %v448
        %v1134 = vunpack.c.h.b16 %v448
        %v1135 = vunpack.c.l.b16 %v449
        %v1136 = vunpack.c.h.b16 %v449
        %v1137 = vunpack.c.l.b16 %v450
        %v1138 = vunpack.c.h.b16 %v450
        %v1139 = vunpack.c.l.b16 %v451
        %v1140 = vunpack.c.h.b16 %v451
        %v1141 = vunpack.c.l.b16 %v452
        %v1142 = vunpack.c.h.b16 %v452
        %v1143 = vunpack.c.l.b16 %v453
        %v1144 = vunpack.c.h.b16 %v453
        %v1145 = vunpack.c.l.b16 %v454
        %v1146 = vunpack.c.h.b16 %v454
        %v1147 = vunpack.c.l.b16 %v455
        %v1148 = vunpack.c.h.b16 %v455
        %v1149 = vunpack.c.l.b16 %v456
        %v1150 = vunpack.c.h.b16 %v456
        %v1151 = vunpack.c.l.b16 %v457
        %v1152 = vunpack.c.h.b16 %v457
        %v1153 = vunpack.c.l.b16 %v458
        %v1154 = vunpack.c.h.b16 %v458
        %v1155 = vunpack.c.l.b16 %v459
        %v1156 = vunpack.c.h.b16 %v459
        %v1157 = vunpack.c.l.b16 %v460
        %v1158 = vunpack.c.h.b16 %v460
        %v1159 = vunpack.c.l.b16 %v461
        %v1160 = vunpack.c.h.b16 %v461
        %v1161 = vunpack.c.l.b16 %v462
        %v1162 = vunpack.c.h.b16 %v462
        %v1163 = vunpack.c.l.b16 %v463
        %v1164 = vunpack.c.h.b16 %v463
        %v1165 = vunpack.c.l.b16 %v464
        %v1166 = vunpack.c.h.b16 %v464
        %v1167 = vunpack.c.l.b16 %v465
        %v1168 = vunpack.c.h.b16 %v465
        %v1169 = vunpack.c.l.b16 %v466
        %v1170 = vunpack.c.h.b16 %v466
        %v1171 = vpack.c.b16 %v725, %v723
        %v1172 = vpack.c.b16 %v726, %v724
        %v1173 = vpack.c.b16 %v729, %v727
        %v1174 = vpack.c.b16 %v730, %v728
        %v1175 = vpack.c.b16 %v733, %v731
        %v1176 = vpack.c.b16 %v734, %v732
        %v1177 = vpack.c.b16 %v737, %v735
        %v1178 = vpack.c.b16 %v738, %v736
        %v1179 = vpack.c.b16 %v741, %v739
        %v1180 = vpack.c.b16 %v742, %v740
        %v1181 = vpack.c.b16 %v745, %v743
        %v1182 = vpack.c.b16 %v746, %v744
        %v1183 = vpack.c.b16 %v749, %v747
        %v1184 = vpack.c.b16 %v750, %v748
        %v1185 = vpack.c.b16 %v753, %v751
        %v1186 = vpack.c.b16 %v754, %v752
        %v1187 = vpack.c.b16 %v757, %v755
        %v1188 = vpack.c.b16 %v758, %v756
        %v1189 = vpack.c.b16 %v761, %v759
        %v1190 = vpack.c.b16 %v762, %v760
        %v1191 = vpack.c.b16 %v765, %v763
        %v1192 = vpack.c.b16 %v766, %v764
        %v1193 = vpack.c.b16 %v769, %v767
        %v1194 = vpack.c.b16 %v770, %v768
        %v1195 = vpack.c.b16 %v773, %v771
        %v1196 = vpack.c.b16 %v774, %v772
        %v1197 = vpack.c.b16 %v777, %v775
        %v1198 = vpack.c.b16 %v778, %v776
        %v1199 = vpack.c.b16 %v781, %v779
        %v1200 = vpack.c.b16 %v782, %v780
        %v1201 = vpack.c.b16 %v785, %v783
        %v1202 = vpack.c.b16 %v786, %v784
        %v1203 = vpack.c.b16 %v789, %v787
        %v1204 = vpack.c.b16 %v790, %v788
        %v1205 = vpack.c.b16 %v793, %v791
        %v1206 = vpack.c.b16 %v794, %v792
        %v1207 = vpack.c.b16 %v797, %v795
        %v1208 = vpack.c.b16 %v798, %v796
        %v1209 = vpack.c.b16 %v801, %v799
        %v1210 = vpack.c.b16 %v802, %v800
        %v1211 = vpack.c.b16 %v805, %v803
        %v1212 = vpack.c.b16 %v806, %v804
        %v1213 = vpack.c.b16 %v809, %v807
        %v1214 = vpack.c.b16 %v810, %v808
        %v1215 = vpack.c.b16 %v813, %v811
        %v1216 = vpack.c.b16 %v814, %v812
        %v1217 = vpack.c.b16 %v817, %v815
        %v1218 = vpack.c.b16 %v818, %v816
        %v1219 = vpack.c.b16 %v821, %v819
        %v1220 = vpack.c.b16 %v822, %v820
        %v1221 = vpack.c.b16 %v825, %v823
        %v1222 = vpack.c.b16 %v826, %v824
        %v1223 = vpack.c.b16 %v829, %v827
        %v1224 = vpack.c.b16 %v830, %v828
        %v1225 = vpack.c.b16 %v833, %v831
        %v1226 = vpack.c.b16 %v834, %v832
        %v1227 = vpack.c.b16 %v837, %v835
        %v1228 = vpack.c.b16 %v838, %v836
        %v1229 = vpack.c.b16 %v841, %v839
        %v1230 = vpack.c.b16 %v842, %v840
        %v1231 = vpack.c.b16 %v845, %v843
        %v1232 = vpack.c.b16 %v846, %v844
        %v1233 = vpack.c.b16 %v849, %v847
        %v1234 = vpack.c.b16 %v850, %v848
        %v1235 = vpack.c.b16 %v853, %v851
        %v1236 = vpack.c.b16 %v854, %v852
        %v1237 = vpack.c.b16 %v857, %v855
        %v1238 = vpack.c.b16 %v858, %v856
        %v1239 = vpack.c.b16 %v861, %v859
        %v1240 = vpack.c.b16 %v862, %v860
        %v1241 = vpack.c.b16 %v865, %v863
        %v1242 = vpack.c.b16 %v866, %v864
        %v1243 = vpack.c.b16 %v869, %v867
        %v1244 = vpack.c.b16 %v870, %v868
        %v1245 = vpack.c.b16 %v873, %v871
        %v1246 = vpack.c.b16 %v874, %v872
        %v1247 = vpack.c.b16 %v877, %v875
        %v1248 = vpack.c.b16 %v878, %v876
        %v1249 = vpack.c.b16 %v881, %v879
        %v1250 = vpack.c.b16 %v882, %v880
        %v1251 = vpack.c.b16 %v885, %v883
        %v1252 = vpack.c.b16 %v886, %v884
        %v1253 = vpack.c.b16 %v889, %v887
        %v1254 = vpack.c.b16 %v890, %v888
        %v1255 = vpack.c.b16 %v893, %v891
        %v1256 = vpack.c.b16 %v894, %v892
        %v1257 = vpack.c.b16 %v897, %v895
        %v1258 = vpack.c.b16 %v898, %v896
        %v1259 = vpack.c.b16 %v901, %v899
        %v1260 = vpack.c.b16 %v902, %v900
        %v1261 = vpack.c.b16 %v905, %v903
        %v1262 = vpack.c.b16 %v906, %v904
        %v1263 = vpack.c.b16 %v909, %v907
        %v1264 = vpack.c.b16 %v910, %v908
        %v1265 = vpack.c.b16 %v913, %v911
        %v1266 = vpack.c.b16 %v914, %v912
        %v1267 = vpack.c.b16 %v917, %v915
        %v1268 = vpack.c.b16 %v918, %v916
        %v1269 = vpack.c.b16 %v921, %v919
        %v1270 = vpack.c.b16 %v922, %v920
        %v1271 = vpack.c.b16 %v925, %v923
        %v1272 = vpack.c.b16 %v926, %v924
        %v1273 = vpack.c.b16 %v929, %v927
        %v1274 = vpack.c.b16 %v930, %v928
        %v1275 = vpack.c.b16 %v933, %v931
        %v1276 = vpack.c.b16 %v934, %v932
        %v1277 = vpack.c.b16 %v937, %v935
        %v1278 = vpack.c.b16 %v938, %v936
        %v1279 = vpack.c.b16 %v941, %v939
        %v1280 = vpack.c.b16 %v942, %v940
        %v1281 = vpack.c.b16 %v945, %v943
        %v1282 = vpack.c.b16 %v946, %v944
        %v1283 = vpack.c.b16 %v949, %v947
        %v1284 = vpack.c.b16 %v950, %v948
        %v1285 = vpack.c.b16 %v953, %v951
        %v1286 = vpack.c.b16 %v954, %v952
        %v1287 = vpack.c.b16 %v957, %v955
        %v1288 = vpack.c.b16 %v958, %v956
        %v1289 = vpack.c.b16 %v961, %v959
        %v1290 = vpack.c.b16 %v962, %v960
        %v1291 = vpack.c.b16 %v965, %v963
        %v1292 = vpack.c.b16 %v966, %v964
        %v1293 = vpack.c.b16 %v969, %v967
        %v1294 = vpack.c.b16 %v970, %v968
        %v1295 = vpack.c.b16 %v973, %v971
        %v1296 = vpack.c.b16 %v974, %v972
        %v1297 = vpack.c.b16 %v977, %v975
        %v1298 = vpack.c.b16 %v978, %v976
        %v1299 = vpack.c.b16 %v981, %v979
        %v1300 = vpack.c.b16 %v982, %v980
        %v1301 = vpack.c.b16 %v985, %v983
        %v1302 = vpack.c.b16 %v986, %v984
        %v1303 = vpack.c.b16 %v989, %v987
        %v1304 = vpack.c.b16 %v990, %v988
        %v1305 = vpack.c.b16 %v993, %v991
        %v1306 = vpack.c.b16 %v994, %v992
        %v1307 = vpack.c.b16 %v997, %v995
        %v1308 = vpack.c.b16 %v998, %v996
        %v1309 = vpack.c.b16 %v1001, %v999
        %v1310 = vpack.c.b16 %v1002, %v1000
        %v1311 = vpack.c.b16 %v1005, %v1003
        %v1312 = vpack.c.b16 %v1006, %v1004
        %v1313 = vpack.c.b16 %v1009, %v1007
        %v1314 = vpack.c.b16 %v1010, %v1008
        %v1315 = vpack.c.b16 %v1013, %v1011
        %v1316 = vpack.c.b16 %v1014, %v1012
        %v1317 = vpack.c.b16 %v1017, %v1015
        %v1318 = vpack.c.b16 %v1018, %v1016
        %v1319 = vpack.c.b16 %v1021, %v1019
        %v1320 = vpack.c.b16 %v1022, %v1020
        %v1321 = vpack.c.b16 %v1025, %v1023
        %v1322 = vpack.c.b16 %v1026, %v1024
        %v1323 = vpack.c.b16 %v1029, %v1027
        %v1324 = vpack.c.b16 %v1030, %v1028
        %v1325 = vpack.c.b16 %v1033, %v1031
        %v1326 = vpack.c.b16 %v1034, %v1032
        %v1327 = vpack.c.b16 %v1037, %v1035
        %v1328 = vpack.c.b16 %v1038, %v1036
        %v1329 = vpack.c.b16 %v1041, %v1039
        %v1330 = vpack.c.b16 %v1042, %v1040
        %v1331 = vpack.c.b16 %v1045, %v1043
        %v1332 = vpack.c.b16 %v1046, %v1044
        %v1333 = vpack.c.b16 %v1049, %v1047
        %v1334 = vpack.c.b16 %v1050, %v1048
        %v1335 = vpack.c.b16 %v1053, %v1051
        %v1336 = vpack.c.b16 %v1054, %v1052
        %v1337 = vpack.c.b16 %v1057, %v1055
        %v1338 = vpack.c.b16 %v1058, %v1056
        %v1339 = vpack.c.b16 %v1061, %v1059
        %v1340 = vpack.c.b16 %v1062, %v1060
        %v1341 = vpack.c.b16 %v1065, %v1063
        %v1342 = vpack.c.b16 %v1066, %v1064
        %v1343 = vpack.c.b16 %v1069, %v1067
        %v1344 = vpack.c.b16 %v1070, %v1068
        %v1345 = vpack.c.b16 %v1073, %v1071
        %v1346 = vpack.c.b16 %v1074, %v1072
        %v1347 = vpack.c.b16 %v1077, %v1075
        %v1348 = vpack.c.b16 %v1078, %v1076
        %v1349 = vpack.c.b16 %v1081, %v1079
        %v1350 = vpack.c.b16 %v1082, %v1080
        %v1351 = vpack.c.b16 %v1085, %v1083
        %v1352 = vpack.c.b16 %v1086, %v1084
        %v1353 = vpack.c.b16 %v1089, %v1087
        %v1354 = vpack.c.b16 %v1090, %v1088
        %v1355 = vpack.c.b16 %v1093, %v1091
        %v1356 = vpack.c.b16 %v1094, %v1092
        %v1357 = vpack.c.b16 %v1097, %v1095
        %v1358 = vpack.c.b16 %v1098, %v1096
        %v1359 = vpack.c.b16 %v1101, %v1099
        %v1360 = vpack.c.b16 %v1102, %v1100
        %v1361 = vpack.c.b16 %v1105, %v1103
        %v1362 = vpack.c.b16 %v1106, %v1104
        %v1363 = vpack.c.b16 %v1109, %v1107
        %v1364 = vpack.c.b16 %v1110, %v1108
        %v1365 = vpack.c.b16 %v1113, %v1111
        %v1366 = vpack.c.b16 %v1114, %v1112
        %v1367 = vpack.c.b16 %v1117, %v1115
        %v1368 = vpack.c.b16 %v1118, %v1116
        %v1369 = vpack.c.b16 %v1121, %v1119
        %v1370 = vpack.c.b16 %v1122, %v1120
        %v1371 = vpack.c.b16 %v1125, %v1123
        %v1372 = vpack.c.b16 %v1126, %v1124
        %v1373 = vpack.c.b16 %v1129, %v1127
        %v1374 = vpack.c.b16 %v1130, %v1128
        %v1375 = vpack.c.b16 %v1133, %v1131
        %v1376 = vpack.c.b16 %v1134, %v1132
        %v1377 = vpack.c.b16 %v1137, %v1135
        %v1378 = vpack.c.b16 %v1138, %v1136
        %v1379 = vpack.c.b16 %v1141, %v1139
        %v1380 = vpack.c.b16 %v1142, %v1140
        %v1381 = vpack.c.b16 %v1145, %v1143
        %v1382 = vpack.c.b16 %v1146, %v1144
        %v1383 = vpack.c.b16 %v1149, %v1147
        %v1384 = vpack.c.b16 %v1150, %v1148
        %v1385 = vpack.c.b16 %v1153, %v1151
        %v1386 = vpack.c.b16 %v1154, %v1152
        %v1387 = vpack.c.b16 %v1157, %v1155
        %v1388 = vpack.c.b16 %v1158, %v1156
        %v1389 = vpack.c.b16 %v1161, %v1159
        %v1390 = vpack.c.b16 %v1162, %v1160
        %v1391 = vpack.c.b16 %v1165, %v1163
        %v1392 = vpack.c.b16 %v1166, %v1164
        %v1393 = vpack.c.b16 %v1169, %v1167
        %v1394 = vpack.c.b16 %v1170, %v1168
        %1619 = vmatpush.bf16.msra.mxu0 %v1185
        %1620 = vmatpush.bf16.msra.mxu0 %v1183
        %1621 = vmatpush.bf16.msra.mxu0 %v1181
        %1622 = vmatpush.bf16.msra.mxu0 %v1179
        %1623 = vmatpush.bf16.msra.mxu0 %v1177
        %1624 = vmatpush.bf16.msra.mxu0 %v1175
        %1625 = vmatpush.bf16.msra.mxu0 %v1173
        %1626 = vmatpush.bf16.msra.mxu0 %v1171
        %1627 = vmatmul.bf16.gmra.mxu0 %v469
        %v1628 = vpop.f32.mrf.mxu0
        %v1629 = vadd.f32 0.0, %v1628
        %v1630 = vpop.f32.mrf.mxu0
        %1631 = vdwg.mxu0
        %1632 = vmatpush.bf16.msra.mxu0 %v1201
        %1633 = vmatpush.bf16.msra.mxu0 %v1199
        %1634 = vmatpush.bf16.msra.mxu0 %v1197
        %1635 = vmatpush.bf16.msra.mxu0 %v1195
        %1636 = vmatpush.bf16.msra.mxu0 %v1193
        %1637 = vmatpush.bf16.msra.mxu0 %v1191
        %1638 = vmatpush.bf16.msra.mxu0 %v1189
        %1639 = vmatpush.bf16.msra.mxu0 %v1187
        %1640 = vmatmul.bf16.gmra.mxu0 %v470
        %v1641 = vpop.f32.mrf.mxu0
        %v1642 = vadd.f32 %v1629, %v1641
        %v1643 = vpop.f32.mrf.mxu0
        %1644 = vdwg.mxu0
        %1645 = vmatpush.bf16.msra.mxu0 %v1217
        %1646 = vmatpush.bf16.msra.mxu0 %v1215
        %1647 = vmatpush.bf16.msra.mxu0 %v1213
        %1648 = vmatpush.bf16.msra.mxu0 %v1211
        %1649 = vmatpush.bf16.msra.mxu0 %v1209
        %1650 = vmatpush.bf16.msra.mxu0 %v1207
        %1651 = vmatpush.bf16.msra.mxu0 %v1205
        %1652 = vmatpush.bf16.msra.mxu0 %v1203
        %1653 = vmatmul.bf16.gmra.mxu0 %v471
        %v1654 = vpop.f32.mrf.mxu0
        %v1655 = vadd.f32 %v1642, %v1654
        %v1656 = vpop.f32.mrf.mxu0
        %1657 = vdwg.mxu0
        %1658 = vmatpush.bf16.msra.mxu0 %v1233
        %1659 = vmatpush.bf16.msra.mxu0 %v1231
        %1660 = vmatpush.bf16.msra.mxu0 %v1229
        %1661 = vmatpush.bf16.msra.mxu0 %v1227
        %1662 = vmatpush.bf16.msra.mxu0 %v1225
        %1663 = vmatpush.bf16.msra.mxu0 %v1223
        %1664 = vmatpush.bf16.msra.mxu0 %v1221
        %1665 = vmatpush.bf16.msra.mxu0 %v1219
        %1666 = vmatmul.bf16.gmra.mxu0 %v472
        %v1667 = vpop.f32.mrf.mxu0
        %v1668 = vadd.f32 %v1655, %v1667
        %v1669 = vpop.f32.mrf.mxu0
        %1670 = vdwg.mxu0
        %1671 = vmatpush.bf16.msra.mxu0 %v1249
        %1672 = vmatpush.bf16.msra.mxu0 %v1247
        %1673 = vmatpush.bf16.msra.mxu0 %v1245
        %1674 = vmatpush.bf16.msra.mxu0 %v1243
        %1675 = vmatpush.bf16.msra.mxu0 %v1241
        %1676 = vmatpush.bf16.msra.mxu0 %v1239
        %1677 = vmatpush.bf16.msra.mxu0 %v1237
        %1678 = vmatpush.bf16.msra.mxu0 %v1235
        %1679 = vmatmul.bf16.gmra.mxu0 %v473
        %v1680 = vpop.f32.mrf.mxu0
        %v1681 = vadd.f32 %v1668, %v1680
        %v1682 = vpop.f32.mrf.mxu0
        %1683 = vdwg.mxu0
        %1684 = vmatpush.bf16.msra.mxu0 %v1265
        %1685 = vmatpush.bf16.msra.mxu0 %v1263
        %1686 = vmatpush.bf16.msra.mxu0 %v1261
        %1687 = vmatpush.bf16.msra.mxu0 %v1259
        %1688 = vmatpush.bf16.msra.mxu0 %v1257
        %1689 = vmatpush.bf16.msra.mxu0 %v1255
        %1690 = vmatpush.bf16.msra.mxu0 %v1253
        %1691 = vmatpush.bf16.msra.mxu0 %v1251
        %1692 = vmatmul.bf16.gmra.mxu0 %v474
        %v1693 = vpop.f32.mrf.mxu0
        %v1694 = vadd.f32 %v1681, %v1693
        %v1695 = vpop.f32.mrf.mxu0
        %1696 = vdwg.mxu0
        %1697 = vmatpush.bf16.msra.mxu0 %v1281
        %1698 = vmatpush.bf16.msra.mxu0 %v1279
        %1699 = vmatpush.bf16.msra.mxu0 %v1277
        %1700 = vmatpush.bf16.msra.mxu0 %v1275
        %1701 = vmatpush.bf16.msra.mxu0 %v1273
        %1702 = vmatpush.bf16.msra.mxu0 %v1271
        %1703 = vmatpush.bf16.msra.mxu0 %v1269
        %1704 = vmatpush.bf16.msra.mxu0 %v1267
        %1705 = vmatmul.bf16.gmra.mxu0 %v475
        %v1706 = vpop.f32.mrf.mxu0
        %v1707 = vadd.f32 %v1694, %v1706
        %v1708 = vpop.f32.mrf.mxu0
        %1709 = vdwg.mxu0
        %1710 = vmatpush.bf16.msra.mxu0 %v1297
        %1711 = vmatpush.bf16.msra.mxu0 %v1295
        %1712 = vmatpush.bf16.msra.mxu0 %v1293
        %1713 = vmatpush.bf16.msra.mxu0 %v1291
        %1714 = vmatpush.bf16.msra.mxu0 %v1289
        %1715 = vmatpush.bf16.msra.mxu0 %v1287
        %1716 = vmatpush.bf16.msra.mxu0 %v1285
        %1717 = vmatpush.bf16.msra.mxu0 %v1283
        %1718 = vmatmul.bf16.gmra.mxu0 %v476
        %v1719 = vpop.f32.mrf.mxu0
        %v1720 = vadd.f32 %v1707, %v1719
        %v1721 = vpop.f32.mrf.mxu0
        %1722 = vdwg.mxu0
        %1723 = vmatpush.bf16.msra.mxu0 %v1313
        %1724 = vmatpush.bf16.msra.mxu0 %v1311
        %1725 = vmatpush.bf16.msra.mxu0 %v1309
        %1726 = vmatpush.bf16.msra.mxu0 %v1307
        %1727 = vmatpush.bf16.msra.mxu0 %v1305
        %1728 = vmatpush.bf16.msra.mxu0 %v1303
        %1729 = vmatpush.bf16.msra.mxu0 %v1301
        %1730 = vmatpush.bf16.msra.mxu0 %v1299
        %1731 = vmatmul.bf16.gmra.mxu0 %v479
        %v1732 = vpop.f32.mrf.mxu0
        %v1733 = vadd.f32 %v1720, %v1732
        %v1734 = vpop.f32.mrf.mxu0
        %1735 = vdwg.mxu0
        %1736 = vmatpush.bf16.msra.mxu0 %v1329
        %1737 = vmatpush.bf16.msra.mxu0 %v1327
        %1738 = vmatpush.bf16.msra.mxu0 %v1325
        %1739 = vmatpush.bf16.msra.mxu0 %v1323
        %1740 = vmatpush.bf16.msra.mxu0 %v1321
        %1741 = vmatpush.bf16.msra.mxu0 %v1319
        %1742 = vmatpush.bf16.msra.mxu0 %v1317
        %1743 = vmatpush.bf16.msra.mxu0 %v1315
        %1744 = vmatmul.bf16.gmra.mxu0 %v480
        %v1745 = vpop.f32.mrf.mxu0
        %v1746 = vadd.f32 %v1733, %v1745
        %v1747 = vpop.f32.mrf.mxu0
        %1748 = vdwg.mxu0
        %1749 = vmatpush.bf16.msra.mxu0 %v1345
        %1750 = vmatpush.bf16.msra.mxu0 %v1343
        %1751 = vmatpush.bf16.msra.mxu0 %v1341
        %1752 = vmatpush.bf16.msra.mxu0 %v1339
        %1753 = vmatpush.bf16.msra.mxu0 %v1337
        %1754 = vmatpush.bf16.msra.mxu0 %v1335
        %1755 = vmatpush.bf16.msra.mxu0 %v1333
        %1756 = vmatpush.bf16.msra.mxu0 %v1331
        %1757 = vmatmul.bf16.gmra.mxu0 %v481
        %v1758 = vpop.f32.mrf.mxu0
        %v1759 = vadd.f32 %v1746, %v1758
        %v1760 = vpop.f32.mrf.mxu0
        %1761 = vdwg.mxu0
        %1762 = vmatpush.bf16.msra.mxu0 %v1361
        %1763 = vmatpush.bf16.msra.mxu0 %v1359
        %1764 = vmatpush.bf16.msra.mxu0 %v1357
        %1765 = vmatpush.bf16.msra.mxu0 %v1355
        %1766 = vmatpush.bf16.msra.mxu0 %v1353
        %1767 = vmatpush.bf16.msra.mxu0 %v1351
        %1768 = vmatpush.bf16.msra.mxu0 %v1349
        %1769 = vmatpush.bf16.msra.mxu0 %v1347
        %1770 = vmatmul.bf16.gmra.mxu0 %v482
        %v1771 = vpop.f32.mrf.mxu0
        %v1772 = vadd.f32 %v1759, %v1771
        %v1773 = vpop.f32.mrf.mxu0
        %1774 = vdwg.mxu0
        %1775 = vmatpush.bf16.msra.mxu0 %v1377
        %1776 = vmatpush.bf16.msra.mxu0 %v1375
        %1777 = vmatpush.bf16.msra.mxu0 %v1373
        %1778 = vmatpush.bf16.msra.mxu0 %v1371
        %1779 = vmatpush.bf16.msra.mxu0 %v1369
        %1780 = vmatpush.bf16.msra.mxu0 %v1367
        %1781 = vmatpush.bf16.msra.mxu0 %v1365
        %1782 = vmatpush.bf16.msra.mxu0 %v1363
        %1783 = vmatmul.bf16.gmra.mxu0 %v483
        %v1784 = vpop.f32.mrf.mxu0
        %v1785 = vadd.f32 %v1772, %v1784
        %v1786 = vpop.f32.mrf.mxu0
        %1787 = vdwg.mxu0
        %1788 = vmatpush.bf16.msra.mxu0 %v1393
        %1789 = vmatpush.bf16.msra.mxu0 %v1391
        %1790 = vmatpush.bf16.msra.mxu0 %v1389
        %1791 = vmatpush.bf16.msra.mxu0 %v1387
        %1792 = vmatpush.bf16.msra.mxu0 %v1385
        %1793 = vmatpush.bf16.msra.mxu0 %v1383
        %1794 = vmatpush.bf16.msra.mxu0 %v1381
        %1795 = vmatpush.bf16.msra.mxu0 %v1379
        %1796 = vmatmul.bf16.gmra.mxu0 %v484
        %v1797 = vpop.f32.mrf.mxu0
        %v1798 = vadd.f32 %v1785, %v1797
        %v1799 = vpop.f32.mrf.mxu0
        %1800 = vdwg.mxu0
        %1801 = vmatpush.bf16.msra.mxu0 %v1186
        %1802 = vmatpush.bf16.msra.mxu0 %v1184
        %1803 = vmatpush.bf16.msra.mxu0 %v1182
        %1804 = vmatpush.bf16.msra.mxu0 %v1180
        %1805 = vmatpush.bf16.msra.mxu0 %v1178
        %1806 = vmatpush.bf16.msra.mxu0 %v1176
        %1807 = vmatpush.bf16.msra.mxu0 %v1174
        %1808 = vmatpush.bf16.msra.mxu0 %v1172
        %1809 = vmatmul.bf16.gmra.mxu0 %v469
        %v1810 = vpop.f32.mrf.mxu0
        %v1811 = vadd.f32 0.0, %v1810
        %v1812 = vpop.f32.mrf.mxu0
        %1813 = vdwg.mxu0
        %1814 = vmatpush.bf16.msra.mxu0 %v1202
        %1815 = vmatpush.bf16.msra.mxu0 %v1200
        %1816 = vmatpush.bf16.msra.mxu0 %v1198
        %1817 = vmatpush.bf16.msra.mxu0 %v1196
        %1818 = vmatpush.bf16.msra.mxu0 %v1194
        %1819 = vmatpush.bf16.msra.mxu0 %v1192
        %1820 = vmatpush.bf16.msra.mxu0 %v1190
        %1821 = vmatpush.bf16.msra.mxu0 %v1188
        %1822 = vmatmul.bf16.gmra.mxu0 %v470
        %v1823 = vpop.f32.mrf.mxu0
        %v1824 = vadd.f32 %v1811, %v1823
        %v1825 = vpop.f32.mrf.mxu0
        %1826 = vdwg.mxu0
        %1827 = vmatpush.bf16.msra.mxu0 %v1218
        %1828 = vmatpush.bf16.msra.mxu0 %v1216
        %1829 = vmatpush.bf16.msra.mxu0 %v1214
        %1830 = vmatpush.bf16.msra.mxu0 %v1212
        %1831 = vmatpush.bf16.msra.mxu0 %v1210
        %1832 = vmatpush.bf16.msra.mxu0 %v1208
        %1833 = vmatpush.bf16.msra.mxu0 %v1206
        %1834 = vmatpush.bf16.msra.mxu0 %v1204
        %1835 = vmatmul.bf16.gmra.mxu0 %v471
        %v1836 = vpop.f32.mrf.mxu0
        %v1837 = vadd.f32 %v1824, %v1836
        %v1838 = vpop.f32.mrf.mxu0
        %1839 = vdwg.mxu0
        %1840 = vmatpush.bf16.msra.mxu0 %v1234
        %1841 = vmatpush.bf16.msra.mxu0 %v1232
        %1842 = vmatpush.bf16.msra.mxu0 %v1230
        %1843 = vmatpush.bf16.msra.mxu0 %v1228
        %1844 = vmatpush.bf16.msra.mxu0 %v1226
        %1845 = vmatpush.bf16.msra.mxu0 %v1224
        %1846 = vmatpush.bf16.msra.mxu0 %v1222
        %1847 = vmatpush.bf16.msra.mxu0 %v1220
        %1848 = vmatmul.bf16.gmra.mxu0 %v472
        %v1849 = vpop.f32.mrf.mxu0
        %v1850 = vadd.f32 %v1837, %v1849
        %v1851 = vpop.f32.mrf.mxu0
        %1852 = vdwg.mxu0
        %1853 = vmatpush.bf16.msra.mxu0 %v1250
        %1854 = vmatpush.bf16.msra.mxu0 %v1248
        %1855 = vmatpush.bf16.msra.mxu0 %v1246
        %1856 = vmatpush.bf16.msra.mxu0 %v1244
        %1857 = vmatpush.bf16.msra.mxu0 %v1242
        %1858 = vmatpush.bf16.msra.mxu0 %v1240
        %1859 = vmatpush.bf16.msra.mxu0 %v1238
        %1860 = vmatpush.bf16.msra.mxu0 %v1236
        %1861 = vmatmul.bf16.gmra.mxu0 %v473
        %v1862 = vpop.f32.mrf.mxu0
        %v1863 = vadd.f32 %v1850, %v1862
        %v1864 = vpop.f32.mrf.mxu0
        %1865 = vdwg.mxu0
        %1866 = vmatpush.bf16.msra.mxu0 %v1266
        %1867 = vmatpush.bf16.msra.mxu0 %v1264
        %1868 = vmatpush.bf16.msra.mxu0 %v1262
        %1869 = vmatpush.bf16.msra.mxu0 %v1260
        %1870 = vmatpush.bf16.msra.mxu0 %v1258
        %1871 = vmatpush.bf16.msra.mxu0 %v1256
        %1872 = vmatpush.bf16.msra.mxu0 %v1254
        %1873 = vmatpush.bf16.msra.mxu0 %v1252
        %1874 = vmatmul.bf16.gmra.mxu0 %v474
        %v1875 = vpop.f32.mrf.mxu0
        %v1876 = vadd.f32 %v1863, %v1875
        %v1877 = vpop.f32.mrf.mxu0
        %1878 = vdwg.mxu0
        %1879 = vmatpush.bf16.msra.mxu0 %v1282
        %1880 = vmatpush.bf16.msra.mxu0 %v1280
        %1881 = vmatpush.bf16.msra.mxu0 %v1278
        %1882 = vmatpush.bf16.msra.mxu0 %v1276
        %1883 = vmatpush.bf16.msra.mxu0 %v1274
        %1884 = vmatpush.bf16.msra.mxu0 %v1272
        %1885 = vmatpush.bf16.msra.mxu0 %v1270
        %1886 = vmatpush.bf16.msra.mxu0 %v1268
        %1887 = vmatmul.bf16.gmra.mxu0 %v475
        %v1888 = vpop.f32.mrf.mxu0
        %v1889 = vadd.f32 %v1876, %v1888
        %v1890 = vpop.f32.mrf.mxu0
        %1891 = vdwg.mxu0
        %1892 = vmatpush.bf16.msra.mxu0 %v1298
        %1893 = vmatpush.bf16.msra.mxu0 %v1296
        %1894 = vmatpush.bf16.msra.mxu0 %v1294
        %1895 = vmatpush.bf16.msra.mxu0 %v1292
        %1896 = vmatpush.bf16.msra.mxu0 %v1290
        %1897 = vmatpush.bf16.msra.mxu0 %v1288
        %1898 = vmatpush.bf16.msra.mxu0 %v1286
        %1899 = vmatpush.bf16.msra.mxu0 %v1284
        %1900 = vmatmul.bf16.gmra.mxu0 %v476
        %v1901 = vpop.f32.mrf.mxu0
        %v1902 = vadd.f32 %v1889, %v1901
        %v1903 = vpop.f32.mrf.mxu0
        %1904 = vdwg.mxu0
        %1905 = vmatpush.bf16.msra.mxu0 %v1314
        %1906 = vmatpush.bf16.msra.mxu0 %v1312
        %1907 = vmatpush.bf16.msra.mxu0 %v1310
        %1908 = vmatpush.bf16.msra.mxu0 %v1308
        %1909 = vmatpush.bf16.msra.mxu0 %v1306
        %1910 = vmatpush.bf16.msra.mxu0 %v1304
        %1911 = vmatpush.bf16.msra.mxu0 %v1302
        %1912 = vmatpush.bf16.msra.mxu0 %v1300
        %1913 = vmatmul.bf16.gmra.mxu0 %v479
        %v1914 = vpop.f32.mrf.mxu0
        %v1915 = vadd.f32 %v1902, %v1914
        %v1916 = vpop.f32.mrf.mxu0
        %1917 = vdwg.mxu0
        %1918 = vmatpush.bf16.msra.mxu0 %v1330
        %1919 = vmatpush.bf16.msra.mxu0 %v1328
        %1920 = vmatpush.bf16.msra.mxu0 %v1326
        %1921 = vmatpush.bf16.msra.mxu0 %v1324
        %1922 = vmatpush.bf16.msra.mxu0 %v1322
        %1923 = vmatpush.bf16.msra.mxu0 %v1320
        %1924 = vmatpush.bf16.msra.mxu0 %v1318
        %1925 = vmatpush.bf16.msra.mxu0 %v1316
        %1926 = vmatmul.bf16.gmra.mxu0 %v480
        %v1927 = vpop.f32.mrf.mxu0
        %v1928 = vadd.f32 %v1915, %v1927
        %v1929 = vpop.f32.mrf.mxu0
        %1930 = vdwg.mxu0
        %1931 = vmatpush.bf16.msra.mxu0 %v1346
        %1932 = vmatpush.bf16.msra.mxu0 %v1344
        %1933 = vmatpush.bf16.msra.mxu0 %v1342
        %1934 = vmatpush.bf16.msra.mxu0 %v1340
        %1935 = vmatpush.bf16.msra.mxu0 %v1338
        %1936 = vmatpush.bf16.msra.mxu0 %v1336
        %1937 = vmatpush.bf16.msra.mxu0 %v1334
        %1938 = vmatpush.bf16.msra.mxu0 %v1332
        %1939 = vmatmul.bf16.gmra.mxu0 %v481
        %v1940 = vpop.f32.mrf.mxu0
        %v1941 = vadd.f32 %v1928, %v1940
        %v1942 = vpop.f32.mrf.mxu0
        %1943 = vdwg.mxu0
        %1944 = vmatpush.bf16.msra.mxu0 %v1362
        %1945 = vmatpush.bf16.msra.mxu0 %v1360
        %1946 = vmatpush.bf16.msra.mxu0 %v1358
        %1947 = vmatpush.bf16.msra.mxu0 %v1356
        %1948 = vmatpush.bf16.msra.mxu0 %v1354
        %1949 = vmatpush.bf16.msra.mxu0 %v1352
        %1950 = vmatpush.bf16.msra.mxu0 %v1350
        %1951 = vmatpush.bf16.msra.mxu0 %v1348
        %1952 = vmatmul.bf16.gmra.mxu0 %v482
        %v1953 = vpop.f32.mrf.mxu0
        %v1954 = vadd.f32 %v1941, %v1953
        %v1955 = vpop.f32.mrf.mxu0
        %1956 = vdwg.mxu0
        %1957 = vmatpush.bf16.msra.mxu0 %v1378
        %1958 = vmatpush.bf16.msra.mxu0 %v1376
        %1959 = vmatpush.bf16.msra.mxu0 %v1374
        %1960 = vmatpush.bf16.msra.mxu0 %v1372
        %1961 = vmatpush.bf16.msra.mxu0 %v1370
        %1962 = vmatpush.bf16.msra.mxu0 %v1368
        %1963 = vmatpush.bf16.msra.mxu0 %v1366
        %1964 = vmatpush.bf16.msra.mxu0 %v1364
        %1965 = vmatmul.bf16.gmra.mxu0 %v483
        %v1966 = vpop.f32.mrf.mxu0
        %v1967 = vadd.f32 %v1954, %v1966
        %v1968 = vpop.f32.mrf.mxu0
        %1969 = vdwg.mxu0
        %1970 = vmatpush.bf16.msra.mxu0 %v1394
        %1971 = vmatpush.bf16.msra.mxu0 %v1392
        %1972 = vmatpush.bf16.msra.mxu0 %v1390
        %1973 = vmatpush.bf16.msra.mxu0 %v1388
        %1974 = vmatpush.bf16.msra.mxu0 %v1386
        %1975 = vmatpush.bf16.msra.mxu0 %v1384
        %1976 = vmatpush.bf16.msra.mxu0 %v1382
        %1977 = vmatpush.bf16.msra.mxu0 %v1380
        %1978 = vmatmul.bf16.gmra.mxu0 %v484
        %v1979 = vpop.f32.mrf.mxu0
        %v1980 = vadd.f32 %v1967, %v1979
        %v1981 = vpop.f32.mrf.mxu0
        %1982 = vdwg.mxu0
        %v1985 = vrot.slane %v1980, 6
        %vm1986 = vcmask 1041408
        %v1987 = vsel %vm1986, %v1798, %v1985
        %v1989 = vadd.f32 %v240, %v1987
        %1990 = vst [vmem:[#allocation2] sm:$0xf] %v1989
        %v1991 = vld [vmem:[#allocation2] sm:$0xf]
        %v1992 = vld [vmem:[%s2] sm:$0x3]
        %v1994 = vperm.slane %v1992, 0
        %v1995 = vperm.slane %v1992, 1
        %v1996 = vrot.slane %v1995, 6
        %v1997 = vsel %vm1986, %v1994, %v1996
        %v1999 = vadd.f32 %v1991, %v1997
        %v2000 = vmax.f32 %v1999, 0.0
        %v2001 = vld [vmem:[%s3] sm:$0xff]
        %v2002 = vld [vmem:[%s3 + $0x8] sm:$0xff]
        %v2003 = vld [vmem:[%s3 + $0x10] sm:$0xff]
        %v2004 = vld [vmem:[%s3 + $0x18] sm:$0xff]
        %v2005 = vld [vmem:[%s3 + $0x20] sm:$0xff]
        %v2006 = vld [vmem:[%s3 + $0x28] sm:$0xff]
        %v2007 = vld [vmem:[%s3 + $0x30] sm:$0xff]
        %v2008 = vld [vmem:[%s3 + $0x38] sm:$0xff]
        %v2009 = vld [vmem:[%s3 + $0x40] sm:$0xff]
        %v2010 = vld [vmem:[%s3 + $0x48] sm:$0xff]
        %v2011 = vld [vmem:[%s3 + $0x50] sm:$0xff]
        %v2012 = vld [vmem:[%s3 + $0x58] sm:$0xff]
        %v2013 = vld [vmem:[%s3 + $0x60] sm:$0xff]
        %v2014 = vld [vmem:[%s3 + $0x68] sm:$0xff]
        %v2015 = vld [vmem:[%s3 + $0x70] sm:$0xff]
        %v2016 = vld [vmem:[%s3 + $0x78] sm:$0xff]
        %v2017 = vld [vmem:[%s3 + $0x80] sm:$0xff]
        %v2018 = vld [vmem:[%s3 + $0x88] sm:$0xff]
        %v2019 = vld [vmem:[%s3 + $0x90] sm:$0xff]
        %v2020 = vld [vmem:[%s3 + $0x98] sm:$0xff]
        %v2021 = vld [vmem:[%s3 + $0xa0] sm:$0xff]
        %v2022 = vld [vmem:[%s3 + $0xa8] sm:$0xff]
        %v2023 = vld [vmem:[%s3 + $0xb0] sm:$0xff]
        %v2024 = vld [vmem:[%s3 + $0xb8] sm:$0xff]
        %v2025 = vld [vmem:[%s3 + $0xc0] sm:$0xff]
        %v2026 = vld [vmem:[%s3 + $0xc8] sm:$0xff]
        %v2027 = vld [vmem:[%s3 + $0xd0] sm:$0xff]
        %v2028 = vld [vmem:[%s3 + $0xd8] sm:$0xff]
        %v2029 = vld [vmem:[%s3 + $0xe0] sm:$0xff]
        %v2030 = vld [vmem:[%s3 + $0xe8] sm:$0xff]
        %v2031 = vld [vmem:[%s3 + $0xf0] sm:$0xff]
        %v2032 = vld [vmem:[%s3 + $0xf8] sm:$0xff]
        %v2033 = vld [vmem:[%s4] sm:$0x1]
        %v2035 = vperm.slane %v2033, 0
        %2038 = vst [vmem:[#allocation1] ss:$4 sm:$0xff] %v2000
        %v2039 = vld.sshfl [vmem:[#allocation1] sm:$0xff pattern:$0x73625140]
        %v2040 = vld.sshfl [vmem:[#allocation1 + $0x8] sm:$0xff pattern:$0x73625140]
        %2043 = vmatpush.msra.mxu0 %v2016
        %2044 = vmatpush.msra.mxu0 %v2015
        %2045 = vmatpush.msra.mxu0 %v2014
        %2046 = vmatpush.msra.mxu0 %v2013
        %2047 = vmatpush.msra.mxu0 %v2012
        %2048 = vmatpush.msra.mxu0 %v2011
        %2049 = vmatpush.msra.mxu0 %v2010
        %2050 = vmatpush.msra.mxu0 %v2009
        %2051 = vmatpush.msra.mxu0 %v2008
        %2052 = vmatpush.msra.mxu0 %v2007
        %2053 = vmatpush.msra.mxu0 %v2006
        %2054 = vmatpush.msra.mxu0 %v2005
        %2055 = vmatpush.msra.mxu0 %v2004
        %2056 = vmatpush.msra.mxu0 %v2003
        %2057 = vmatpush.msra.mxu0 %v2002
        %2058 = vmatpush.msra.mxu0 %v2001
        %2059 = vmatmul.f32.gmra.mxu0 %v2039
        %v2060 = vpop.f32.mrf.mxu0
        %v2061 = vadd.f32 %v2035, %v2060
        %2062 = vdwg.mxu0
        %2063 = vmatpush.msra.mxu0 %v2032
        %2064 = vmatpush.msra.mxu0 %v2031
        %2065 = vmatpush.msra.mxu0 %v2030
        %2066 = vmatpush.msra.mxu0 %v2029
        %2067 = vmatpush.msra.mxu0 %v2028
        %2068 = vmatpush.msra.mxu0 %v2027
        %2069 = vmatpush.msra.mxu0 %v2026
        %2070 = vmatpush.msra.mxu0 %v2025
        %2071 = vmatpush.msra.mxu0 %v2024
        %2072 = vmatpush.msra.mxu0 %v2023
        %2073 = vmatpush.msra.mxu0 %v2022
        %2074 = vmatpush.msra.mxu0 %v2021
        %2075 = vmatpush.msra.mxu0 %v2020
        %2076 = vmatpush.msra.mxu0 %v2019
        %2077 = vmatpush.msra.mxu0 %v2018
        %2078 = vmatpush.msra.mxu0 %v2017
        %2079 = vmatmul.f32.gmra.mxu0 %v2040
        %v2080 = vpop.f32.mrf.mxu0
        %v2081 = vadd.f32 %v2061, %v2080
        %2082 = vdwg.mxu0
        %2084 = vset.pattern.permute.xlu0 6
        %2085 = vperm.xlu0 %2084, %v2081
        %v2086 = vpop.permute.xlu0 %2085
        %v2088 = vadd.f32 %v2086, %v2081
        %vm2089 = vcmask 41984
        %v2090 = vsel %vm2089, %v2081, 0.0
        %2091 = vadd.xlane.f32.xlu0 %v2090
        %v2092 = vpop.xlane.xlu0 %2091
        %v2093 = vrcp.pop 6.0
        %v2094 = vmul.f32 6.0, %v2093
        %v2095 = vsub.f32 1.0, %v2094
        %v2096 = vmul.f32 %v2093, %v2095
        %v2097 = vadd.f32 %v2093, %v2096
        %vm2098 = vweird.f32 %v2093
        %v2099 = vsel %vm2098, %v2093, %v2097
        %v2100 = vmul.f32 %v2092, %v2099
        %v2101 = vsub.f32 %v2088, %v2100
        %2102 = vst.msk [vmem:[#allocation3] sm:$0x3] %vm2089, %v2101
        // Predicated region
        $region45: #{vanet_forward.7} parent=39 // pred_check
          %p2103 = pneg %p145
        $region46: #{vanet_forward.7} parent=39 // pred_check_branch
          %2105 = sbr.rel (%p2103) target = $region48
        $region47: #{vanet_forward.7} parent=39 // pred_region
          %2107 = vsyncadd [#allocation4], 0
          %s2109 = sshll.u32 [#allocation3], 4
          %s2110 = int_to_ptr.vmem [resolvable:$true] %s2109
          %s2111 = sshll.u32 %s5, 4
          %s2112 = int_to_ptr.hbm [resolvable:$true] %s2111
          %2114 = dma.vmem_to_hbm [thread:$0]  %s2110, 32, %s2112, [#allocation4]
        $region48: #{vanet_forward.7} parent=39 // pred_fallthru
          _
        // Predicated region
        $region49: #{vanet_forward.7} parent=39 // pred_check
          %p2115 = pneg %p145
        $region50: #{vanet_forward.7} parent=39 // pred_check_branch
          %2117 = sbr.rel (%p2115) target = $region52
        $region51: #{vanet_forward.7} parent=39 // pred_region
          %2119 = dma.done [#allocation4], 32
        $region52: #{vanet_forward.7} parent=39 // pred_fallthru
          _
      $region40: #{vanet_forward.7} parent=5 // pred_fallthru
        _
      %p2120 = scmp.le.s32.totalorder 2, %s12
      // Predicated region
      $region53: #{vanet_forward.7} parent=5 // pred_check
        %p2121 = pneg %p2120
      $region54: #{vanet_forward.7} parent=5 // pred_check_branch
        %2123 = sbr.rel (%p2121) target = $region56
      $region55: #{vanet_forward.7} parent=5 // pred_region
        %s2124 = ssub.s32 %s12, 2
      $region56: #{vanet_forward.7} parent=5 // pred_fallthru
        _
    $region6: #{vanet_forward.7} parent=1 // loop_footer
      %s16 = sadd.s32 1, %s12
    $region7: #{vanet_forward.7} parent=1 // loop_footer_branch
      %11 = sbr.rel target = $region3
    $region8: #{vanet_forward.7} parent=1 // loop_exit
      _
    %2125 = vsyncpa [#allocation4], 1
    %s2126 = scalar_lea.sflag [#allocation4], 1
    %2127 = vsyncpa %s2126, 1

</llo_original>
